<compile_context>
chip_gen: v7x
topology: tpu7x:2x2x1
jax: 0.10.0
libtpu: 0.0.40
codegen_flags: <defaults>
</compile_context>

<pallas_src>
import jax
import jax.numpy as jnp
from jax.experimental import pallas as pl
from jax.experimental.pallas import tpu as pltpu

INPUT_DIM = 4        # CartPole-v0 observation dim
HIDDEN = 400         # per Critic.__init__
HIDDEN_PAD = 512     # lane-aligned zero-padded hidden dim
OUT_DIM = 1
TM_CAP = 512         # max batch columns per grid tile (lanes)


def critic_kernel(x_ref, w1_ref, b1_ref, w2_ref, b2_ref, w3_ref, b3_ref, o_ref):
    # x_ref: (4, TM) f32 — batch sits on lanes for the whole kernel.
    xt = x_ref[...]

    # Layer 1: K=4, so 4 VPU broadcast-FMAs (f32) beat a nearly-empty MXU pass.
    #   h1^T[:, b] = relu(b1 + sum_k W1[:, k] * x[b, k])
    acc = b1_ref[...] + w1_ref[:, 0:1] * xt[0:1, :]          # (512,1)*(1,TM) -> (512,TM)
    for k in range(1, INPUT_DIM):
        acc = acc + w1_ref[:, k:k + 1] * xt[k:k + 1, :]
    h1 = jnp.maximum(acc, 0.0)                               # (512, TM) f32

    # Layer 2 on the MXU: (512, 512) bf16 @ (512, TM) bf16 -> f32 accumulate.
    h2 = jnp.dot(w2_ref[...], h1.astype(jnp.bfloat16),
                 preferred_element_type=jnp.float32)
    h2 = jnp.maximum(h2 + b2_ref[...], 0.0)                  # f32 VPU bias + ReLU

    # Value head: VPU multiply + sublane (XLU) reduction.  Because batch is on lanes,
    # the result is already a lane-dense (1, TM) row — no transpose, no masked stores.
    v = jnp.sum(h2 * w3_ref[...], axis=0, keepdims=True)     # (1, TM) f32
    o_ref[...] = v + b3_ref[0, 0]                            # b3 is an SMEM scalar


def _tiling(b):
    """Pick (b_pad, tm): tm multiple of 128; prefer <= ~2-3 grid steps, >= 2 when b >= 256."""
    b_pad = max(128, -(-b // 128) * 128)         # round batch up to lane multiple
    if b_pad <= 128:
        return b_pad, b_pad                       # single grid step, no per-step overhead
    # ~2 steps keeps both v7x TensorCores busy; cap tile at TM_CAP rows.
    tm = min(TM_CAP, max(128, ((b_pad // 2) // 128) * 128))
    b_pad = -(-b_pad // tm) * tm
    return b_pad, tm


def critic_forward(x, params):
    """x: (B, INPUT_DIM) float32. Returns (B, 1) float32 value estimates."""
    w1, b1, w2, b2, w3, b3 = params
    b = x.shape[0]
    b_pad, tm = _tiling(b)

    xt = x.astype(jnp.float32).T                  # (4, B): batch on lanes
    if b_pad != b:
        xt = jnp.pad(xt, ((0, 0), (0, b_pad - b)))

    flops = 2 * b_pad * (INPUT_DIM * HIDDEN_PAD + HIDDEN_PAD * HIDDEN_PAD + HIDDEN_PAD)
    bytes_accessed = (w1.size * 4 + b1.size * 4 + w2.size * 2 + b2.size * 4
                      + w3.size * 4 + b3.size * 4
                      + b_pad * INPUT_DIM * 4 + b_pad * 4)

    out = pl.pallas_call(
        critic_kernel,
        out_shape=jax.ShapeDtypeStruct((1, b_pad), jnp.float32),
        grid=(b_pad // tm,),
        in_specs=[
            # x^T: tiled along the batch (lane) grid axis
            pl.BlockSpec((INPUT_DIM, tm), lambda i: (0, i)),
            # weights/biases: constant block index -> DMA'd once, VMEM-resident
            pl.BlockSpec((HIDDEN_PAD, INPUT_DIM), lambda i: (0, 0)),   # W1 (f32, (out,in))
            pl.BlockSpec((HIDDEN_PAD, 1), lambda i: (0, 0)),           # b1 column (f32)
            pl.BlockSpec((HIDDEN_PAD, HIDDEN_PAD), lambda i: (0, 0)),  # W2 (bf16, (out,in))
            pl.BlockSpec((HIDDEN_PAD, 1), lambda i: (0, 0)),           # b2 column (f32)
            pl.BlockSpec((HIDDEN_PAD, 1), lambda i: (0, 0)),           # W3 column (f32)
            # b3: scalar via SMEM (no padded VMEM tile)
            pl.BlockSpec(memory_space=pltpu.MemorySpace.SMEM),
        ],
        # lane-dense output row: unmasked vector stores, contiguous HBM writeback
        out_specs=pl.BlockSpec((1, tm), lambda i: (0, i)),
        compiler_params=pltpu.CompilerParams(
            dimension_semantics=("parallel",)),
        cost_estimate=pl.CostEstimate(flops=int(flops), transcendentals=0,
                                      bytes_accessed=int(bytes_accessed)),
    )(xt, w1, b1, w2, b2, w3, b3)

    return out[0, :b].reshape(b, OUT_DIM)


def init_params(key):
    """PyTorch-style U(-1/sqrt(fan_in), 1/sqrt(fan_in)) init, padded/cast for the kernel.

    nn.Linear stores weight as (out, in); the kernel computes h^T = W @ x^T, so the
    PyTorch layout is used directly (no transpose), zero-padded along the hidden dim.
    """
    def uniform(k, shape, bound):
        return jax.random.uniform(k, shape, jnp.float32, -bound, bound)

    k1, k2, k3, k4, k5, k6 = jax.random.split(key, 6)
    bnd1 = 1.0 / float(INPUT_DIM) ** 0.5
    bnd2 = 1.0 / float(HIDDEN) ** 0.5
    pad = HIDDEN_PAD - HIDDEN

    w1 = jnp.pad(uniform(k1, (HIDDEN, INPUT_DIM), bnd1), ((0, pad), (0, 0)))     # f32
    b1 = jnp.pad(uniform(k2, (HIDDEN, 1), bnd1), ((0, pad), (0, 0)))             # f32
    w2 = jnp.pad(uniform(k3, (HIDDEN, HIDDEN), bnd2),
                 ((0, pad), (0, pad))).astype(jnp.bfloat16)                      # bf16
    b2 = jnp.pad(uniform(k4, (HIDDEN, 1), bnd2), ((0, pad), (0, 0)))             # f32
    w3 = jnp.pad(uniform(k5, (HIDDEN, 1), bnd2), ((0, pad), (0, 0)))             # f32 column
    b3 = uniform(k6, (1, 1), bnd2)                                               # f32 scalar
    return w1, b1, w2, b2, w3, b3


def ref_forward(x, params):
    """Pure-JAX reference with identical numerics (bf16 W2 / h1 cast, f32 accumulation)."""
    w1, b1, w2, b2, w3, b3 = params
    xt = x.astype(jnp.float32).T                              # (4, B)
    acc = b1
    for k in range(INPUT_DIM):
        acc = acc + w1[:, k:k + 1] * xt[k:k + 1, :]
    h1 = jnp.maximum(acc, 0.0)
    h2 = jnp.dot(w2, h1.astype(jnp.bfloat16), preferred_element_type=jnp.float32)
    h2 = jnp.maximum(h2 + b2, 0.0)
    v = jnp.sum(h2 * w3, axis=0, keepdims=True) + b3[0, 0]    # (1, B)
    return v.T                                                # (B, 1)


if __name__ == "__main__":
    key = jax.random.PRNGKey(0)
    k_params, k_x = jax.random.split(key)

    params = init_params(k_params)

    # A batch of CartPole states (one rollout's worth of timesteps batched into a single
    # call so the ~0.5 MB weight stream + launch cost are amortized).
    B = 256
    x = jax.random.normal(k_x, (B, INPUT_DIM), jnp.float32)

    out = jax.block_until_ready(critic_forward(x, params))    # 2 parallel grid steps
    ref = ref_forward(x, params)
    assert out.shape == (B, OUT_DIM)
    assert jnp.allclose(out, ref, atol=1e-3, rtol=1e-3), (out[:4], ref[:4])

    # Also exercise the padded / single-grid-step path (B not a multiple of 128).
    x2 = jax.random.normal(k_x, (37, INPUT_DIM), jnp.float32)
    out2 = jax.block_until_ready(critic_forward(x2, params))
    assert out2.shape == (37, OUT_DIM)
    assert jnp.allclose(out2, ref_forward(x2, params), atol=1e-3, rtol=1e-3)

    # Scalar value for state 0, equivalent to `value.item()` in the PyTorch forward.
    value = float(out[0, 0])

    # TODO(synk): backprop()/Adam optimizer bookkeeping from the module is training-side
    # and not part of the forward pass; intentionally not implemented in the kernel.
    print("KERNEL_OK")
</pallas_src>

<mosaic_0001>
module attributes {stable_mosaic.version = 11 : i64} {
  func.func @critic_kernel(%arg0: i32, %arg1: memref<4x128xf32, #tpu.memory_space<vmem>>, %arg2: memref<512x4xf32, #tpu.memory_space<vmem>>, %arg3: memref<512x1xf32, #tpu.memory_space<vmem>>, %arg4: memref<512x512xbf16, #tpu.memory_space<vmem>>, %arg5: memref<512x1xf32, #tpu.memory_space<vmem>>, %arg6: memref<512x1xf32, #tpu.memory_space<vmem>>, %arg7: memref<1x1xf32, #tpu.memory_space<smem>>, %arg8: memref<1x128xf32, #tpu.memory_space<vmem>>) attributes {dimension_semantics = [#tpu.dimension_semantics<parallel>], iteration_bounds = array<i64: 2>, scalar_prefetch = 0 : i64, scratch_operands = 0 : i64, tpu.core_type = #tpu.core_type<tc>, window_params = [{transform_indices = @transform_0, window_bounds = array<i64: 4, 128>}, {pipeline_mode = #tpu.pipeline_mode<synchronous>, transform_indices = @transform_1, window_bounds = array<i64: 512, 4>}, {pipeline_mode = #tpu.pipeline_mode<synchronous>, transform_indices = @transform_2, window_bounds = array<i64: 512, 1>}, {pipeline_mode = #tpu.pipeline_mode<synchronous>, transform_indices = @transform_3, window_bounds = array<i64: 512, 512>}, {pipeline_mode = #tpu.pipeline_mode<synchronous>, transform_indices = @transform_4, window_bounds = array<i64: 512, 1>}, {pipeline_mode = #tpu.pipeline_mode<synchronous>, transform_indices = @transform_5, window_bounds = array<i64: 512, 1>}, {transform_indices = @transform_6, window_bounds = array<i64: 1, 1>}, {transform_indices = @transform_7, window_bounds = array<i64: 1, 128>}]} {
    %c0 = arith.constant 0 : index
    %c0_0 = arith.constant 0 : index
    %0 = vector.load %arg1[%c0, %c0_0] : memref<4x128xf32, #tpu.memory_space<vmem>>, vector<4x128xf32>
    %c0_1 = arith.constant 0 : index
    %c0_2 = arith.constant 0 : index
    %1 = vector.load %arg3[%c0_1, %c0_2] : memref<512x1xf32, #tpu.memory_space<vmem>>, vector<512x1xf32>
    %c0_3 = arith.constant 0 : index
    %c0_4 = arith.constant 0 : index
    %2 = vector.load %arg2[%c0_3, %c0_4] : memref<512x4xf32, #tpu.memory_space<vmem>>, vector<512x1xf32>
    %3 = vector.extract_strided_slice %0 {offsets = [0, 0], sizes = [1, 128], strides = [1, 1]} : vector<4x128xf32> to vector<1x128xf32>
    %4 = vector.broadcast %2 : vector<512x1xf32> to vector<512x128xf32>
    %5 = vector.broadcast %3 : vector<1x128xf32> to vector<512x128xf32>
    %6 = arith.mulf %4, %5 : vector<512x128xf32>
    %7 = vector.broadcast %1 : vector<512x1xf32> to vector<512x128xf32>
    %8 = arith.addf %7, %6 : vector<512x128xf32>
    %c0_5 = arith.constant 0 : index
    %c1 = arith.constant 1 : index
    %9 = vector.load %arg2[%c0_5, %c1] : memref<512x4xf32, #tpu.memory_space<vmem>>, vector<512x1xf32>
    %10 = vector.extract_strided_slice %0 {offsets = [1, 0], sizes = [1, 128], strides = [1, 1]} : vector<4x128xf32> to vector<1x128xf32>
    %11 = vector.broadcast %9 : vector<512x1xf32> to vector<512x128xf32>
    %12 = vector.broadcast %10 : vector<1x128xf32> to vector<512x128xf32>
    %13 = arith.mulf %11, %12 : vector<512x128xf32>
    %14 = arith.addf %8, %13 : vector<512x128xf32>
    %c0_6 = arith.constant 0 : index
    %c2 = arith.constant 2 : index
    %15 = vector.load %arg2[%c0_6, %c2] : memref<512x4xf32, #tpu.memory_space<vmem>>, vector<512x1xf32>
    %16 = vector.extract_strided_slice %0 {offsets = [2, 0], sizes = [1, 128], strides = [1, 1]} : vector<4x128xf32> to vector<1x128xf32>
    %17 = vector.broadcast %15 : vector<512x1xf32> to vector<512x128xf32>
    %18 = vector.broadcast %16 : vector<1x128xf32> to vector<512x128xf32>
    %19 = arith.mulf %17, %18 : vector<512x128xf32>
    %20 = arith.addf %14, %19 : vector<512x128xf32>
    %c0_7 = arith.constant 0 : index
    %c3 = arith.constant 3 : index
    %21 = vector.load %arg2[%c0_7, %c3] : memref<512x4xf32, #tpu.memory_space<vmem>>, vector<512x1xf32>
    %22 = vector.extract_strided_slice %0 {offsets = [3, 0], sizes = [1, 128], strides = [1, 1]} : vector<4x128xf32> to vector<1x128xf32>
    %23 = vector.broadcast %21 : vector<512x1xf32> to vector<512x128xf32>
    %24 = vector.broadcast %22 : vector<1x128xf32> to vector<512x128xf32>
    %25 = arith.mulf %23, %24 : vector<512x128xf32>
    %26 = arith.addf %20, %25 : vector<512x128xf32>
    %cst = arith.constant 0.000000e+00 : f32
    %27 = vector.broadcast %cst : f32 to vector<512x128xf32>
    %28 = arith.maximumf %26, %27 : vector<512x128xf32>
    %c0_8 = arith.constant 0 : index
    %c0_9 = arith.constant 0 : index
    %29 = vector.load %arg4[%c0_8, %c0_9] : memref<512x512xbf16, #tpu.memory_space<vmem>>, vector<512x512xbf16>
    %30 = arith.truncf %28 : vector<512x128xf32> to vector<512x128xbf16>
    %cst_10 = arith.constant dense<0.000000e+00> : vector<512x128xf32>
    %31 = tpu.matmul %29, %30, %cst_10 {dimension_numbers = #tpu.dot_dimension_numbers<[1], [0], [0], [1], [0, 0, 1, 1], [], []>} : vector<512x512xbf16>, vector<512x128xbf16>, vector<512x128xf32> -> vector<512x128xf32>
    %c0_11 = arith.constant 0 : index
    %c0_12 = arith.constant 0 : index
    %32 = vector.load %arg5[%c0_11, %c0_12] : memref<512x1xf32, #tpu.memory_space<vmem>>, vector<512x1xf32>
    %33 = vector.broadcast %32 : vector<512x1xf32> to vector<512x128xf32>
    %34 = arith.addf %31, %33 : vector<512x128xf32>
    %cst_13 = arith.constant 0.000000e+00 : f32
    %35 = vector.broadcast %cst_13 : f32 to vector<512x128xf32>
    %36 = arith.maximumf %34, %35 : vector<512x128xf32>
    %c0_14 = arith.constant 0 : index
    %c0_15 = arith.constant 0 : index
    %37 = vector.load %arg6[%c0_14, %c0_15] : memref<512x1xf32, #tpu.memory_space<vmem>>, vector<512x1xf32>
    %38 = vector.broadcast %37 : vector<512x1xf32> to vector<512x128xf32>
    %39 = arith.mulf %36, %38 : vector<512x128xf32>
    %cst_16 = arith.constant dense<0.000000e+00> : vector<128xf32>
    %40 = vector.multi_reduction <add>, %39, %cst_16 [0] : vector<512x128xf32> to vector<128xf32>
    %41 = vector.shape_cast %40 : vector<128xf32> to vector<1x128xf32>
    %c0_17 = arith.constant 0 : index
    %c0_18 = arith.constant 0 : index
    %42 = memref.load %arg7[%c0_17, %c0_18] : memref<1x1xf32, #tpu.memory_space<smem>>
    %43 = vector.broadcast %42 : f32 to vector<1x128xf32>
    %44 = arith.addf %41, %43 : vector<1x128xf32>
    %c0_19 = arith.constant 0 : index
    %c0_20 = arith.constant 0 : index
    %45 = vector.load %arg8[%c0_19, %c0_20] : memref<1x128xf32, #tpu.memory_space<vmem>>, vector<1x128xf32>
    tpu.vector_store %arg8[%c0_19, %c0_20], %44 {strides = array<i32>} : memref<1x128xf32, #tpu.memory_space<vmem>>, vector<1x128xf32>,
    return
  }
  func.func @transform_0(%arg0: i32) -> (i32, i32) {
    %c0_i32 = arith.constant 0 : i32
    %c0_i32_0 = arith.constant 0 : i32
    return %c0_i32, %arg0 : i32, i32
  }
  func.func @transform_1(%arg0: i32) -> (i32, i32) {
    %c0_i32 = arith.constant 0 : i32
    %c0_i32_0 = arith.constant 0 : i32
    %c0_i32_1 = arith.constant 0 : i32
    return %c0_i32, %c0_i32_0 : i32, i32
  }
  func.func @transform_2(%arg0: i32) -> (i32, i32) {
    %c0_i32 = arith.constant 0 : i32
    %c0_i32_0 = arith.constant 0 : i32
    %c0_i32_1 = arith.constant 0 : i32
    return %c0_i32, %c0_i32_0 : i32, i32
  }
  func.func @transform_3(%arg0: i32) -> (i32, i32) {
    %c0_i32 = arith.constant 0 : i32
    %c0_i32_0 = arith.constant 0 : i32
    %c0_i32_1 = arith.constant 0 : i32
    return %c0_i32, %c0_i32_0 : i32, i32
  }
  func.func @transform_4(%arg0: i32) -> (i32, i32) {
    %c0_i32 = arith.constant 0 : i32
    %c0_i32_0 = arith.constant 0 : i32
    %c0_i32_1 = arith.constant 0 : i32
    return %c0_i32, %c0_i32_0 : i32, i32
  }
  func.func @transform_5(%arg0: i32) -> (i32, i32) {
    %c0_i32 = arith.constant 0 : i32
    %c0_i32_0 = arith.constant 0 : i32
    %c0_i32_1 = arith.constant 0 : i32
    return %c0_i32, %c0_i32_0 : i32, i32
  }
  func.func @transform_6(%arg0: i32) -> (i32, i32) {
    %c0_i32 = arith.constant 0 : i32
    %c0_i32_0 = arith.constant 0 : i32
    %c0_i32_1 = arith.constant 0 : i32
    return %c0_i32, %c0_i32_0 : i32, i32
  }
  func.func @transform_7(%arg0: i32) -> (i32, i32) {
    %c0_i32 = arith.constant 0 : i32
    %c0_i32_0 = arith.constant 0 : i32
    return %c0_i32, %arg0 : i32, i32
  }
}

</mosaic_0001>

<llo_original>
// kernel: tpu_custom_call.1
$region0: #{tpu_custom_call.1}
  #allocation0 [shape = 'u32[]', space=smem, size = 0x4, offset = 0x4, fixed_abs, tag = 'smem constant byte address 0x4 - core index']
  #allocation1 [shape = 'u32[144,128]{1,0:T(1,128)}', space=vmem, size = 0x12000, scoped, tag = 'internal scratch']
  #allocation2 [shape = 'f32[1,1]{1,0:T(1,128)S(6)}', space=smem, size = 0x200, scoped, tag = 'scoped memory for tpu_custom_call.1']
  %s0 = inlined_call_operand.vmem [shape: f32[4,256], index: 0, kind: input, shape index: {}]
  %s1 = inlined_call_operand.vmem [shape: f32[512,4], index: 1, kind: input, shape index: {}]
  %s2 = inlined_call_operand.vmem [shape: f32[512,1], index: 2, kind: input, shape index: {}]
  %s3 = inlined_call_operand.vmem [shape: bf16[512,512], index: 3, kind: input, shape index: {}]
  %s4 = inlined_call_operand.vmem [shape: f32[512,1], index: 4, kind: input, shape index: {}]
  %s5 = inlined_call_operand.vmem [shape: f32[512,1], index: 5, kind: input, shape index: {}]
  %s6 = inlined_call_operand.<no memory space> [shape: f32[1,1], index: 6, kind: input, shape index: {}]
  %s7 = inlined_call_operand.hbm [shape: f32[1,256], index: 7, kind: output, shape index: {}]
  %s8 = sld [smem:[#allocation0]]
  $region61: #{tpu_custom_call.1} parent=0
    _
  %s10 = ssub.s32 1, %s8
  %s11 = scalar_select 0, %s10, %s8
  %12 = sst [smem:[#allocation2]] %s6
  $region1: #{tpu_custom_call.1} parent=0
    #allocation3 [shape = 'u8[1024]{0}', space=vmem, size = 0x400, scoped, tag = 'output window, operand 0']
    #allocation4 [shape = 's32[2]{0}', space=sflag, size = 0x8, scoped, tag = 'scoped memory for tpu_custom_call.1']
    %13 = vsyncpa [#allocation4], 0
    %s14 = scalar_lea.sflag [#allocation4], 1
    %15 = vsyncpa %s14, 0
    loop: start=0, step=1, limit=4
    $region2: #{tpu_custom_call.1} parent=1 // loop_pre_header
      _
    $region3: #{tpu_custom_call.1} parent=1 // loop_header
      %s17 = sphi 0, %s21
      %p18 = scmp.ge.s32.totalorder %s17, 4
      %s27 = sphi 0, %s29
      %s30 = sphi 0, %s27
      %s31 = sphi 0, %s30
      %s47 = sphi 0, %s31
      %s51 = sphi 0, %s51
      %s53 = sphi 0, %s51
      %s54 = sphi 0, %s53
      %s68 = sphi 0, %s54
      %s72 = sphi 0, %s72
      %s74 = sphi 0, %s72
      %s75 = sphi 0, %s74
      %s89 = sphi 0, %s75
      %s93 = sphi 0, %s93
      %s95 = sphi 0, %s93
      %s96 = sphi 0, %s95
      %s110 = sphi 0, %s96
      %s114 = sphi 0, %s114
      %s116 = sphi 0, %s114
      %s117 = sphi 0, %s116
      %s131 = sphi 0, %s117
      %s135 = sphi 0, %s135
      %s137 = sphi 0, %s135
      %s138 = sphi 0, %s137
      %s152 = sphi 0, %s138
      %s156 = sphi 0, %s156
      %s158 = sphi 0, %s156
      %s159 = sphi 0, %s158
      %s173 = sphi 0, %s159
      %s179 = sphi 0, %s181
      %s182 = sphi 0, %s179
      %s183 = sphi 0, %s182
      %s199 = sphi 0, %s183
    $region4: #{tpu_custom_call.1} parent=1 // loop_header_branch
      %20 = sbr.rel (%p18) target = $region8
    $region5: #{tpu_custom_call.1} parent=1 // loop_body
      %s22 = ssub.s32 %s17, 1
      %s23 = ssub.s32 %s17, 2
      %s24 = sadd.s32 %s17, 1
      %s25 = ssub.s32 %s17, %s24
      %p26 = scmp.eq.s32.totalorder %s25, 0
      %s28 = sadd.s32 %s27, 1
      %s29 = scalar_select %p26, %s27, %s28
      %p32 = pneg %p26
      %p33 = scmp.eq.s32.totalorder %s17, 1
      %p34 = por %p32, %p33
      %p35 = scmp.ne.s32.totalorder %s27, %s30
      %p36 = scmp.eq.s32.totalorder %s17, 0
      %p37 = por %p35, %p36
      %p38 = scmp.ne.s32.totalorder %s27, %s30
      %p39 = scmp.eq.s32.totalorder %s22, 1
      %p40 = por %p38, %p39
      %p41 = scmp.ne.s32.totalorder %s30, %s31
      %p42 = scmp.eq.s32.totalorder %s22, 0
      %p43 = por %p41, %p42
      %p44 = scmp.ne.s32.totalorder %s30, %s31
      %p45 = scmp.eq.s32.totalorder %s23, 1
      %p46 = por %p44, %p45
      %p48 = scmp.ne.s32.totalorder %s31, %s47
      %p49 = scmp.eq.s32.totalorder %s23, 0
      %p50 = por %p48, %p49
      %s52 = sadd.s32 %s51, 1
      %p55 = scmp.eq.s32.totalorder %s17, 1
      %p56 = scmp.ne.s32.totalorder %s51, %s53
      %p57 = scmp.eq.s32.totalorder %s17, 0
      %p58 = por %p56, %p57
      %p59 = scmp.ne.s32.totalorder %s51, %s53
      %p60 = scmp.eq.s32.totalorder %s22, 1
      %p61 = por %p59, %p60
      %p62 = scmp.ne.s32.totalorder %s53, %s54
      %p63 = scmp.eq.s32.totalorder %s22, 0
      %p64 = por %p62, %p63
      %p65 = scmp.ne.s32.totalorder %s53, %s54
      %p66 = scmp.eq.s32.totalorder %s23, 1
      %p67 = por %p65, %p66
      %p69 = scmp.ne.s32.totalorder %s54, %s68
      %p70 = scmp.eq.s32.totalorder %s23, 0
      %p71 = por %p69, %p70
      %s73 = sadd.s32 %s72, 1
      %p76 = scmp.eq.s32.totalorder %s17, 1
      %p77 = scmp.ne.s32.totalorder %s72, %s74
      %p78 = scmp.eq.s32.totalorder %s17, 0
      %p79 = por %p77, %p78
      %p80 = scmp.ne.s32.totalorder %s72, %s74
      %p81 = scmp.eq.s32.totalorder %s22, 1
      %p82 = por %p80, %p81
      %p83 = scmp.ne.s32.totalorder %s74, %s75
      %p84 = scmp.eq.s32.totalorder %s22, 0
      %p85 = por %p83, %p84
      %p86 = scmp.ne.s32.totalorder %s74, %s75
      %p87 = scmp.eq.s32.totalorder %s23, 1
      %p88 = por %p86, %p87
      %p90 = scmp.ne.s32.totalorder %s75, %s89
      %p91 = scmp.eq.s32.totalorder %s23, 0
      %p92 = por %p90, %p91
      %s94 = sadd.s32 %s93, 1
      %p97 = scmp.eq.s32.totalorder %s17, 1
      %p98 = scmp.ne.s32.totalorder %s93, %s95
      %p99 = scmp.eq.s32.totalorder %s17, 0
      %p100 = por %p98, %p99
      %p101 = scmp.ne.s32.totalorder %s93, %s95
      %p102 = scmp.eq.s32.totalorder %s22, 1
      %p103 = por %p101, %p102
      %p104 = scmp.ne.s32.totalorder %s95, %s96
      %p105 = scmp.eq.s32.totalorder %s22, 0
      %p106 = por %p104, %p105
      %p107 = scmp.ne.s32.totalorder %s95, %s96
      %p108 = scmp.eq.s32.totalorder %s23, 1
      %p109 = por %p107, %p108
      %p111 = scmp.ne.s32.totalorder %s96, %s110
      %p112 = scmp.eq.s32.totalorder %s23, 0
      %p113 = por %p111, %p112
      %s115 = sadd.s32 %s114, 1
      %p118 = scmp.eq.s32.totalorder %s17, 1
      %p119 = scmp.ne.s32.totalorder %s114, %s116
      %p120 = scmp.eq.s32.totalorder %s17, 0
      %p121 = por %p119, %p120
      %p122 = scmp.ne.s32.totalorder %s114, %s116
      %p123 = scmp.eq.s32.totalorder %s22, 1
      %p124 = por %p122, %p123
      %p125 = scmp.ne.s32.totalorder %s116, %s117
      %p126 = scmp.eq.s32.totalorder %s22, 0
      %p127 = por %p125, %p126
      %p128 = scmp.ne.s32.totalorder %s116, %s117
      %p129 = scmp.eq.s32.totalorder %s23, 1
      %p130 = por %p128, %p129
      %p132 = scmp.ne.s32.totalorder %s117, %s131
      %p133 = scmp.eq.s32.totalorder %s23, 0
      %p134 = por %p132, %p133
      %s136 = sadd.s32 %s135, 1
      %p139 = scmp.eq.s32.totalorder %s17, 1
      %p140 = scmp.ne.s32.totalorder %s135, %s137
      %p141 = scmp.eq.s32.totalorder %s17, 0
      %p142 = por %p140, %p141
      %p143 = scmp.ne.s32.totalorder %s135, %s137
      %p144 = scmp.eq.s32.totalorder %s22, 1
      %p145 = por %p143, %p144
      %p146 = scmp.ne.s32.totalorder %s137, %s138
      %p147 = scmp.eq.s32.totalorder %s22, 0
      %p148 = por %p146, %p147
      %p149 = scmp.ne.s32.totalorder %s137, %s138
      %p150 = scmp.eq.s32.totalorder %s23, 1
      %p151 = por %p149, %p150
      %p153 = scmp.ne.s32.totalorder %s138, %s152
      %p154 = scmp.eq.s32.totalorder %s23, 0
      %p155 = por %p153, %p154
      %s157 = sadd.s32 %s156, 1
      %p160 = scmp.eq.s32.totalorder %s17, 1
      %p161 = scmp.ne.s32.totalorder %s156, %s158
      %p162 = scmp.eq.s32.totalorder %s17, 0
      %p163 = por %p161, %p162
      %p164 = scmp.ne.s32.totalorder %s156, %s158
      %p165 = scmp.eq.s32.totalorder %s22, 1
      %p166 = por %p164, %p165
      %p167 = scmp.ne.s32.totalorder %s158, %s159
      %p168 = scmp.eq.s32.totalorder %s22, 0
      %p169 = por %p167, %p168
      %p170 = scmp.ne.s32.totalorder %s158, %s159
      %p171 = scmp.eq.s32.totalorder %s23, 1
      %p172 = por %p170, %p171
      %p174 = scmp.ne.s32.totalorder %s159, %s173
      %p175 = scmp.eq.s32.totalorder %s23, 0
      %p176 = por %p174, %p175
      %s177 = ssub.s32 %s17, %s24
      %p178 = scmp.eq.s32.totalorder %s177, 0
      %s180 = sadd.s32 %s179, 1
      %s181 = scalar_select %p178, %s179, %s180
      %p184 = pneg %p178
      %p185 = scmp.eq.s32.totalorder %s17, 1
      %p186 = por %p184, %p185
      %p187 = scmp.ne.s32.totalorder %s179, %s182
      %p188 = scmp.eq.s32.totalorder %s17, 0
      %p189 = por %p187, %p188
      %p190 = scmp.ne.s32.totalorder %s179, %s182
      %p191 = scmp.eq.s32.totalorder %s22, 1
      %p192 = por %p190, %p191
      %p193 = scmp.ne.s32.totalorder %s182, %s183
      %p194 = scmp.eq.s32.totalorder %s22, 0
      %p195 = por %p193, %p194
      %p196 = scmp.ne.s32.totalorder %s182, %s183
      %p197 = scmp.eq.s32.totalorder %s23, 1
      %p198 = por %p196, %p197
      %p200 = scmp.ne.s32.totalorder %s183, %s199
      %p201 = scmp.eq.s32.totalorder %s23, 0
      %p202 = por %p200, %p201
      %p203 = scmp.le.s32.totalorder 1, %s17
      %p204 = scmp.lt.s32.totalorder %s17, 3
      %p205 = pnand %p203, %p204
      %p206 = pneg %p205
      // Predicated region
      $region9: #{tpu_custom_call.1} parent=5 // pred_check
        _
      $region10: #{tpu_custom_call.1} parent=5 // pred_check_branch
        %208 = sbr.rel (%p205) target = $region12
      $region11: #{tpu_custom_call.1} parent=5 // pred_region
        %s209 = ssub.s32 %s17, 1
        // Predicated region
        $region13: #{tpu_custom_call.1} parent=11 // pred_check
          %p210 = pneg %p64
        $region14: #{tpu_custom_call.1} parent=11 // pred_check_branch
          %212 = sbr.rel (%p210) target = $region16
        $region15: #{tpu_custom_call.1} parent=11 // pred_region
          _
        $region16: #{tpu_custom_call.1} parent=11 // pred_fallthru
          _
        // Predicated region
        $region17: #{tpu_custom_call.1} parent=11 // pred_check
          %p213 = pneg %p85
        $region18: #{tpu_custom_call.1} parent=11 // pred_check_branch
          %215 = sbr.rel (%p213) target = $region20
        $region19: #{tpu_custom_call.1} parent=11 // pred_region
          _
        $region20: #{tpu_custom_call.1} parent=11 // pred_fallthru
          _
        // Predicated region
        $region21: #{tpu_custom_call.1} parent=11 // pred_check
          %p216 = pneg %p106
        $region22: #{tpu_custom_call.1} parent=11 // pred_check_branch
          %218 = sbr.rel (%p216) target = $region24
        $region23: #{tpu_custom_call.1} parent=11 // pred_region
          _
        $region24: #{tpu_custom_call.1} parent=11 // pred_fallthru
          _
        // Predicated region
        $region25: #{tpu_custom_call.1} parent=11 // pred_check
          %p219 = pneg %p127
        $region26: #{tpu_custom_call.1} parent=11 // pred_check_branch
          %221 = sbr.rel (%p219) target = $region28
        $region27: #{tpu_custom_call.1} parent=11 // pred_region
          _
        $region28: #{tpu_custom_call.1} parent=11 // pred_fallthru
          _
        // Predicated region
        $region29: #{tpu_custom_call.1} parent=11 // pred_check
          %p222 = pneg %p148
        $region30: #{tpu_custom_call.1} parent=11 // pred_check_branch
          %224 = sbr.rel (%p222) target = $region32
        $region31: #{tpu_custom_call.1} parent=11 // pred_region
          _
        $region32: #{tpu_custom_call.1} parent=11 // pred_fallthru
          _
        // Predicated region
        $region33: #{tpu_custom_call.1} parent=11 // pred_check
          %p225 = pneg %p169
        $region34: #{tpu_custom_call.1} parent=11 // pred_check_branch
          %227 = sbr.rel (%p225) target = $region36
        $region35: #{tpu_custom_call.1} parent=11 // pred_region
          _
        $region36: #{tpu_custom_call.1} parent=11 // pred_fallthru
          _
      $region12: #{tpu_custom_call.1} parent=5 // pred_fallthru
        _
      %p228 = scmp.lt.s32.totalorder %s17, 2
      // Predicated region
      $region37: #{tpu_custom_call.1} parent=5 // pred_check
        %p229 = pneg %p228
      $region38: #{tpu_custom_call.1} parent=5 // pred_check_branch
        %231 = sbr.rel (%p229) target = $region40
      $region39: #{tpu_custom_call.1} parent=5 // pred_region
        // Predicated region
        $region41: #{tpu_custom_call.1} parent=39 // pred_check
          %p232 = pneg %p37
        $region42: #{tpu_custom_call.1} parent=39 // pred_check_branch
          %234 = sbr.rel (%p232) target = $region44
        $region43: #{tpu_custom_call.1} parent=39 // pred_region
          %p235 = scmp.lt.s32.totalorder %s17, 1
          %s236 = scalar_select %p235, %s17, 1
          %s237 = smul.addr %s236, 4
          %s238 = scalar_lea.vmem %s0, %s237
        $region44: #{tpu_custom_call.1} parent=39 // pred_fallthru
          _
      $region40: #{tpu_custom_call.1} parent=5 // pred_fallthru
        _
      %p239 = scmp.le.s32.totalorder 1, %s17
      %p240 = scmp.lt.s32.totalorder %s17, 3
      %p241 = pnand %p239, %p240
      %p242 = pneg %p241
      // Predicated region
      $region45: #{tpu_custom_call.1} parent=5 // pred_check
        _
      $region46: #{tpu_custom_call.1} parent=5 // pred_check_branch
        %244 = sbr.rel (%p241) target = $region48
      $region47: #{tpu_custom_call.1} parent=5 // pred_region
        %s245 = ssub.s32 %s17, 1
        %p246 = scmp.lt.s32.totalorder %s22, 1
        %s247 = scalar_select %p246, %s22, 1
        %s248 = smul.addr %s247, 4
        %s249 = scalar_lea.vmem %s0, %s248
        %p250 = pneg %p43
        %p251 = pneg %p40
        %p252 = pneg %p64
        %p253 = pneg %p61
        %p254 = pneg %p85
        %p255 = pneg %p82
        %p256 = pneg %p106
        %p257 = pneg %p103
        %p258 = pneg %p127
        %p259 = pneg %p124
        %p260 = pneg %p148
        %p261 = pneg %p145
        %p262 = pneg %p169
        %p263 = pneg %p166
        %p264 = pneg %p195
        %p265 = pneg %p192
        %s266 = sand.u32 %s182, 1
        %s267 = scalar_lea.sflag [#allocation4], %s266
        %s268 = sand.u32 %s182, 1
        %s269 = scalar_lea.vmem [#allocation3], %s268
        %p270 = scmp.lt.s32.totalorder %s22, 1
        %s271 = scalar_select %p270, %s22, 1
        %s272 = smul.addr %s271, 4
        %s273 = scalar_lea.vmem %s0, %s272
        %v275 = vld [vmem:[%s273] sm:$0xf]
        %v276 = vld [vmem:[%s2] sm:$0xff]
        %v277 = vld [vmem:[%s2 + $0x8] sm:$0xff]
        %v278 = vld [vmem:[%s2 + $0x10] sm:$0xff]
        %v279 = vld [vmem:[%s2 + $0x18] sm:$0xff]
        %v280 = vld [vmem:[%s2 + $0x20] sm:$0xff]
        %v281 = vld [vmem:[%s2 + $0x28] sm:$0xff]
        %v282 = vld [vmem:[%s2 + $0x30] sm:$0xff]
        %v283 = vld [vmem:[%s2 + $0x38] sm:$0xff]
        %v284 = vld [vmem:[%s2 + $0x40] sm:$0xff]
        %v285 = vld [vmem:[%s2 + $0x48] sm:$0xff]
        %v286 = vld [vmem:[%s2 + $0x50] sm:$0xff]
        %v287 = vld [vmem:[%s2 + $0x58] sm:$0xff]
        %v288 = vld [vmem:[%s2 + $0x60] sm:$0xff]
        %v289 = vld [vmem:[%s2 + $0x68] sm:$0xff]
        %v290 = vld [vmem:[%s2 + $0x70] sm:$0xff]
        %v291 = vld [vmem:[%s2 + $0x78] sm:$0xff]
        %v292 = vld [vmem:[%s2 + $0x80] sm:$0xff]
        %v293 = vld [vmem:[%s2 + $0x88] sm:$0xff]
        %v294 = vld [vmem:[%s2 + $0x90] sm:$0xff]
        %v295 = vld [vmem:[%s2 + $0x98] sm:$0xff]
        %v296 = vld [vmem:[%s2 + $0xa0] sm:$0xff]
        %v297 = vld [vmem:[%s2 + $0xa8] sm:$0xff]
        %v298 = vld [vmem:[%s2 + $0xb0] sm:$0xff]
        %v299 = vld [vmem:[%s2 + $0xb8] sm:$0xff]
        %v300 = vld [vmem:[%s2 + $0xc0] sm:$0xff]
        %v301 = vld [vmem:[%s2 + $0xc8] sm:$0xff]
        %v302 = vld [vmem:[%s2 + $0xd0] sm:$0xff]
        %v303 = vld [vmem:[%s2 + $0xd8] sm:$0xff]
        %v304 = vld [vmem:[%s2 + $0xe0] sm:$0xff]
        %v305 = vld [vmem:[%s2 + $0xe8] sm:$0xff]
        %v306 = vld [vmem:[%s2 + $0xf0] sm:$0xff]
        %v307 = vld [vmem:[%s2 + $0xf8] sm:$0xff]
        %v308 = vld [vmem:[%s2 + $0x100] sm:$0xff]
        %v309 = vld [vmem:[%s2 + $0x108] sm:$0xff]
        %v310 = vld [vmem:[%s2 + $0x110] sm:$0xff]
        %v311 = vld [vmem:[%s2 + $0x118] sm:$0xff]
        %v312 = vld [vmem:[%s2 + $0x120] sm:$0xff]
        %v313 = vld [vmem:[%s2 + $0x128] sm:$0xff]
        %v314 = vld [vmem:[%s2 + $0x130] sm:$0xff]
        %v315 = vld [vmem:[%s2 + $0x138] sm:$0xff]
        %v316 = vld [vmem:[%s2 + $0x140] sm:$0xff]
        %v317 = vld [vmem:[%s2 + $0x148] sm:$0xff]
        %v318 = vld [vmem:[%s2 + $0x150] sm:$0xff]
        %v319 = vld [vmem:[%s2 + $0x158] sm:$0xff]
        %v320 = vld [vmem:[%s2 + $0x160] sm:$0xff]
        %v321 = vld [vmem:[%s2 + $0x168] sm:$0xff]
        %v322 = vld [vmem:[%s2 + $0x170] sm:$0xff]
        %v323 = vld [vmem:[%s2 + $0x178] sm:$0xff]
        %v324 = vld [vmem:[%s2 + $0x180] sm:$0xff]
        %v325 = vld [vmem:[%s2 + $0x188] sm:$0xff]
        %v326 = vld [vmem:[%s2 + $0x190] sm:$0xff]
        %v327 = vld [vmem:[%s2 + $0x198] sm:$0xff]
        %v328 = vld [vmem:[%s2 + $0x1a0] sm:$0xff]
        %v329 = vld [vmem:[%s2 + $0x1a8] sm:$0xff]
        %v330 = vld [vmem:[%s2 + $0x1b0] sm:$0xff]
        %v331 = vld [vmem:[%s2 + $0x1b8] sm:$0xff]
        %v332 = vld [vmem:[%s2 + $0x1c0] sm:$0xff]
        %v333 = vld [vmem:[%s2 + $0x1c8] sm:$0xff]
        %v334 = vld [vmem:[%s2 + $0x1d0] sm:$0xff]
        %v335 = vld [vmem:[%s2 + $0x1d8] sm:$0xff]
        %v336 = vld [vmem:[%s2 + $0x1e0] sm:$0xff]
        %v337 = vld [vmem:[%s2 + $0x1e8] sm:$0xff]
        %v338 = vld [vmem:[%s2 + $0x1f0] sm:$0xff]
        %v339 = vld [vmem:[%s2 + $0x1f8] sm:$0xff]
        %v340 = vld [vmem:[%s1] sm:$0xff]
        %v341 = vld [vmem:[%s1 + $0x8] sm:$0xff]
        %v342 = vld [vmem:[%s1 + $0x10] sm:$0xff]
        %v343 = vld [vmem:[%s1 + $0x18] sm:$0xff]
        %v344 = vld [vmem:[%s1 + $0x20] sm:$0xff]
        %v345 = vld [vmem:[%s1 + $0x28] sm:$0xff]
        %v346 = vld [vmem:[%s1 + $0x30] sm:$0xff]
        %v347 = vld [vmem:[%s1 + $0x38] sm:$0xff]
        %v348 = vld [vmem:[%s1 + $0x40] sm:$0xff]
        %v349 = vld [vmem:[%s1 + $0x48] sm:$0xff]
        %v350 = vld [vmem:[%s1 + $0x50] sm:$0xff]
        %v351 = vld [vmem:[%s1 + $0x58] sm:$0xff]
        %v352 = vld [vmem:[%s1 + $0x60] sm:$0xff]
        %v353 = vld [vmem:[%s1 + $0x68] sm:$0xff]
        %v354 = vld [vmem:[%s1 + $0x70] sm:$0xff]
        %v355 = vld [vmem:[%s1 + $0x78] sm:$0xff]
        %v356 = vld [vmem:[%s1 + $0x80] sm:$0xff]
        %v357 = vld [vmem:[%s1 + $0x88] sm:$0xff]
        %v358 = vld [vmem:[%s1 + $0x90] sm:$0xff]
        %v359 = vld [vmem:[%s1 + $0x98] sm:$0xff]
        %v360 = vld [vmem:[%s1 + $0xa0] sm:$0xff]
        %v361 = vld [vmem:[%s1 + $0xa8] sm:$0xff]
        %v362 = vld [vmem:[%s1 + $0xb0] sm:$0xff]
        %v363 = vld [vmem:[%s1 + $0xb8] sm:$0xff]
        %v364 = vld [vmem:[%s1 + $0xc0] sm:$0xff]
        %v365 = vld [vmem:[%s1 + $0xc8] sm:$0xff]
        %v366 = vld [vmem:[%s1 + $0xd0] sm:$0xff]
        %v367 = vld [vmem:[%s1 + $0xd8] sm:$0xff]
        %v368 = vld [vmem:[%s1 + $0xe0] sm:$0xff]
        %v369 = vld [vmem:[%s1 + $0xe8] sm:$0xff]
        %v370 = vld [vmem:[%s1 + $0xf0] sm:$0xff]
        %v371 = vld [vmem:[%s1 + $0xf8] sm:$0xff]
        %v372 = vld [vmem:[%s1 + $0x100] sm:$0xff]
        %v373 = vld [vmem:[%s1 + $0x108] sm:$0xff]
        %v374 = vld [vmem:[%s1 + $0x110] sm:$0xff]
        %v375 = vld [vmem:[%s1 + $0x118] sm:$0xff]
        %v376 = vld [vmem:[%s1 + $0x120] sm:$0xff]
        %v377 = vld [vmem:[%s1 + $0x128] sm:$0xff]
        %v378 = vld [vmem:[%s1 + $0x130] sm:$0xff]
        %v379 = vld [vmem:[%s1 + $0x138] sm:$0xff]
        %v380 = vld [vmem:[%s1 + $0x140] sm:$0xff]
        %v381 = vld [vmem:[%s1 + $0x148] sm:$0xff]
        %v382 = vld [vmem:[%s1 + $0x150] sm:$0xff]
        %v383 = vld [vmem:[%s1 + $0x158] sm:$0xff]
        %v384 = vld [vmem:[%s1 + $0x160] sm:$0xff]
        %v385 = vld [vmem:[%s1 + $0x168] sm:$0xff]
        %v386 = vld [vmem:[%s1 + $0x170] sm:$0xff]
        %v387 = vld [vmem:[%s1 + $0x178] sm:$0xff]
        %v388 = vld [vmem:[%s1 + $0x180] sm:$0xff]
        %v389 = vld [vmem:[%s1 + $0x188] sm:$0xff]
        %v390 = vld [vmem:[%s1 + $0x190] sm:$0xff]
        %v391 = vld [vmem:[%s1 + $0x198] sm:$0xff]
        %v392 = vld [vmem:[%s1 + $0x1a0] sm:$0xff]
        %v393 = vld [vmem:[%s1 + $0x1a8] sm:$0xff]
        %v394 = vld [vmem:[%s1 + $0x1b0] sm:$0xff]
        %v395 = vld [vmem:[%s1 + $0x1b8] sm:$0xff]
        %v396 = vld [vmem:[%s1 + $0x1c0] sm:$0xff]
        %v397 = vld [vmem:[%s1 + $0x1c8] sm:$0xff]
        %v398 = vld [vmem:[%s1 + $0x1d0] sm:$0xff]
        %v399 = vld [vmem:[%s1 + $0x1d8] sm:$0xff]
        %v400 = vld [vmem:[%s1 + $0x1e0] sm:$0xff]
        %v401 = vld [vmem:[%s1 + $0x1e8] sm:$0xff]
        %v402 = vld [vmem:[%s1 + $0x1f0] sm:$0xff]
        %v403 = vld [vmem:[%s1 + $0x1f8] sm:$0xff]
        %405 = vset.pattern.permute.xlu0 0
        %406 = vperm.xlu0 %405, %v340
        %v407 = vpop.permute.xlu0 %406
        %410 = vset.pattern.permute.xlu0 0
        %411 = vperm.xlu0 %410, %v341
        %v412 = vpop.permute.xlu0 %411
        %415 = vset.pattern.permute.xlu0 0
        %416 = vperm.xlu0 %415, %v342
        %v417 = vpop.permute.xlu0 %416
        %420 = vset.pattern.permute.xlu0 0
        %421 = vperm.xlu0 %420, %v343
        %v422 = vpop.permute.xlu0 %421
        %425 = vset.pattern.permute.xlu0 0
        %426 = vperm.xlu0 %425, %v344
        %v427 = vpop.permute.xlu0 %426
        %430 = vset.pattern.permute.xlu0 0
        %431 = vperm.xlu0 %430, %v345
        %v432 = vpop.permute.xlu0 %431
        %435 = vset.pattern.permute.xlu0 0
        %436 = vperm.xlu0 %435, %v346
        %v437 = vpop.permute.xlu0 %436
        %440 = vset.pattern.permute.xlu0 0
        %441 = vperm.xlu0 %440, %v347
        %v442 = vpop.permute.xlu0 %441
        %445 = vset.pattern.permute.xlu0 0
        %446 = vperm.xlu0 %445, %v348
        %v447 = vpop.permute.xlu0 %446
        %450 = vset.pattern.permute.xlu0 0
        %451 = vperm.xlu0 %450, %v349
        %v452 = vpop.permute.xlu0 %451
        %455 = vset.pattern.permute.xlu0 0
        %456 = vperm.xlu0 %455, %v350
        %v457 = vpop.permute.xlu0 %456
        %460 = vset.pattern.permute.xlu0 0
        %461 = vperm.xlu0 %460, %v351
        %v462 = vpop.permute.xlu0 %461
        %465 = vset.pattern.permute.xlu0 0
        %466 = vperm.xlu0 %465, %v352
        %v467 = vpop.permute.xlu0 %466
        %470 = vset.pattern.permute.xlu0 0
        %471 = vperm.xlu0 %470, %v353
        %v472 = vpop.permute.xlu0 %471
        %475 = vset.pattern.permute.xlu0 0
        %476 = vperm.xlu0 %475, %v354
        %v477 = vpop.permute.xlu0 %476
        %480 = vset.pattern.permute.xlu0 0
        %481 = vperm.xlu0 %480, %v355
        %v482 = vpop.permute.xlu0 %481
        %485 = vset.pattern.permute.xlu0 0
        %486 = vperm.xlu0 %485, %v356
        %v487 = vpop.permute.xlu0 %486
        %490 = vset.pattern.permute.xlu0 0
        %491 = vperm.xlu0 %490, %v357
        %v492 = vpop.permute.xlu0 %491
        %495 = vset.pattern.permute.xlu0 0
        %496 = vperm.xlu0 %495, %v358
        %v497 = vpop.permute.xlu0 %496
        %500 = vset.pattern.permute.xlu0 0
        %501 = vperm.xlu0 %500, %v359
        %v502 = vpop.permute.xlu0 %501
        %505 = vset.pattern.permute.xlu0 0
        %506 = vperm.xlu0 %505, %v360
        %v507 = vpop.permute.xlu0 %506
        %510 = vset.pattern.permute.xlu0 0
        %511 = vperm.xlu0 %510, %v361
        %v512 = vpop.permute.xlu0 %511
        %515 = vset.pattern.permute.xlu0 0
        %516 = vperm.xlu0 %515, %v362
        %v517 = vpop.permute.xlu0 %516
        %520 = vset.pattern.permute.xlu0 0
        %521 = vperm.xlu0 %520, %v363
        %v522 = vpop.permute.xlu0 %521
        %525 = vset.pattern.permute.xlu0 0
        %526 = vperm.xlu0 %525, %v364
        %v527 = vpop.permute.xlu0 %526
        %530 = vset.pattern.permute.xlu0 0
        %531 = vperm.xlu0 %530, %v365
        %v532 = vpop.permute.xlu0 %531
        %535 = vset.pattern.permute.xlu0 0
        %536 = vperm.xlu0 %535, %v366
        %v537 = vpop.permute.xlu0 %536
        %540 = vset.pattern.permute.xlu0 0
        %541 = vperm.xlu0 %540, %v367
        %v542 = vpop.permute.xlu0 %541
        %545 = vset.pattern.permute.xlu0 0
        %546 = vperm.xlu0 %545, %v368
        %v547 = vpop.permute.xlu0 %546
        %550 = vset.pattern.permute.xlu0 0
        %551 = vperm.xlu0 %550, %v369
        %v552 = vpop.permute.xlu0 %551
        %555 = vset.pattern.permute.xlu0 0
        %556 = vperm.xlu0 %555, %v370
        %v557 = vpop.permute.xlu0 %556
        %560 = vset.pattern.permute.xlu0 0
        %561 = vperm.xlu0 %560, %v371
        %v562 = vpop.permute.xlu0 %561
        %565 = vset.pattern.permute.xlu0 0
        %566 = vperm.xlu0 %565, %v372
        %v567 = vpop.permute.xlu0 %566
        %570 = vset.pattern.permute.xlu0 0
        %571 = vperm.xlu0 %570, %v373
        %v572 = vpop.permute.xlu0 %571
        %575 = vset.pattern.permute.xlu0 0
        %576 = vperm.xlu0 %575, %v374
        %v577 = vpop.permute.xlu0 %576
        %580 = vset.pattern.permute.xlu0 0
        %581 = vperm.xlu0 %580, %v375
        %v582 = vpop.permute.xlu0 %581
        %585 = vset.pattern.permute.xlu0 0
        %586 = vperm.xlu0 %585, %v376
        %v587 = vpop.permute.xlu0 %586
        %590 = vset.pattern.permute.xlu0 0
        %591 = vperm.xlu0 %590, %v377
        %v592 = vpop.permute.xlu0 %591
        %595 = vset.pattern.permute.xlu0 0
        %596 = vperm.xlu0 %595, %v378
        %v597 = vpop.permute.xlu0 %596
        %600 = vset.pattern.permute.xlu0 0
        %601 = vperm.xlu0 %600, %v379
        %v602 = vpop.permute.xlu0 %601
        %605 = vset.pattern.permute.xlu0 0
        %606 = vperm.xlu0 %605, %v380
        %v607 = vpop.permute.xlu0 %606
        %610 = vset.pattern.permute.xlu0 0
        %611 = vperm.xlu0 %610, %v381
        %v612 = vpop.permute.xlu0 %611
        %615 = vset.pattern.permute.xlu0 0
        %616 = vperm.xlu0 %615, %v382
        %v617 = vpop.permute.xlu0 %616
        %620 = vset.pattern.permute.xlu0 0
        %621 = vperm.xlu0 %620, %v383
        %v622 = vpop.permute.xlu0 %621
        %625 = vset.pattern.permute.xlu0 0
        %626 = vperm.xlu0 %625, %v384
        %v627 = vpop.permute.xlu0 %626
        %630 = vset.pattern.permute.xlu0 0
        %631 = vperm.xlu0 %630, %v385
        %v632 = vpop.permute.xlu0 %631
        %635 = vset.pattern.permute.xlu0 0
        %636 = vperm.xlu0 %635, %v386
        %v637 = vpop.permute.xlu0 %636
        %640 = vset.pattern.permute.xlu0 0
        %641 = vperm.xlu0 %640, %v387
        %v642 = vpop.permute.xlu0 %641
        %645 = vset.pattern.permute.xlu0 0
        %646 = vperm.xlu0 %645, %v388
        %v647 = vpop.permute.xlu0 %646
        %650 = vset.pattern.permute.xlu0 0
        %651 = vperm.xlu0 %650, %v389
        %v652 = vpop.permute.xlu0 %651
        %655 = vset.pattern.permute.xlu0 0
        %656 = vperm.xlu0 %655, %v390
        %v657 = vpop.permute.xlu0 %656
        %660 = vset.pattern.permute.xlu0 0
        %661 = vperm.xlu0 %660, %v391
        %v662 = vpop.permute.xlu0 %661
        %665 = vset.pattern.permute.xlu0 0
        %666 = vperm.xlu0 %665, %v392
        %v667 = vpop.permute.xlu0 %666
        %670 = vset.pattern.permute.xlu0 0
        %671 = vperm.xlu0 %670, %v393
        %v672 = vpop.permute.xlu0 %671
        %675 = vset.pattern.permute.xlu0 0
        %676 = vperm.xlu0 %675, %v394
        %v677 = vpop.permute.xlu0 %676
        %680 = vset.pattern.permute.xlu0 0
        %681 = vperm.xlu0 %680, %v395
        %v682 = vpop.permute.xlu0 %681
        %685 = vset.pattern.permute.xlu0 0
        %686 = vperm.xlu0 %685, %v396
        %v687 = vpop.permute.xlu0 %686
        %690 = vset.pattern.permute.xlu0 0
        %691 = vperm.xlu0 %690, %v397
        %v692 = vpop.permute.xlu0 %691
        %695 = vset.pattern.permute.xlu0 0
        %696 = vperm.xlu0 %695, %v398
        %v697 = vpop.permute.xlu0 %696
        %700 = vset.pattern.permute.xlu0 0
        %701 = vperm.xlu0 %700, %v399
        %v702 = vpop.permute.xlu0 %701
        %705 = vset.pattern.permute.xlu0 0
        %706 = vperm.xlu0 %705, %v400
        %v707 = vpop.permute.xlu0 %706
        %710 = vset.pattern.permute.xlu0 0
        %711 = vperm.xlu0 %710, %v401
        %v712 = vpop.permute.xlu0 %711
        %715 = vset.pattern.permute.xlu0 0
        %716 = vperm.xlu0 %715, %v402
        %v717 = vpop.permute.xlu0 %716
        %720 = vset.pattern.permute.xlu0 0
        %721 = vperm.xlu0 %720, %v403
        %v722 = vpop.permute.xlu0 %721
        %v724 = vlaneseq
        %v725 = vshrl.u32 %v724, 7
        %v726 = vsub.s32 0, %v725
        %v727 = vrot.slane %v275, %v726
        %v728 = vmul.f32 %v407, %v727
        %v729 = vmul.f32 %v412, %v727
        %v730 = vmul.f32 %v417, %v727
        %v731 = vmul.f32 %v422, %v727
        %v732 = vmul.f32 %v427, %v727
        %v733 = vmul.f32 %v432, %v727
        %v734 = vmul.f32 %v437, %v727
        %v735 = vmul.f32 %v442, %v727
        %v736 = vmul.f32 %v447, %v727
        %v737 = vmul.f32 %v452, %v727
        %v738 = vmul.f32 %v457, %v727
        %v739 = vmul.f32 %v462, %v727
        %v740 = vmul.f32 %v467, %v727
        %v741 = vmul.f32 %v472, %v727
        %v742 = vmul.f32 %v477, %v727
        %v743 = vmul.f32 %v482, %v727
        %v744 = vmul.f32 %v487, %v727
        %v745 = vmul.f32 %v492, %v727
        %v746 = vmul.f32 %v497, %v727
        %v747 = vmul.f32 %v502, %v727
        %v748 = vmul.f32 %v507, %v727
        %v749 = vmul.f32 %v512, %v727
        %v750 = vmul.f32 %v517, %v727
        %v751 = vmul.f32 %v522, %v727
        %v752 = vmul.f32 %v527, %v727
        %v753 = vmul.f32 %v532, %v727
        %v754 = vmul.f32 %v537, %v727
        %v755 = vmul.f32 %v542, %v727
        %v756 = vmul.f32 %v547, %v727
        %v757 = vmul.f32 %v552, %v727
        %v758 = vmul.f32 %v557, %v727
        %v759 = vmul.f32 %v562, %v727
        %v760 = vmul.f32 %v567, %v727
        %v761 = vmul.f32 %v572, %v727
        %v762 = vmul.f32 %v577, %v727
        %v763 = vmul.f32 %v582, %v727
        %v764 = vmul.f32 %v587, %v727
        %v765 = vmul.f32 %v592, %v727
        %v766 = vmul.f32 %v597, %v727
        %v767 = vmul.f32 %v602, %v727
        %v768 = vmul.f32 %v607, %v727
        %v769 = vmul.f32 %v612, %v727
        %v770 = vmul.f32 %v617, %v727
        %v771 = vmul.f32 %v622, %v727
        %v772 = vmul.f32 %v627, %v727
        %v773 = vmul.f32 %v632, %v727
        %v774 = vmul.f32 %v637, %v727
        %v775 = vmul.f32 %v642, %v727
        %v776 = vmul.f32 %v647, %v727
        %v777 = vmul.f32 %v652, %v727
        %v778 = vmul.f32 %v657, %v727
        %v779 = vmul.f32 %v662, %v727
        %v780 = vmul.f32 %v667, %v727
        %v781 = vmul.f32 %v672, %v727
        %v782 = vmul.f32 %v677, %v727
        %v783 = vmul.f32 %v682, %v727
        %v784 = vmul.f32 %v687, %v727
        %v785 = vmul.f32 %v692, %v727
        %v786 = vmul.f32 %v697, %v727
        %v787 = vmul.f32 %v702, %v727
        %v788 = vmul.f32 %v707, %v727
        %v789 = vmul.f32 %v712, %v727
        %v790 = vmul.f32 %v717, %v727
        %v791 = vmul.f32 %v722, %v727
        %793 = vset.pattern.permute.xlu0 0
        %794 = vperm.xlu0 %793, %v276
        %v795 = vpop.permute.xlu0 %794
        %798 = vset.pattern.permute.xlu0 0
        %799 = vperm.xlu0 %798, %v277
        %v800 = vpop.permute.xlu0 %799
        %803 = vset.pattern.permute.xlu0 0
        %804 = vperm.xlu0 %803, %v278
        %v805 = vpop.permute.xlu0 %804
        %808 = vset.pattern.permute.xlu0 0
        %809 = vperm.xlu0 %808, %v279
        %v810 = vpop.permute.xlu0 %809
        %813 = vset.pattern.permute.xlu0 0
        %814 = vperm.xlu0 %813, %v280
        %v815 = vpop.permute.xlu0 %814
        %818 = vset.pattern.permute.xlu0 0
        %819 = vperm.xlu0 %818, %v281
        %v820 = vpop.permute.xlu0 %819
        %823 = vset.pattern.permute.xlu0 0
        %824 = vperm.xlu0 %823, %v282
        %v825 = vpop.permute.xlu0 %824
        %828 = vset.pattern.permute.xlu0 0
        %829 = vperm.xlu0 %828, %v283
        %v830 = vpop.permute.xlu0 %829
        %833 = vset.pattern.permute.xlu0 0
        %834 = vperm.xlu0 %833, %v284
        %v835 = vpop.permute.xlu0 %834
        %838 = vset.pattern.permute.xlu0 0
        %839 = vperm.xlu0 %838, %v285
        %v840 = vpop.permute.xlu0 %839
        %843 = vset.pattern.permute.xlu0 0
        %844 = vperm.xlu0 %843, %v286
        %v845 = vpop.permute.xlu0 %844
        %848 = vset.pattern.permute.xlu0 0
        %849 = vperm.xlu0 %848, %v287
        %v850 = vpop.permute.xlu0 %849
        %853 = vset.pattern.permute.xlu0 0
        %854 = vperm.xlu0 %853, %v288
        %v855 = vpop.permute.xlu0 %854
        %858 = vset.pattern.permute.xlu0 0
        %859 = vperm.xlu0 %858, %v289
        %v860 = vpop.permute.xlu0 %859
        %863 = vset.pattern.permute.xlu0 0
        %864 = vperm.xlu0 %863, %v290
        %v865 = vpop.permute.xlu0 %864
        %868 = vset.pattern.permute.xlu0 0
        %869 = vperm.xlu0 %868, %v291
        %v870 = vpop.permute.xlu0 %869
        %873 = vset.pattern.permute.xlu0 0
        %874 = vperm.xlu0 %873, %v292
        %v875 = vpop.permute.xlu0 %874
        %878 = vset.pattern.permute.xlu0 0
        %879 = vperm.xlu0 %878, %v293
        %v880 = vpop.permute.xlu0 %879
        %883 = vset.pattern.permute.xlu0 0
        %884 = vperm.xlu0 %883, %v294
        %v885 = vpop.permute.xlu0 %884
        %888 = vset.pattern.permute.xlu0 0
        %889 = vperm.xlu0 %888, %v295
        %v890 = vpop.permute.xlu0 %889
        %893 = vset.pattern.permute.xlu0 0
        %894 = vperm.xlu0 %893, %v296
        %v895 = vpop.permute.xlu0 %894
        %898 = vset.pattern.permute.xlu0 0
        %899 = vperm.xlu0 %898, %v297
        %v900 = vpop.permute.xlu0 %899
        %903 = vset.pattern.permute.xlu0 0
        %904 = vperm.xlu0 %903, %v298
        %v905 = vpop.permute.xlu0 %904
        %908 = vset.pattern.permute.xlu0 0
        %909 = vperm.xlu0 %908, %v299
        %v910 = vpop.permute.xlu0 %909
        %913 = vset.pattern.permute.xlu0 0
        %914 = vperm.xlu0 %913, %v300
        %v915 = vpop.permute.xlu0 %914
        %918 = vset.pattern.permute.xlu0 0
        %919 = vperm.xlu0 %918, %v301
        %v920 = vpop.permute.xlu0 %919
        %923 = vset.pattern.permute.xlu0 0
        %924 = vperm.xlu0 %923, %v302
        %v925 = vpop.permute.xlu0 %924
        %928 = vset.pattern.permute.xlu0 0
        %929 = vperm.xlu0 %928, %v303
        %v930 = vpop.permute.xlu0 %929
        %933 = vset.pattern.permute.xlu0 0
        %934 = vperm.xlu0 %933, %v304
        %v935 = vpop.permute.xlu0 %934
        %938 = vset.pattern.permute.xlu0 0
        %939 = vperm.xlu0 %938, %v305
        %v940 = vpop.permute.xlu0 %939
        %943 = vset.pattern.permute.xlu0 0
        %944 = vperm.xlu0 %943, %v306
        %v945 = vpop.permute.xlu0 %944
        %948 = vset.pattern.permute.xlu0 0
        %949 = vperm.xlu0 %948, %v307
        %v950 = vpop.permute.xlu0 %949
        %953 = vset.pattern.permute.xlu0 0
        %954 = vperm.xlu0 %953, %v308
        %v955 = vpop.permute.xlu0 %954
        %958 = vset.pattern.permute.xlu0 0
        %959 = vperm.xlu0 %958, %v309
        %v960 = vpop.permute.xlu0 %959
        %963 = vset.pattern.permute.xlu0 0
        %964 = vperm.xlu0 %963, %v310
        %v965 = vpop.permute.xlu0 %964
        %968 = vset.pattern.permute.xlu0 0
        %969 = vperm.xlu0 %968, %v311
        %v970 = vpop.permute.xlu0 %969
        %973 = vset.pattern.permute.xlu0 0
        %974 = vperm.xlu0 %973, %v312
        %v975 = vpop.permute.xlu0 %974
        %978 = vset.pattern.permute.xlu0 0
        %979 = vperm.xlu0 %978, %v313
        %v980 = vpop.permute.xlu0 %979
        %983 = vset.pattern.permute.xlu0 0
        %984 = vperm.xlu0 %983, %v314
        %v985 = vpop.permute.xlu0 %984
        %988 = vset.pattern.permute.xlu0 0
        %989 = vperm.xlu0 %988, %v315
        %v990 = vpop.permute.xlu0 %989
        %993 = vset.pattern.permute.xlu0 0
        %994 = vperm.xlu0 %993, %v316
        %v995 = vpop.permute.xlu0 %994
        %998 = vset.pattern.permute.xlu0 0
        %999 = vperm.xlu0 %998, %v317
        %v1000 = vpop.permute.xlu0 %999
        %1003 = vset.pattern.permute.xlu0 0
        %1004 = vperm.xlu0 %1003, %v318
        %v1005 = vpop.permute.xlu0 %1004
        %1008 = vset.pattern.permute.xlu0 0
        %1009 = vperm.xlu0 %1008, %v319
        %v1010 = vpop.permute.xlu0 %1009
        %1013 = vset.pattern.permute.xlu0 0
        %1014 = vperm.xlu0 %1013, %v320
        %v1015 = vpop.permute.xlu0 %1014
        %1018 = vset.pattern.permute.xlu0 0
        %1019 = vperm.xlu0 %1018, %v321
        %v1020 = vpop.permute.xlu0 %1019
        %1023 = vset.pattern.permute.xlu0 0
        %1024 = vperm.xlu0 %1023, %v322
        %v1025 = vpop.permute.xlu0 %1024
        %1028 = vset.pattern.permute.xlu0 0
        %1029 = vperm.xlu0 %1028, %v323
        %v1030 = vpop.permute.xlu0 %1029
        %1033 = vset.pattern.permute.xlu0 0
        %1034 = vperm.xlu0 %1033, %v324
        %v1035 = vpop.permute.xlu0 %1034
        %1038 = vset.pattern.permute.xlu0 0
        %1039 = vperm.xlu0 %1038, %v325
        %v1040 = vpop.permute.xlu0 %1039
        %1043 = vset.pattern.permute.xlu0 0
        %1044 = vperm.xlu0 %1043, %v326
        %v1045 = vpop.permute.xlu0 %1044
        %1048 = vset.pattern.permute.xlu0 0
        %1049 = vperm.xlu0 %1048, %v327
        %v1050 = vpop.permute.xlu0 %1049
        %1053 = vset.pattern.permute.xlu0 0
        %1054 = vperm.xlu0 %1053, %v328
        %v1055 = vpop.permute.xlu0 %1054
        %1058 = vset.pattern.permute.xlu0 0
        %1059 = vperm.xlu0 %1058, %v329
        %v1060 = vpop.permute.xlu0 %1059
        %1063 = vset.pattern.permute.xlu0 0
        %1064 = vperm.xlu0 %1063, %v330
        %v1065 = vpop.permute.xlu0 %1064
        %1068 = vset.pattern.permute.xlu0 0
        %1069 = vperm.xlu0 %1068, %v331
        %v1070 = vpop.permute.xlu0 %1069
        %1073 = vset.pattern.permute.xlu0 0
        %1074 = vperm.xlu0 %1073, %v332
        %v1075 = vpop.permute.xlu0 %1074
        %1078 = vset.pattern.permute.xlu0 0
        %1079 = vperm.xlu0 %1078, %v333
        %v1080 = vpop.permute.xlu0 %1079
        %1083 = vset.pattern.permute.xlu0 0
        %1084 = vperm.xlu0 %1083, %v334
        %v1085 = vpop.permute.xlu0 %1084
        %1088 = vset.pattern.permute.xlu0 0
        %1089 = vperm.xlu0 %1088, %v335
        %v1090 = vpop.permute.xlu0 %1089
        %1093 = vset.pattern.permute.xlu0 0
        %1094 = vperm.xlu0 %1093, %v336
        %v1095 = vpop.permute.xlu0 %1094
        %1098 = vset.pattern.permute.xlu0 0
        %1099 = vperm.xlu0 %1098, %v337
        %v1100 = vpop.permute.xlu0 %1099
        %1103 = vset.pattern.permute.xlu0 0
        %1104 = vperm.xlu0 %1103, %v338
        %v1105 = vpop.permute.xlu0 %1104
        %1108 = vset.pattern.permute.xlu0 0
        %1109 = vperm.xlu0 %1108, %v339
        %v1110 = vpop.permute.xlu0 %1109
        %v1112 = vadd.f32 %v795, %v728
        %v1113 = vadd.f32 %v800, %v729
        %v1114 = vadd.f32 %v805, %v730
        %v1115 = vadd.f32 %v810, %v731
        %v1116 = vadd.f32 %v815, %v732
        %v1117 = vadd.f32 %v820, %v733
        %v1118 = vadd.f32 %v825, %v734
        %v1119 = vadd.f32 %v830, %v735
        %v1120 = vadd.f32 %v835, %v736
        %v1121 = vadd.f32 %v840, %v737
        %v1122 = vadd.f32 %v845, %v738
        %v1123 = vadd.f32 %v850, %v739
        %v1124 = vadd.f32 %v855, %v740
        %v1125 = vadd.f32 %v860, %v741
        %v1126 = vadd.f32 %v865, %v742
        %v1127 = vadd.f32 %v870, %v743
        %v1128 = vadd.f32 %v875, %v744
        %v1129 = vadd.f32 %v880, %v745
        %v1130 = vadd.f32 %v885, %v746
        %v1131 = vadd.f32 %v890, %v747
        %v1132 = vadd.f32 %v895, %v748
        %v1133 = vadd.f32 %v900, %v749
        %v1134 = vadd.f32 %v905, %v750
        %v1135 = vadd.f32 %v910, %v751
        %v1136 = vadd.f32 %v915, %v752
        %v1137 = vadd.f32 %v920, %v753
        %v1138 = vadd.f32 %v925, %v754
        %v1139 = vadd.f32 %v930, %v755
        %v1140 = vadd.f32 %v935, %v756
        %v1141 = vadd.f32 %v940, %v757
        %v1142 = vadd.f32 %v945, %v758
        %v1143 = vadd.f32 %v950, %v759
        %v1144 = vadd.f32 %v955, %v760
        %v1145 = vadd.f32 %v960, %v761
        %v1146 = vadd.f32 %v965, %v762
        %v1147 = vadd.f32 %v970, %v763
        %v1148 = vadd.f32 %v975, %v764
        %v1149 = vadd.f32 %v980, %v765
        %v1150 = vadd.f32 %v985, %v766
        %v1151 = vadd.f32 %v990, %v767
        %v1152 = vadd.f32 %v995, %v768
        %v1153 = vadd.f32 %v1000, %v769
        %v1154 = vadd.f32 %v1005, %v770
        %v1155 = vadd.f32 %v1010, %v771
        %v1156 = vadd.f32 %v1015, %v772
        %v1157 = vadd.f32 %v1020, %v773
        %v1158 = vadd.f32 %v1025, %v774
        %v1159 = vadd.f32 %v1030, %v775
        %v1160 = vadd.f32 %v1035, %v776
        %v1161 = vadd.f32 %v1040, %v777
        %v1162 = vadd.f32 %v1045, %v778
        %v1163 = vadd.f32 %v1050, %v779
        %v1164 = vadd.f32 %v1055, %v780
        %v1165 = vadd.f32 %v1060, %v781
        %v1166 = vadd.f32 %v1065, %v782
        %v1167 = vadd.f32 %v1070, %v783
        %v1168 = vadd.f32 %v1075, %v784
        %v1169 = vadd.f32 %v1080, %v785
        %v1170 = vadd.f32 %v1085, %v786
        %v1171 = vadd.f32 %v1090, %v787
        %v1172 = vadd.f32 %v1095, %v788
        %v1173 = vadd.f32 %v1100, %v789
        %v1174 = vadd.f32 %v1105, %v790
        %v1175 = vadd.f32 %v1110, %v791
        %1176 = vset.pattern.permute.xlu0 1
        %1177 = vperm.xlu0 %1176, %v340
        %v1178 = vpop.permute.xlu0 %1177
        %1180 = vset.pattern.permute.xlu0 1
        %1181 = vperm.xlu0 %1180, %v341
        %v1182 = vpop.permute.xlu0 %1181
        %1184 = vset.pattern.permute.xlu0 1
        %1185 = vperm.xlu0 %1184, %v342
        %v1186 = vpop.permute.xlu0 %1185
        %1188 = vset.pattern.permute.xlu0 1
        %1189 = vperm.xlu0 %1188, %v343
        %v1190 = vpop.permute.xlu0 %1189
        %1192 = vset.pattern.permute.xlu0 1
        %1193 = vperm.xlu0 %1192, %v344
        %v1194 = vpop.permute.xlu0 %1193
        %1196 = vset.pattern.permute.xlu0 1
        %1197 = vperm.xlu0 %1196, %v345
        %v1198 = vpop.permute.xlu0 %1197
        %1200 = vset.pattern.permute.xlu0 1
        %1201 = vperm.xlu0 %1200, %v346
        %v1202 = vpop.permute.xlu0 %1201
        %1204 = vset.pattern.permute.xlu0 1
        %1205 = vperm.xlu0 %1204, %v347
        %v1206 = vpop.permute.xlu0 %1205
        %1208 = vset.pattern.permute.xlu0 1
        %1209 = vperm.xlu0 %1208, %v348
        %v1210 = vpop.permute.xlu0 %1209
        %1212 = vset.pattern.permute.xlu0 1
        %1213 = vperm.xlu0 %1212, %v349
        %v1214 = vpop.permute.xlu0 %1213
        %1216 = vset.pattern.permute.xlu0 1
        %1217 = vperm.xlu0 %1216, %v350
        %v1218 = vpop.permute.xlu0 %1217
        %1220 = vset.pattern.permute.xlu0 1
        %1221 = vperm.xlu0 %1220, %v351
        %v1222 = vpop.permute.xlu0 %1221
        %1224 = vset.pattern.permute.xlu0 1
        %1225 = vperm.xlu0 %1224, %v352
        %v1226 = vpop.permute.xlu0 %1225
        %1228 = vset.pattern.permute.xlu0 1
        %1229 = vperm.xlu0 %1228, %v353
        %v1230 = vpop.permute.xlu0 %1229
        %1232 = vset.pattern.permute.xlu0 1
        %1233 = vperm.xlu0 %1232, %v354
        %v1234 = vpop.permute.xlu0 %1233
        %1236 = vset.pattern.permute.xlu0 1
        %1237 = vperm.xlu0 %1236, %v355
        %v1238 = vpop.permute.xlu0 %1237
        %1240 = vset.pattern.permute.xlu0 1
        %1241 = vperm.xlu0 %1240, %v356
        %v1242 = vpop.permute.xlu0 %1241
        %1244 = vset.pattern.permute.xlu0 1
        %1245 = vperm.xlu0 %1244, %v357
        %v1246 = vpop.permute.xlu0 %1245
        %1248 = vset.pattern.permute.xlu0 1
        %1249 = vperm.xlu0 %1248, %v358
        %v1250 = vpop.permute.xlu0 %1249
        %1252 = vset.pattern.permute.xlu0 1
        %1253 = vperm.xlu0 %1252, %v359
        %v1254 = vpop.permute.xlu0 %1253
        %1256 = vset.pattern.permute.xlu0 1
        %1257 = vperm.xlu0 %1256, %v360
        %v1258 = vpop.permute.xlu0 %1257
        %1260 = vset.pattern.permute.xlu0 1
        %1261 = vperm.xlu0 %1260, %v361
        %v1262 = vpop.permute.xlu0 %1261
        %1264 = vset.pattern.permute.xlu0 1
        %1265 = vperm.xlu0 %1264, %v362
        %v1266 = vpop.permute.xlu0 %1265
        %1268 = vset.pattern.permute.xlu0 1
        %1269 = vperm.xlu0 %1268, %v363
        %v1270 = vpop.permute.xlu0 %1269
        %1272 = vset.pattern.permute.xlu0 1
        %1273 = vperm.xlu0 %1272, %v364
        %v1274 = vpop.permute.xlu0 %1273
        %1276 = vset.pattern.permute.xlu0 1
        %1277 = vperm.xlu0 %1276, %v365
        %v1278 = vpop.permute.xlu0 %1277
        %1280 = vset.pattern.permute.xlu0 1
        %1281 = vperm.xlu0 %1280, %v366
        %v1282 = vpop.permute.xlu0 %1281
        %1284 = vset.pattern.permute.xlu0 1
        %1285 = vperm.xlu0 %1284, %v367
        %v1286 = vpop.permute.xlu0 %1285
        %1288 = vset.pattern.permute.xlu0 1
        %1289 = vperm.xlu0 %1288, %v368
        %v1290 = vpop.permute.xlu0 %1289
        %1292 = vset.pattern.permute.xlu0 1
        %1293 = vperm.xlu0 %1292, %v369
        %v1294 = vpop.permute.xlu0 %1293
        %1296 = vset.pattern.permute.xlu0 1
        %1297 = vperm.xlu0 %1296, %v370
        %v1298 = vpop.permute.xlu0 %1297
        %1300 = vset.pattern.permute.xlu0 1
        %1301 = vperm.xlu0 %1300, %v371
        %v1302 = vpop.permute.xlu0 %1301
        %1304 = vset.pattern.permute.xlu0 1
        %1305 = vperm.xlu0 %1304, %v372
        %v1306 = vpop.permute.xlu0 %1305
        %1308 = vset.pattern.permute.xlu0 1
        %1309 = vperm.xlu0 %1308, %v373
        %v1310 = vpop.permute.xlu0 %1309
        %1312 = vset.pattern.permute.xlu0 1
        %1313 = vperm.xlu0 %1312, %v374
        %v1314 = vpop.permute.xlu0 %1313
        %1316 = vset.pattern.permute.xlu0 1
        %1317 = vperm.xlu0 %1316, %v375
        %v1318 = vpop.permute.xlu0 %1317
        %1320 = vset.pattern.permute.xlu0 1
        %1321 = vperm.xlu0 %1320, %v376
        %v1322 = vpop.permute.xlu0 %1321
        %1324 = vset.pattern.permute.xlu0 1
        %1325 = vperm.xlu0 %1324, %v377
        %v1326 = vpop.permute.xlu0 %1325
        %1328 = vset.pattern.permute.xlu0 1
        %1329 = vperm.xlu0 %1328, %v378
        %v1330 = vpop.permute.xlu0 %1329
        %1332 = vset.pattern.permute.xlu0 1
        %1333 = vperm.xlu0 %1332, %v379
        %v1334 = vpop.permute.xlu0 %1333
        %1336 = vset.pattern.permute.xlu0 1
        %1337 = vperm.xlu0 %1336, %v380
        %v1338 = vpop.permute.xlu0 %1337
        %1340 = vset.pattern.permute.xlu0 1
        %1341 = vperm.xlu0 %1340, %v381
        %v1342 = vpop.permute.xlu0 %1341
        %1344 = vset.pattern.permute.xlu0 1
        %1345 = vperm.xlu0 %1344, %v382
        %v1346 = vpop.permute.xlu0 %1345
        %1348 = vset.pattern.permute.xlu0 1
        %1349 = vperm.xlu0 %1348, %v383
        %v1350 = vpop.permute.xlu0 %1349
        %1352 = vset.pattern.permute.xlu0 1
        %1353 = vperm.xlu0 %1352, %v384
        %v1354 = vpop.permute.xlu0 %1353
        %1356 = vset.pattern.permute.xlu0 1
        %1357 = vperm.xlu0 %1356, %v385
        %v1358 = vpop.permute.xlu0 %1357
        %1360 = vset.pattern.permute.xlu0 1
        %1361 = vperm.xlu0 %1360, %v386
        %v1362 = vpop.permute.xlu0 %1361
        %1364 = vset.pattern.permute.xlu0 1
        %1365 = vperm.xlu0 %1364, %v387
        %v1366 = vpop.permute.xlu0 %1365
        %1368 = vset.pattern.permute.xlu0 1
        %1369 = vperm.xlu0 %1368, %v388
        %v1370 = vpop.permute.xlu0 %1369
        %1372 = vset.pattern.permute.xlu0 1
        %1373 = vperm.xlu0 %1372, %v389
        %v1374 = vpop.permute.xlu0 %1373
        %1376 = vset.pattern.permute.xlu0 1
        %1377 = vperm.xlu0 %1376, %v390
        %v1378 = vpop.permute.xlu0 %1377
        %1380 = vset.pattern.permute.xlu0 1
        %1381 = vperm.xlu0 %1380, %v391
        %v1382 = vpop.permute.xlu0 %1381
        %1384 = vset.pattern.permute.xlu0 1
        %1385 = vperm.xlu0 %1384, %v392
        %v1386 = vpop.permute.xlu0 %1385
        %1388 = vset.pattern.permute.xlu0 1
        %1389 = vperm.xlu0 %1388, %v393
        %v1390 = vpop.permute.xlu0 %1389
        %1392 = vset.pattern.permute.xlu0 1
        %1393 = vperm.xlu0 %1392, %v394
        %v1394 = vpop.permute.xlu0 %1393
        %1396 = vset.pattern.permute.xlu0 1
        %1397 = vperm.xlu0 %1396, %v395
        %v1398 = vpop.permute.xlu0 %1397
        %1400 = vset.pattern.permute.xlu0 1
        %1401 = vperm.xlu0 %1400, %v396
        %v1402 = vpop.permute.xlu0 %1401
        %1404 = vset.pattern.permute.xlu0 1
        %1405 = vperm.xlu0 %1404, %v397
        %v1406 = vpop.permute.xlu0 %1405
        %1408 = vset.pattern.permute.xlu0 1
        %1409 = vperm.xlu0 %1408, %v398
        %v1410 = vpop.permute.xlu0 %1409
        %1412 = vset.pattern.permute.xlu0 1
        %1413 = vperm.xlu0 %1412, %v399
        %v1414 = vpop.permute.xlu0 %1413
        %1416 = vset.pattern.permute.xlu0 1
        %1417 = vperm.xlu0 %1416, %v400
        %v1418 = vpop.permute.xlu0 %1417
        %1420 = vset.pattern.permute.xlu0 1
        %1421 = vperm.xlu0 %1420, %v401
        %v1422 = vpop.permute.xlu0 %1421
        %1424 = vset.pattern.permute.xlu0 1
        %1425 = vperm.xlu0 %1424, %v402
        %v1426 = vpop.permute.xlu0 %1425
        %1428 = vset.pattern.permute.xlu0 1
        %1429 = vperm.xlu0 %1428, %v403
        %v1430 = vpop.permute.xlu0 %1429
        %v1432 = vlaneseq
        %v1433 = vshrl.u32 %v1432, 7
        %v1434 = vsub.s32 1, %v1433
        %v1435 = vrot.slane %v275, %v1434
        %v1436 = vmul.f32 %v1178, %v1435
        %v1437 = vmul.f32 %v1182, %v1435
        %v1438 = vmul.f32 %v1186, %v1435
        %v1439 = vmul.f32 %v1190, %v1435
        %v1440 = vmul.f32 %v1194, %v1435
        %v1441 = vmul.f32 %v1198, %v1435
        %v1442 = vmul.f32 %v1202, %v1435
        %v1443 = vmul.f32 %v1206, %v1435
        %v1444 = vmul.f32 %v1210, %v1435
        %v1445 = vmul.f32 %v1214, %v1435
        %v1446 = vmul.f32 %v1218, %v1435
        %v1447 = vmul.f32 %v1222, %v1435
        %v1448 = vmul.f32 %v1226, %v1435
        %v1449 = vmul.f32 %v1230, %v1435
        %v1450 = vmul.f32 %v1234, %v1435
        %v1451 = vmul.f32 %v1238, %v1435
        %v1452 = vmul.f32 %v1242, %v1435
        %v1453 = vmul.f32 %v1246, %v1435
        %v1454 = vmul.f32 %v1250, %v1435
        %v1455 = vmul.f32 %v1254, %v1435
        %v1456 = vmul.f32 %v1258, %v1435
        %v1457 = vmul.f32 %v1262, %v1435
        %v1458 = vmul.f32 %v1266, %v1435
        %v1459 = vmul.f32 %v1270, %v1435
        %v1460 = vmul.f32 %v1274, %v1435
        %v1461 = vmul.f32 %v1278, %v1435
        %v1462 = vmul.f32 %v1282, %v1435
        %v1463 = vmul.f32 %v1286, %v1435
        %v1464 = vmul.f32 %v1290, %v1435
        %v1465 = vmul.f32 %v1294, %v1435
        %v1466 = vmul.f32 %v1298, %v1435
        %v1467 = vmul.f32 %v1302, %v1435
        %v1468 = vmul.f32 %v1306, %v1435
        %v1469 = vmul.f32 %v1310, %v1435
        %v1470 = vmul.f32 %v1314, %v1435
        %v1471 = vmul.f32 %v1318, %v1435
        %v1472 = vmul.f32 %v1322, %v1435
        %v1473 = vmul.f32 %v1326, %v1435
        %v1474 = vmul.f32 %v1330, %v1435
        %v1475 = vmul.f32 %v1334, %v1435
        %v1476 = vmul.f32 %v1338, %v1435
        %v1477 = vmul.f32 %v1342, %v1435
        %v1478 = vmul.f32 %v1346, %v1435
        %v1479 = vmul.f32 %v1350, %v1435
        %v1480 = vmul.f32 %v1354, %v1435
        %v1481 = vmul.f32 %v1358, %v1435
        %v1482 = vmul.f32 %v1362, %v1435
        %v1483 = vmul.f32 %v1366, %v1435
        %v1484 = vmul.f32 %v1370, %v1435
        %v1485 = vmul.f32 %v1374, %v1435
        %v1486 = vmul.f32 %v1378, %v1435
        %v1487 = vmul.f32 %v1382, %v1435
        %v1488 = vmul.f32 %v1386, %v1435
        %v1489 = vmul.f32 %v1390, %v1435
        %v1490 = vmul.f32 %v1394, %v1435
        %v1491 = vmul.f32 %v1398, %v1435
        %v1492 = vmul.f32 %v1402, %v1435
        %v1493 = vmul.f32 %v1406, %v1435
        %v1494 = vmul.f32 %v1410, %v1435
        %v1495 = vmul.f32 %v1414, %v1435
        %v1496 = vmul.f32 %v1418, %v1435
        %v1497 = vmul.f32 %v1422, %v1435
        %v1498 = vmul.f32 %v1426, %v1435
        %v1499 = vmul.f32 %v1430, %v1435
        %v1500 = vadd.f32 %v1112, %v1436
        %v1501 = vadd.f32 %v1113, %v1437
        %v1502 = vadd.f32 %v1114, %v1438
        %v1503 = vadd.f32 %v1115, %v1439
        %v1504 = vadd.f32 %v1116, %v1440
        %v1505 = vadd.f32 %v1117, %v1441
        %v1506 = vadd.f32 %v1118, %v1442
        %v1507 = vadd.f32 %v1119, %v1443
        %v1508 = vadd.f32 %v1120, %v1444
        %v1509 = vadd.f32 %v1121, %v1445
        %v1510 = vadd.f32 %v1122, %v1446
        %v1511 = vadd.f32 %v1123, %v1447
        %v1512 = vadd.f32 %v1124, %v1448
        %v1513 = vadd.f32 %v1125, %v1449
        %v1514 = vadd.f32 %v1126, %v1450
        %v1515 = vadd.f32 %v1127, %v1451
        %v1516 = vadd.f32 %v1128, %v1452
        %v1517 = vadd.f32 %v1129, %v1453
        %v1518 = vadd.f32 %v1130, %v1454
        %v1519 = vadd.f32 %v1131, %v1455
        %v1520 = vadd.f32 %v1132, %v1456
        %v1521 = vadd.f32 %v1133, %v1457
        %v1522 = vadd.f32 %v1134, %v1458
        %v1523 = vadd.f32 %v1135, %v1459
        %v1524 = vadd.f32 %v1136, %v1460
        %v1525 = vadd.f32 %v1137, %v1461
        %v1526 = vadd.f32 %v1138, %v1462
        %v1527 = vadd.f32 %v1139, %v1463
        %v1528 = vadd.f32 %v1140, %v1464
        %v1529 = vadd.f32 %v1141, %v1465
        %v1530 = vadd.f32 %v1142, %v1466
        %v1531 = vadd.f32 %v1143, %v1467
        %v1532 = vadd.f32 %v1144, %v1468
        %v1533 = vadd.f32 %v1145, %v1469
        %v1534 = vadd.f32 %v1146, %v1470
        %v1535 = vadd.f32 %v1147, %v1471
        %v1536 = vadd.f32 %v1148, %v1472
        %v1537 = vadd.f32 %v1149, %v1473
        %v1538 = vadd.f32 %v1150, %v1474
        %v1539 = vadd.f32 %v1151, %v1475
        %v1540 = vadd.f32 %v1152, %v1476
        %v1541 = vadd.f32 %v1153, %v1477
        %v1542 = vadd.f32 %v1154, %v1478
        %v1543 = vadd.f32 %v1155, %v1479
        %v1544 = vadd.f32 %v1156, %v1480
        %v1545 = vadd.f32 %v1157, %v1481
        %v1546 = vadd.f32 %v1158, %v1482
        %v1547 = vadd.f32 %v1159, %v1483
        %v1548 = vadd.f32 %v1160, %v1484
        %v1549 = vadd.f32 %v1161, %v1485
        %v1550 = vadd.f32 %v1162, %v1486
        %v1551 = vadd.f32 %v1163, %v1487
        %v1552 = vadd.f32 %v1164, %v1488
        %v1553 = vadd.f32 %v1165, %v1489
        %v1554 = vadd.f32 %v1166, %v1490
        %v1555 = vadd.f32 %v1167, %v1491
        %v1556 = vadd.f32 %v1168, %v1492
        %v1557 = vadd.f32 %v1169, %v1493
        %v1558 = vadd.f32 %v1170, %v1494
        %v1559 = vadd.f32 %v1171, %v1495
        %v1560 = vadd.f32 %v1172, %v1496
        %v1561 = vadd.f32 %v1173, %v1497
        %v1562 = vadd.f32 %v1174, %v1498
        %v1563 = vadd.f32 %v1175, %v1499
        %1564 = vset.pattern.permute.xlu0 2
        %1565 = vperm.xlu0 %1564, %v340
        %v1566 = vpop.permute.xlu0 %1565
        %1568 = vset.pattern.permute.xlu0 2
        %1569 = vperm.xlu0 %1568, %v341
        %v1570 = vpop.permute.xlu0 %1569
        %1572 = vset.pattern.permute.xlu0 2
        %1573 = vperm.xlu0 %1572, %v342
        %v1574 = vpop.permute.xlu0 %1573
        %1576 = vset.pattern.permute.xlu0 2
        %1577 = vperm.xlu0 %1576, %v343
        %v1578 = vpop.permute.xlu0 %1577
        %1580 = vset.pattern.permute.xlu0 2
        %1581 = vperm.xlu0 %1580, %v344
        %v1582 = vpop.permute.xlu0 %1581
        %1584 = vset.pattern.permute.xlu0 2
        %1585 = vperm.xlu0 %1584, %v345
        %v1586 = vpop.permute.xlu0 %1585
        %1588 = vset.pattern.permute.xlu0 2
        %1589 = vperm.xlu0 %1588, %v346
        %v1590 = vpop.permute.xlu0 %1589
        %1592 = vset.pattern.permute.xlu0 2
        %1593 = vperm.xlu0 %1592, %v347
        %v1594 = vpop.permute.xlu0 %1593
        %1596 = vset.pattern.permute.xlu0 2
        %1597 = vperm.xlu0 %1596, %v348
        %v1598 = vpop.permute.xlu0 %1597
        %1600 = vset.pattern.permute.xlu0 2
        %1601 = vperm.xlu0 %1600, %v349
        %v1602 = vpop.permute.xlu0 %1601
        %1604 = vset.pattern.permute.xlu0 2
        %1605 = vperm.xlu0 %1604, %v350
        %v1606 = vpop.permute.xlu0 %1605
        %1608 = vset.pattern.permute.xlu0 2
        %1609 = vperm.xlu0 %1608, %v351
        %v1610 = vpop.permute.xlu0 %1609
        %1612 = vset.pattern.permute.xlu0 2
        %1613 = vperm.xlu0 %1612, %v352
        %v1614 = vpop.permute.xlu0 %1613
        %1616 = vset.pattern.permute.xlu0 2
        %1617 = vperm.xlu0 %1616, %v353
        %v1618 = vpop.permute.xlu0 %1617
        %1620 = vset.pattern.permute.xlu0 2
        %1621 = vperm.xlu0 %1620, %v354
        %v1622 = vpop.permute.xlu0 %1621
        %1624 = vset.pattern.permute.xlu0 2
        %1625 = vperm.xlu0 %1624, %v355
        %v1626 = vpop.permute.xlu0 %1625
        %1628 = vset.pattern.permute.xlu0 2
        %1629 = vperm.xlu0 %1628, %v356
        %v1630 = vpop.permute.xlu0 %1629
        %1632 = vset.pattern.permute.xlu0 2
        %1633 = vperm.xlu0 %1632, %v357
        %v1634 = vpop.permute.xlu0 %1633
        %1636 = vset.pattern.permute.xlu0 2
        %1637 = vperm.xlu0 %1636, %v358
        %v1638 = vpop.permute.xlu0 %1637
        %1640 = vset.pattern.permute.xlu0 2
        %1641 = vperm.xlu0 %1640, %v359
        %v1642 = vpop.permute.xlu0 %1641
        %1644 = vset.pattern.permute.xlu0 2
        %1645 = vperm.xlu0 %1644, %v360
        %v1646 = vpop.permute.xlu0 %1645
        %1648 = vset.pattern.permute.xlu0 2
        %1649 = vperm.xlu0 %1648, %v361
        %v1650 = vpop.permute.xlu0 %1649
        %1652 = vset.pattern.permute.xlu0 2
        %1653 = vperm.xlu0 %1652, %v362
        %v1654 = vpop.permute.xlu0 %1653
        %1656 = vset.pattern.permute.xlu0 2
        %1657 = vperm.xlu0 %1656, %v363
        %v1658 = vpop.permute.xlu0 %1657
        %1660 = vset.pattern.permute.xlu0 2
        %1661 = vperm.xlu0 %1660, %v364
        %v1662 = vpop.permute.xlu0 %1661
        %1664 = vset.pattern.permute.xlu0 2
        %1665 = vperm.xlu0 %1664, %v365
        %v1666 = vpop.permute.xlu0 %1665
        %1668 = vset.pattern.permute.xlu0 2
        %1669 = vperm.xlu0 %1668, %v366
        %v1670 = vpop.permute.xlu0 %1669
        %1672 = vset.pattern.permute.xlu0 2
        %1673 = vperm.xlu0 %1672, %v367
        %v1674 = vpop.permute.xlu0 %1673
        %1676 = vset.pattern.permute.xlu0 2
        %1677 = vperm.xlu0 %1676, %v368
        %v1678 = vpop.permute.xlu0 %1677
        %1680 = vset.pattern.permute.xlu0 2
        %1681 = vperm.xlu0 %1680, %v369
        %v1682 = vpop.permute.xlu0 %1681
        %1684 = vset.pattern.permute.xlu0 2
        %1685 = vperm.xlu0 %1684, %v370
        %v1686 = vpop.permute.xlu0 %1685
        %1688 = vset.pattern.permute.xlu0 2
        %1689 = vperm.xlu0 %1688, %v371
        %v1690 = vpop.permute.xlu0 %1689
        %1692 = vset.pattern.permute.xlu0 2
        %1693 = vperm.xlu0 %1692, %v372
        %v1694 = vpop.permute.xlu0 %1693
        %1696 = vset.pattern.permute.xlu0 2
        %1697 = vperm.xlu0 %1696, %v373
        %v1698 = vpop.permute.xlu0 %1697
        %1700 = vset.pattern.permute.xlu0 2
        %1701 = vperm.xlu0 %1700, %v374
        %v1702 = vpop.permute.xlu0 %1701
        %1704 = vset.pattern.permute.xlu0 2
        %1705 = vperm.xlu0 %1704, %v375
        %v1706 = vpop.permute.xlu0 %1705
        %1708 = vset.pattern.permute.xlu0 2
        %1709 = vperm.xlu0 %1708, %v376
        %v1710 = vpop.permute.xlu0 %1709
        %1712 = vset.pattern.permute.xlu0 2
        %1713 = vperm.xlu0 %1712, %v377
        %v1714 = vpop.permute.xlu0 %1713
        %1716 = vset.pattern.permute.xlu0 2
        %1717 = vperm.xlu0 %1716, %v378
        %v1718 = vpop.permute.xlu0 %1717
        %1720 = vset.pattern.permute.xlu0 2
        %1721 = vperm.xlu0 %1720, %v379
        %v1722 = vpop.permute.xlu0 %1721
        %1724 = vset.pattern.permute.xlu0 2
        %1725 = vperm.xlu0 %1724, %v380
        %v1726 = vpop.permute.xlu0 %1725
        %1728 = vset.pattern.permute.xlu0 2
        %1729 = vperm.xlu0 %1728, %v381
        %v1730 = vpop.permute.xlu0 %1729
        %1732 = vset.pattern.permute.xlu0 2
        %1733 = vperm.xlu0 %1732, %v382
        %v1734 = vpop.permute.xlu0 %1733
        %1736 = vset.pattern.permute.xlu0 2
        %1737 = vperm.xlu0 %1736, %v383
        %v1738 = vpop.permute.xlu0 %1737
        %1740 = vset.pattern.permute.xlu0 2
        %1741 = vperm.xlu0 %1740, %v384
        %v1742 = vpop.permute.xlu0 %1741
        %1744 = vset.pattern.permute.xlu0 2
        %1745 = vperm.xlu0 %1744, %v385
        %v1746 = vpop.permute.xlu0 %1745
        %1748 = vset.pattern.permute.xlu0 2
        %1749 = vperm.xlu0 %1748, %v386
        %v1750 = vpop.permute.xlu0 %1749
        %1752 = vset.pattern.permute.xlu0 2
        %1753 = vperm.xlu0 %1752, %v387
        %v1754 = vpop.permute.xlu0 %1753
        %1756 = vset.pattern.permute.xlu0 2
        %1757 = vperm.xlu0 %1756, %v388
        %v1758 = vpop.permute.xlu0 %1757
        %1760 = vset.pattern.permute.xlu0 2
        %1761 = vperm.xlu0 %1760, %v389
        %v1762 = vpop.permute.xlu0 %1761
        %1764 = vset.pattern.permute.xlu0 2
        %1765 = vperm.xlu0 %1764, %v390
        %v1766 = vpop.permute.xlu0 %1765
        %1768 = vset.pattern.permute.xlu0 2
        %1769 = vperm.xlu0 %1768, %v391
        %v1770 = vpop.permute.xlu0 %1769
        %1772 = vset.pattern.permute.xlu0 2
        %1773 = vperm.xlu0 %1772, %v392
        %v1774 = vpop.permute.xlu0 %1773
        %1776 = vset.pattern.permute.xlu0 2
        %1777 = vperm.xlu0 %1776, %v393
        %v1778 = vpop.permute.xlu0 %1777
        %1780 = vset.pattern.permute.xlu0 2
        %1781 = vperm.xlu0 %1780, %v394
        %v1782 = vpop.permute.xlu0 %1781
        %1784 = vset.pattern.permute.xlu0 2
        %1785 = vperm.xlu0 %1784, %v395
        %v1786 = vpop.permute.xlu0 %1785
        %1788 = vset.pattern.permute.xlu0 2
        %1789 = vperm.xlu0 %1788, %v396
        %v1790 = vpop.permute.xlu0 %1789
        %1792 = vset.pattern.permute.xlu0 2
        %1793 = vperm.xlu0 %1792, %v397
        %v1794 = vpop.permute.xlu0 %1793
        %1796 = vset.pattern.permute.xlu0 2
        %1797 = vperm.xlu0 %1796, %v398
        %v1798 = vpop.permute.xlu0 %1797
        %1800 = vset.pattern.permute.xlu0 2
        %1801 = vperm.xlu0 %1800, %v399
        %v1802 = vpop.permute.xlu0 %1801
        %1804 = vset.pattern.permute.xlu0 2
        %1805 = vperm.xlu0 %1804, %v400
        %v1806 = vpop.permute.xlu0 %1805
        %1808 = vset.pattern.permute.xlu0 2
        %1809 = vperm.xlu0 %1808, %v401
        %v1810 = vpop.permute.xlu0 %1809
        %1812 = vset.pattern.permute.xlu0 2
        %1813 = vperm.xlu0 %1812, %v402
        %v1814 = vpop.permute.xlu0 %1813
        %1816 = vset.pattern.permute.xlu0 2
        %1817 = vperm.xlu0 %1816, %v403
        %v1818 = vpop.permute.xlu0 %1817
        %v1820 = vlaneseq
        %v1821 = vshrl.u32 %v1820, 7
        %v1822 = vsub.s32 2, %v1821
        %v1823 = vrot.slane %v275, %v1822
        %v1824 = vmul.f32 %v1566, %v1823
        %v1825 = vmul.f32 %v1570, %v1823
        %v1826 = vmul.f32 %v1574, %v1823
        %v1827 = vmul.f32 %v1578, %v1823
        %v1828 = vmul.f32 %v1582, %v1823
        %v1829 = vmul.f32 %v1586, %v1823
        %v1830 = vmul.f32 %v1590, %v1823
        %v1831 = vmul.f32 %v1594, %v1823
        %v1832 = vmul.f32 %v1598, %v1823
        %v1833 = vmul.f32 %v1602, %v1823
        %v1834 = vmul.f32 %v1606, %v1823
        %v1835 = vmul.f32 %v1610, %v1823
        %v1836 = vmul.f32 %v1614, %v1823
        %v1837 = vmul.f32 %v1618, %v1823
        %v1838 = vmul.f32 %v1622, %v1823
        %v1839 = vmul.f32 %v1626, %v1823
        %v1840 = vmul.f32 %v1630, %v1823
        %v1841 = vmul.f32 %v1634, %v1823
        %v1842 = vmul.f32 %v1638, %v1823
        %v1843 = vmul.f32 %v1642, %v1823
        %v1844 = vmul.f32 %v1646, %v1823
        %v1845 = vmul.f32 %v1650, %v1823
        %v1846 = vmul.f32 %v1654, %v1823
        %v1847 = vmul.f32 %v1658, %v1823
        %v1848 = vmul.f32 %v1662, %v1823
        %v1849 = vmul.f32 %v1666, %v1823
        %v1850 = vmul.f32 %v1670, %v1823
        %v1851 = vmul.f32 %v1674, %v1823
        %v1852 = vmul.f32 %v1678, %v1823
        %v1853 = vmul.f32 %v1682, %v1823
        %v1854 = vmul.f32 %v1686, %v1823
        %v1855 = vmul.f32 %v1690, %v1823
        %v1856 = vmul.f32 %v1694, %v1823
        %v1857 = vmul.f32 %v1698, %v1823
        %v1858 = vmul.f32 %v1702, %v1823
        %v1859 = vmul.f32 %v1706, %v1823
        %v1860 = vmul.f32 %v1710, %v1823
        %v1861 = vmul.f32 %v1714, %v1823
        %v1862 = vmul.f32 %v1718, %v1823
        %v1863 = vmul.f32 %v1722, %v1823
        %v1864 = vmul.f32 %v1726, %v1823
        %v1865 = vmul.f32 %v1730, %v1823
        %v1866 = vmul.f32 %v1734, %v1823
        %v1867 = vmul.f32 %v1738, %v1823
        %v1868 = vmul.f32 %v1742, %v1823
        %v1869 = vmul.f32 %v1746, %v1823
        %v1870 = vmul.f32 %v1750, %v1823
        %v1871 = vmul.f32 %v1754, %v1823
        %v1872 = vmul.f32 %v1758, %v1823
        %v1873 = vmul.f32 %v1762, %v1823
        %v1874 = vmul.f32 %v1766, %v1823
        %v1875 = vmul.f32 %v1770, %v1823
        %v1876 = vmul.f32 %v1774, %v1823
        %v1877 = vmul.f32 %v1778, %v1823
        %v1878 = vmul.f32 %v1782, %v1823
        %v1879 = vmul.f32 %v1786, %v1823
        %v1880 = vmul.f32 %v1790, %v1823
        %v1881 = vmul.f32 %v1794, %v1823
        %v1882 = vmul.f32 %v1798, %v1823
        %v1883 = vmul.f32 %v1802, %v1823
        %v1884 = vmul.f32 %v1806, %v1823
        %v1885 = vmul.f32 %v1810, %v1823
        %v1886 = vmul.f32 %v1814, %v1823
        %v1887 = vmul.f32 %v1818, %v1823
        %v1888 = vadd.f32 %v1500, %v1824
        %v1889 = vadd.f32 %v1501, %v1825
        %v1890 = vadd.f32 %v1502, %v1826
        %v1891 = vadd.f32 %v1503, %v1827
        %v1892 = vadd.f32 %v1504, %v1828
        %v1893 = vadd.f32 %v1505, %v1829
        %v1894 = vadd.f32 %v1506, %v1830
        %v1895 = vadd.f32 %v1507, %v1831
        %v1896 = vadd.f32 %v1508, %v1832
        %v1897 = vadd.f32 %v1509, %v1833
        %v1898 = vadd.f32 %v1510, %v1834
        %v1899 = vadd.f32 %v1511, %v1835
        %v1900 = vadd.f32 %v1512, %v1836
        %v1901 = vadd.f32 %v1513, %v1837
        %v1902 = vadd.f32 %v1514, %v1838
        %v1903 = vadd.f32 %v1515, %v1839
        %v1904 = vadd.f32 %v1516, %v1840
        %v1905 = vadd.f32 %v1517, %v1841
        %v1906 = vadd.f32 %v1518, %v1842
        %v1907 = vadd.f32 %v1519, %v1843
        %v1908 = vadd.f32 %v1520, %v1844
        %v1909 = vadd.f32 %v1521, %v1845
        %v1910 = vadd.f32 %v1522, %v1846
        %v1911 = vadd.f32 %v1523, %v1847
        %v1912 = vadd.f32 %v1524, %v1848
        %v1913 = vadd.f32 %v1525, %v1849
        %v1914 = vadd.f32 %v1526, %v1850
        %v1915 = vadd.f32 %v1527, %v1851
        %v1916 = vadd.f32 %v1528, %v1852
        %v1917 = vadd.f32 %v1529, %v1853
        %v1918 = vadd.f32 %v1530, %v1854
        %v1919 = vadd.f32 %v1531, %v1855
        %v1920 = vadd.f32 %v1532, %v1856
        %v1921 = vadd.f32 %v1533, %v1857
        %v1922 = vadd.f32 %v1534, %v1858
        %v1923 = vadd.f32 %v1535, %v1859
        %v1924 = vadd.f32 %v1536, %v1860
        %v1925 = vadd.f32 %v1537, %v1861
        %v1926 = vadd.f32 %v1538, %v1862
        %v1927 = vadd.f32 %v1539, %v1863
        %v1928 = vadd.f32 %v1540, %v1864
        %v1929 = vadd.f32 %v1541, %v1865
        %v1930 = vadd.f32 %v1542, %v1866
        %v1931 = vadd.f32 %v1543, %v1867
        %v1932 = vadd.f32 %v1544, %v1868
        %v1933 = vadd.f32 %v1545, %v1869
        %v1934 = vadd.f32 %v1546, %v1870
        %v1935 = vadd.f32 %v1547, %v1871
        %v1936 = vadd.f32 %v1548, %v1872
        %v1937 = vadd.f32 %v1549, %v1873
        %v1938 = vadd.f32 %v1550, %v1874
        %v1939 = vadd.f32 %v1551, %v1875
        %v1940 = vadd.f32 %v1552, %v1876
        %v1941 = vadd.f32 %v1553, %v1877
        %v1942 = vadd.f32 %v1554, %v1878
        %v1943 = vadd.f32 %v1555, %v1879
        %v1944 = vadd.f32 %v1556, %v1880
        %v1945 = vadd.f32 %v1557, %v1881
        %v1946 = vadd.f32 %v1558, %v1882
        %v1947 = vadd.f32 %v1559, %v1883
        %v1948 = vadd.f32 %v1560, %v1884
        %v1949 = vadd.f32 %v1561, %v1885
        %v1950 = vadd.f32 %v1562, %v1886
        %v1951 = vadd.f32 %v1563, %v1887
        %1952 = vset.pattern.permute.xlu0 3
        %1953 = vperm.xlu0 %1952, %v340
        %v1954 = vpop.permute.xlu0 %1953
        %1956 = vset.pattern.permute.xlu0 3
        %1957 = vperm.xlu0 %1956, %v341
        %v1958 = vpop.permute.xlu0 %1957
        %1960 = vset.pattern.permute.xlu0 3
        %1961 = vperm.xlu0 %1960, %v342
        %v1962 = vpop.permute.xlu0 %1961
        %1964 = vset.pattern.permute.xlu0 3
        %1965 = vperm.xlu0 %1964, %v343
        %v1966 = vpop.permute.xlu0 %1965
        %1968 = vset.pattern.permute.xlu0 3
        %1969 = vperm.xlu0 %1968, %v344
        %v1970 = vpop.permute.xlu0 %1969
        %1972 = vset.pattern.permute.xlu0 3
        %1973 = vperm.xlu0 %1972, %v345
        %v1974 = vpop.permute.xlu0 %1973
        %1976 = vset.pattern.permute.xlu0 3
        %1977 = vperm.xlu0 %1976, %v346
        %v1978 = vpop.permute.xlu0 %1977
        %1980 = vset.pattern.permute.xlu0 3
        %1981 = vperm.xlu0 %1980, %v347
        %v1982 = vpop.permute.xlu0 %1981
        %1984 = vset.pattern.permute.xlu0 3
        %1985 = vperm.xlu0 %1984, %v348
        %v1986 = vpop.permute.xlu0 %1985
        %1988 = vset.pattern.permute.xlu0 3
        %1989 = vperm.xlu0 %1988, %v349
        %v1990 = vpop.permute.xlu0 %1989
        %1992 = vset.pattern.permute.xlu0 3
        %1993 = vperm.xlu0 %1992, %v350
        %v1994 = vpop.permute.xlu0 %1993
        %1996 = vset.pattern.permute.xlu0 3
        %1997 = vperm.xlu0 %1996, %v351
        %v1998 = vpop.permute.xlu0 %1997
        %2000 = vset.pattern.permute.xlu0 3
        %2001 = vperm.xlu0 %2000, %v352
        %v2002 = vpop.permute.xlu0 %2001
        %2004 = vset.pattern.permute.xlu0 3
        %2005 = vperm.xlu0 %2004, %v353
        %v2006 = vpop.permute.xlu0 %2005
        %2008 = vset.pattern.permute.xlu0 3
        %2009 = vperm.xlu0 %2008, %v354
        %v2010 = vpop.permute.xlu0 %2009
        %2012 = vset.pattern.permute.xlu0 3
        %2013 = vperm.xlu0 %2012, %v355
        %v2014 = vpop.permute.xlu0 %2013
        %2016 = vset.pattern.permute.xlu0 3
        %2017 = vperm.xlu0 %2016, %v356
        %v2018 = vpop.permute.xlu0 %2017
        %2020 = vset.pattern.permute.xlu0 3
        %2021 = vperm.xlu0 %2020, %v357
        %v2022 = vpop.permute.xlu0 %2021
        %2024 = vset.pattern.permute.xlu0 3
        %2025 = vperm.xlu0 %2024, %v358
        %v2026 = vpop.permute.xlu0 %2025
        %2028 = vset.pattern.permute.xlu0 3
        %2029 = vperm.xlu0 %2028, %v359
        %v2030 = vpop.permute.xlu0 %2029
        %2032 = vset.pattern.permute.xlu0 3
        %2033 = vperm.xlu0 %2032, %v360
        %v2034 = vpop.permute.xlu0 %2033
        %2036 = vset.pattern.permute.xlu0 3
        %2037 = vperm.xlu0 %2036, %v361
        %v2038 = vpop.permute.xlu0 %2037
        %2040 = vset.pattern.permute.xlu0 3
        %2041 = vperm.xlu0 %2040, %v362
        %v2042 = vpop.permute.xlu0 %2041
        %2044 = vset.pattern.permute.xlu0 3
        %2045 = vperm.xlu0 %2044, %v363
        %v2046 = vpop.permute.xlu0 %2045
        %2048 = vset.pattern.permute.xlu0 3
        %2049 = vperm.xlu0 %2048, %v364
        %v2050 = vpop.permute.xlu0 %2049
        %2052 = vset.pattern.permute.xlu0 3
        %2053 = vperm.xlu0 %2052, %v365
        %v2054 = vpop.permute.xlu0 %2053
        %2056 = vset.pattern.permute.xlu0 3
        %2057 = vperm.xlu0 %2056, %v366
        %v2058 = vpop.permute.xlu0 %2057
        %2060 = vset.pattern.permute.xlu0 3
        %2061 = vperm.xlu0 %2060, %v367
        %v2062 = vpop.permute.xlu0 %2061
        %2064 = vset.pattern.permute.xlu0 3
        %2065 = vperm.xlu0 %2064, %v368
        %v2066 = vpop.permute.xlu0 %2065
        %2068 = vset.pattern.permute.xlu0 3
        %2069 = vperm.xlu0 %2068, %v369
        %v2070 = vpop.permute.xlu0 %2069
        %2072 = vset.pattern.permute.xlu0 3
        %2073 = vperm.xlu0 %2072, %v370
        %v2074 = vpop.permute.xlu0 %2073
        %2076 = vset.pattern.permute.xlu0 3
        %2077 = vperm.xlu0 %2076, %v371
        %v2078 = vpop.permute.xlu0 %2077
        %2080 = vset.pattern.permute.xlu0 3
        %2081 = vperm.xlu0 %2080, %v372
        %v2082 = vpop.permute.xlu0 %2081
        %2084 = vset.pattern.permute.xlu0 3
        %2085 = vperm.xlu0 %2084, %v373
        %v2086 = vpop.permute.xlu0 %2085
        %2088 = vset.pattern.permute.xlu0 3
        %2089 = vperm.xlu0 %2088, %v374
        %v2090 = vpop.permute.xlu0 %2089
        %2092 = vset.pattern.permute.xlu0 3
        %2093 = vperm.xlu0 %2092, %v375
        %v2094 = vpop.permute.xlu0 %2093
        %2096 = vset.pattern.permute.xlu0 3
        %2097 = vperm.xlu0 %2096, %v376
        %v2098 = vpop.permute.xlu0 %2097
        %2100 = vset.pattern.permute.xlu0 3
        %2101 = vperm.xlu0 %2100, %v377
        %v2102 = vpop.permute.xlu0 %2101
        %2104 = vset.pattern.permute.xlu0 3
        %2105 = vperm.xlu0 %2104, %v378
        %v2106 = vpop.permute.xlu0 %2105
        %2108 = vset.pattern.permute.xlu0 3
        %2109 = vperm.xlu0 %2108, %v379
        %v2110 = vpop.permute.xlu0 %2109
        %2112 = vset.pattern.permute.xlu0 3
        %2113 = vperm.xlu0 %2112, %v380
        %v2114 = vpop.permute.xlu0 %2113
        %2116 = vset.pattern.permute.xlu0 3
        %2117 = vperm.xlu0 %2116, %v381
        %v2118 = vpop.permute.xlu0 %2117
        %2120 = vset.pattern.permute.xlu0 3
        %2121 = vperm.xlu0 %2120, %v382
        %v2122 = vpop.permute.xlu0 %2121
        %2124 = vset.pattern.permute.xlu0 3
        %2125 = vperm.xlu0 %2124, %v383
        %v2126 = vpop.permute.xlu0 %2125
        %2128 = vset.pattern.permute.xlu0 3
        %2129 = vperm.xlu0 %2128, %v384
        %v2130 = vpop.permute.xlu0 %2129
        %2132 = vset.pattern.permute.xlu0 3
        %2133 = vperm.xlu0 %2132, %v385
        %v2134 = vpop.permute.xlu0 %2133
        %2136 = vset.pattern.permute.xlu0 3
        %2137 = vperm.xlu0 %2136, %v386
        %v2138 = vpop.permute.xlu0 %2137
        %2140 = vset.pattern.permute.xlu0 3
        %2141 = vperm.xlu0 %2140, %v387
        %v2142 = vpop.permute.xlu0 %2141
        %2144 = vset.pattern.permute.xlu0 3
        %2145 = vperm.xlu0 %2144, %v388
        %v2146 = vpop.permute.xlu0 %2145
        %2148 = vset.pattern.permute.xlu0 3
        %2149 = vperm.xlu0 %2148, %v389
        %v2150 = vpop.permute.xlu0 %2149
        %2152 = vset.pattern.permute.xlu0 3
        %2153 = vperm.xlu0 %2152, %v390
        %v2154 = vpop.permute.xlu0 %2153
        %2156 = vset.pattern.permute.xlu0 3
        %2157 = vperm.xlu0 %2156, %v391
        %v2158 = vpop.permute.xlu0 %2157
        %2160 = vset.pattern.permute.xlu0 3
        %2161 = vperm.xlu0 %2160, %v392
        %v2162 = vpop.permute.xlu0 %2161
        %2164 = vset.pattern.permute.xlu0 3
        %2165 = vperm.xlu0 %2164, %v393
        %v2166 = vpop.permute.xlu0 %2165
        %2168 = vset.pattern.permute.xlu0 3
        %2169 = vperm.xlu0 %2168, %v394
        %v2170 = vpop.permute.xlu0 %2169
        %2172 = vset.pattern.permute.xlu0 3
        %2173 = vperm.xlu0 %2172, %v395
        %v2174 = vpop.permute.xlu0 %2173
        %2176 = vset.pattern.permute.xlu0 3
        %2177 = vperm.xlu0 %2176, %v396
        %v2178 = vpop.permute.xlu0 %2177
        %2180 = vset.pattern.permute.xlu0 3
        %2181 = vperm.xlu0 %2180, %v397
        %v2182 = vpop.permute.xlu0 %2181
        %2184 = vset.pattern.permute.xlu0 3
        %2185 = vperm.xlu0 %2184, %v398
        %v2186 = vpop.permute.xlu0 %2185
        %2188 = vset.pattern.permute.xlu0 3
        %2189 = vperm.xlu0 %2188, %v399
        %v2190 = vpop.permute.xlu0 %2189
        %2192 = vset.pattern.permute.xlu0 3
        %2193 = vperm.xlu0 %2192, %v400
        %v2194 = vpop.permute.xlu0 %2193
        %2196 = vset.pattern.permute.xlu0 3
        %2197 = vperm.xlu0 %2196, %v401
        %v2198 = vpop.permute.xlu0 %2197
        %2200 = vset.pattern.permute.xlu0 3
        %2201 = vperm.xlu0 %2200, %v402
        %v2202 = vpop.permute.xlu0 %2201
        %2204 = vset.pattern.permute.xlu0 3
        %2205 = vperm.xlu0 %2204, %v403
        %v2206 = vpop.permute.xlu0 %2205
        %v2208 = vlaneseq
        %v2209 = vshrl.u32 %v2208, 7
        %v2210 = vsub.s32 3, %v2209
        %v2211 = vrot.slane %v275, %v2210
        %v2212 = vmul.f32 %v1954, %v2211
        %v2213 = vmul.f32 %v1958, %v2211
        %v2214 = vmul.f32 %v1962, %v2211
        %v2215 = vmul.f32 %v1966, %v2211
        %v2216 = vmul.f32 %v1970, %v2211
        %v2217 = vmul.f32 %v1974, %v2211
        %v2218 = vmul.f32 %v1978, %v2211
        %v2219 = vmul.f32 %v1982, %v2211
        %v2220 = vmul.f32 %v1986, %v2211
        %v2221 = vmul.f32 %v1990, %v2211
        %v2222 = vmul.f32 %v1994, %v2211
        %v2223 = vmul.f32 %v1998, %v2211
        %v2224 = vmul.f32 %v2002, %v2211
        %v2225 = vmul.f32 %v2006, %v2211
        %v2226 = vmul.f32 %v2010, %v2211
        %v2227 = vmul.f32 %v2014, %v2211
        %v2228 = vmul.f32 %v2018, %v2211
        %v2229 = vmul.f32 %v2022, %v2211
        %v2230 = vmul.f32 %v2026, %v2211
        %v2231 = vmul.f32 %v2030, %v2211
        %v2232 = vmul.f32 %v2034, %v2211
        %v2233 = vmul.f32 %v2038, %v2211
        %v2234 = vmul.f32 %v2042, %v2211
        %v2235 = vmul.f32 %v2046, %v2211
        %v2236 = vmul.f32 %v2050, %v2211
        %v2237 = vmul.f32 %v2054, %v2211
        %v2238 = vmul.f32 %v2058, %v2211
        %v2239 = vmul.f32 %v2062, %v2211
        %v2240 = vmul.f32 %v2066, %v2211
        %v2241 = vmul.f32 %v2070, %v2211
        %v2242 = vmul.f32 %v2074, %v2211
        %v2243 = vmul.f32 %v2078, %v2211
        %v2244 = vmul.f32 %v2082, %v2211
        %v2245 = vmul.f32 %v2086, %v2211
        %v2246 = vmul.f32 %v2090, %v2211
        %v2247 = vmul.f32 %v2094, %v2211
        %v2248 = vmul.f32 %v2098, %v2211
        %v2249 = vmul.f32 %v2102, %v2211
        %v2250 = vmul.f32 %v2106, %v2211
        %v2251 = vmul.f32 %v2110, %v2211
        %v2252 = vmul.f32 %v2114, %v2211
        %v2253 = vmul.f32 %v2118, %v2211
        %v2254 = vmul.f32 %v2122, %v2211
        %v2255 = vmul.f32 %v2126, %v2211
        %v2256 = vmul.f32 %v2130, %v2211
        %v2257 = vmul.f32 %v2134, %v2211
        %v2258 = vmul.f32 %v2138, %v2211
        %v2259 = vmul.f32 %v2142, %v2211
        %v2260 = vmul.f32 %v2146, %v2211
        %v2261 = vmul.f32 %v2150, %v2211
        %v2262 = vmul.f32 %v2154, %v2211
        %v2263 = vmul.f32 %v2158, %v2211
        %v2264 = vmul.f32 %v2162, %v2211
        %v2265 = vmul.f32 %v2166, %v2211
        %v2266 = vmul.f32 %v2170, %v2211
        %v2267 = vmul.f32 %v2174, %v2211
        %v2268 = vmul.f32 %v2178, %v2211
        %v2269 = vmul.f32 %v2182, %v2211
        %v2270 = vmul.f32 %v2186, %v2211
        %v2271 = vmul.f32 %v2190, %v2211
        %v2272 = vmul.f32 %v2194, %v2211
        %v2273 = vmul.f32 %v2198, %v2211
        %v2274 = vmul.f32 %v2202, %v2211
        %v2275 = vmul.f32 %v2206, %v2211
        %v2276 = vadd.f32 %v1888, %v2212
        %v2277 = vadd.f32 %v1889, %v2213
        %v2278 = vadd.f32 %v1890, %v2214
        %v2279 = vadd.f32 %v1891, %v2215
        %v2280 = vadd.f32 %v1892, %v2216
        %v2281 = vadd.f32 %v1893, %v2217
        %v2282 = vadd.f32 %v1894, %v2218
        %v2283 = vadd.f32 %v1895, %v2219
        %v2284 = vadd.f32 %v1896, %v2220
        %v2285 = vadd.f32 %v1897, %v2221
        %v2286 = vadd.f32 %v1898, %v2222
        %v2287 = vadd.f32 %v1899, %v2223
        %v2288 = vadd.f32 %v1900, %v2224
        %v2289 = vadd.f32 %v1901, %v2225
        %v2290 = vadd.f32 %v1902, %v2226
        %v2291 = vadd.f32 %v1903, %v2227
        %v2292 = vadd.f32 %v1904, %v2228
        %v2293 = vadd.f32 %v1905, %v2229
        %v2294 = vadd.f32 %v1906, %v2230
        %v2295 = vadd.f32 %v1907, %v2231
        %v2296 = vadd.f32 %v1908, %v2232
        %v2297 = vadd.f32 %v1909, %v2233
        %v2298 = vadd.f32 %v1910, %v2234
        %v2299 = vadd.f32 %v1911, %v2235
        %v2300 = vadd.f32 %v1912, %v2236
        %v2301 = vadd.f32 %v1913, %v2237
        %v2302 = vadd.f32 %v1914, %v2238
        %v2303 = vadd.f32 %v1915, %v2239
        %v2304 = vadd.f32 %v1916, %v2240
        %v2305 = vadd.f32 %v1917, %v2241
        %v2306 = vadd.f32 %v1918, %v2242
        %v2307 = vadd.f32 %v1919, %v2243
        %v2308 = vadd.f32 %v1920, %v2244
        %v2309 = vadd.f32 %v1921, %v2245
        %v2310 = vadd.f32 %v1922, %v2246
        %v2311 = vadd.f32 %v1923, %v2247
        %v2312 = vadd.f32 %v1924, %v2248
        %v2313 = vadd.f32 %v1925, %v2249
        %v2314 = vadd.f32 %v1926, %v2250
        %v2315 = vadd.f32 %v1927, %v2251
        %v2316 = vadd.f32 %v1928, %v2252
        %v2317 = vadd.f32 %v1929, %v2253
        %v2318 = vadd.f32 %v1930, %v2254
        %v2319 = vadd.f32 %v1931, %v2255
        %v2320 = vadd.f32 %v1932, %v2256
        %v2321 = vadd.f32 %v1933, %v2257
        %v2322 = vadd.f32 %v1934, %v2258
        %v2323 = vadd.f32 %v1935, %v2259
        %v2324 = vadd.f32 %v1936, %v2260
        %v2325 = vadd.f32 %v1937, %v2261
        %v2326 = vadd.f32 %v1938, %v2262
        %v2327 = vadd.f32 %v1939, %v2263
        %v2328 = vadd.f32 %v1940, %v2264
        %v2329 = vadd.f32 %v1941, %v2265
        %v2330 = vadd.f32 %v1942, %v2266
        %v2331 = vadd.f32 %v1943, %v2267
        %v2332 = vadd.f32 %v1944, %v2268
        %v2333 = vadd.f32 %v1945, %v2269
        %v2334 = vadd.f32 %v1946, %v2270
        %v2335 = vadd.f32 %v1947, %v2271
        %v2336 = vadd.f32 %v1948, %v2272
        %v2337 = vadd.f32 %v1949, %v2273
        %v2338 = vadd.f32 %v1950, %v2274
        %v2339 = vadd.f32 %v1951, %v2275
        %v2340 = vmax.f32 %v2276, 0.0
        %v2341 = vmax.f32 %v2277, 0.0
        %v2342 = vmax.f32 %v2278, 0.0
        %v2343 = vmax.f32 %v2279, 0.0
        %v2344 = vmax.f32 %v2280, 0.0
        %v2345 = vmax.f32 %v2281, 0.0
        %v2346 = vmax.f32 %v2282, 0.0
        %v2347 = vmax.f32 %v2283, 0.0
        %v2348 = vmax.f32 %v2284, 0.0
        %v2349 = vmax.f32 %v2285, 0.0
        %v2350 = vmax.f32 %v2286, 0.0
        %v2351 = vmax.f32 %v2287, 0.0
        %v2352 = vmax.f32 %v2288, 0.0
        %v2353 = vmax.f32 %v2289, 0.0
        %v2354 = vmax.f32 %v2290, 0.0
        %v2355 = vmax.f32 %v2291, 0.0
        %v2356 = vmax.f32 %v2292, 0.0
        %v2357 = vmax.f32 %v2293, 0.0
        %v2358 = vmax.f32 %v2294, 0.0
        %v2359 = vmax.f32 %v2295, 0.0
        %v2360 = vmax.f32 %v2296, 0.0
        %v2361 = vmax.f32 %v2297, 0.0
        %v2362 = vmax.f32 %v2298, 0.0
        %v2363 = vmax.f32 %v2299, 0.0
        %v2364 = vmax.f32 %v2300, 0.0
        %v2365 = vmax.f32 %v2301, 0.0
        %v2366 = vmax.f32 %v2302, 0.0
        %v2367 = vmax.f32 %v2303, 0.0
        %v2368 = vmax.f32 %v2304, 0.0
        %v2369 = vmax.f32 %v2305, 0.0
        %v2370 = vmax.f32 %v2306, 0.0
        %v2371 = vmax.f32 %v2307, 0.0
        %v2372 = vmax.f32 %v2308, 0.0
        %v2373 = vmax.f32 %v2309, 0.0
        %v2374 = vmax.f32 %v2310, 0.0
        %v2375 = vmax.f32 %v2311, 0.0
        %v2376 = vmax.f32 %v2312, 0.0
        %v2377 = vmax.f32 %v2313, 0.0
        %v2378 = vmax.f32 %v2314, 0.0
        %v2379 = vmax.f32 %v2315, 0.0
        %v2380 = vmax.f32 %v2316, 0.0
        %v2381 = vmax.f32 %v2317, 0.0
        %v2382 = vmax.f32 %v2318, 0.0
        %v2383 = vmax.f32 %v2319, 0.0
        %v2384 = vmax.f32 %v2320, 0.0
        %v2385 = vmax.f32 %v2321, 0.0
        %v2386 = vmax.f32 %v2322, 0.0
        %v2387 = vmax.f32 %v2323, 0.0
        %v2388 = vmax.f32 %v2324, 0.0
        %v2389 = vmax.f32 %v2325, 0.0
        %v2390 = vmax.f32 %v2326, 0.0
        %v2391 = vmax.f32 %v2327, 0.0
        %v2392 = vmax.f32 %v2328, 0.0
        %v2393 = vmax.f32 %v2329, 0.0
        %v2394 = vmax.f32 %v2330, 0.0
        %v2395 = vmax.f32 %v2331, 0.0
        %v2396 = vmax.f32 %v2332, 0.0
        %v2397 = vmax.f32 %v2333, 0.0
        %v2398 = vmax.f32 %v2334, 0.0
        %v2399 = vmax.f32 %v2335, 0.0
        %v2400 = vmax.f32 %v2336, 0.0
        %v2401 = vmax.f32 %v2337, 0.0
        %v2402 = vmax.f32 %v2338, 0.0
        %v2403 = vmax.f32 %v2339, 0.0
        %v2404 = vld [vmem:[%s3] sm:$0xff]
        %v2405 = vld [vmem:[%s3 + $0x8] sm:$0xff]
        %v2406 = vld [vmem:[%s3 + $0x10] sm:$0xff]
        %v2407 = vld [vmem:[%s3 + $0x18] sm:$0xff]
        %v2408 = vld [vmem:[%s3 + $0x20] sm:$0xff]
        %v2409 = vld [vmem:[%s3 + $0x28] sm:$0xff]
        %v2410 = vld [vmem:[%s3 + $0x30] sm:$0xff]
        %v2411 = vld [vmem:[%s3 + $0x38] sm:$0xff]
        %v2412 = vld [vmem:[%s3 + $0x40] sm:$0xff]
        %v2413 = vld [vmem:[%s3 + $0x48] sm:$0xff]
        %v2414 = vld [vmem:[%s3 + $0x50] sm:$0xff]
        %v2415 = vld [vmem:[%s3 + $0x58] sm:$0xff]
        %v2416 = vld [vmem:[%s3 + $0x60] sm:$0xff]
        %v2417 = vld [vmem:[%s3 + $0x68] sm:$0xff]
        %v2418 = vld [vmem:[%s3 + $0x70] sm:$0xff]
        %v2419 = vld [vmem:[%s3 + $0x78] sm:$0xff]
        %v2420 = vld [vmem:[%s3 + $0x80] sm:$0xff]
        %v2421 = vld [vmem:[%s3 + $0x88] sm:$0xff]
        %v2422 = vld [vmem:[%s3 + $0x90] sm:$0xff]
        %v2423 = vld [vmem:[%s3 + $0x98] sm:$0xff]
        %v2424 = vld [vmem:[%s3 + $0xa0] sm:$0xff]
        %v2425 = vld [vmem:[%s3 + $0xa8] sm:$0xff]
        %v2426 = vld [vmem:[%s3 + $0xb0] sm:$0xff]
        %v2427 = vld [vmem:[%s3 + $0xb8] sm:$0xff]
        %v2428 = vld [vmem:[%s3 + $0xc0] sm:$0xff]
        %v2429 = vld [vmem:[%s3 + $0xc8] sm:$0xff]
        %v2430 = vld [vmem:[%s3 + $0xd0] sm:$0xff]
        %v2431 = vld [vmem:[%s3 + $0xd8] sm:$0xff]
        %v2432 = vld [vmem:[%s3 + $0xe0] sm:$0xff]
        %v2433 = vld [vmem:[%s3 + $0xe8] sm:$0xff]
        %v2434 = vld [vmem:[%s3 + $0xf0] sm:$0xff]
        %v2435 = vld [vmem:[%s3 + $0xf8] sm:$0xff]
        %v2436 = vld [vmem:[%s3 + $0x100] sm:$0xff]
        %v2437 = vld [vmem:[%s3 + $0x108] sm:$0xff]
        %v2438 = vld [vmem:[%s3 + $0x110] sm:$0xff]
        %v2439 = vld [vmem:[%s3 + $0x118] sm:$0xff]
        %v2440 = vld [vmem:[%s3 + $0x120] sm:$0xff]
        %v2441 = vld [vmem:[%s3 + $0x128] sm:$0xff]
        %v2442 = vld [vmem:[%s3 + $0x130] sm:$0xff]
        %v2443 = vld [vmem:[%s3 + $0x138] sm:$0xff]
        %v2444 = vld [vmem:[%s3 + $0x140] sm:$0xff]
        %v2445 = vld [vmem:[%s3 + $0x148] sm:$0xff]
        %v2446 = vld [vmem:[%s3 + $0x150] sm:$0xff]
        %v2447 = vld [vmem:[%s3 + $0x158] sm:$0xff]
        %v2448 = vld [vmem:[%s3 + $0x160] sm:$0xff]
        %v2449 = vld [vmem:[%s3 + $0x168] sm:$0xff]
        %v2450 = vld [vmem:[%s3 + $0x170] sm:$0xff]
        %v2451 = vld [vmem:[%s3 + $0x178] sm:$0xff]
        %v2452 = vld [vmem:[%s3 + $0x180] sm:$0xff]
        %v2453 = vld [vmem:[%s3 + $0x188] sm:$0xff]
        %v2454 = vld [vmem:[%s3 + $0x190] sm:$0xff]
        %v2455 = vld [vmem:[%s3 + $0x198] sm:$0xff]
        %v2456 = vld [vmem:[%s3 + $0x1a0] sm:$0xff]
        %v2457 = vld [vmem:[%s3 + $0x1a8] sm:$0xff]
        %v2458 = vld [vmem:[%s3 + $0x1b0] sm:$0xff]
        %v2459 = vld [vmem:[%s3 + $0x1b8] sm:$0xff]
        %v2460 = vld [vmem:[%s3 + $0x1c0] sm:$0xff]
        %v2461 = vld [vmem:[%s3 + $0x1c8] sm:$0xff]
        %v2462 = vld [vmem:[%s3 + $0x1d0] sm:$0xff]
        %v2463 = vld [vmem:[%s3 + $0x1d8] sm:$0xff]
        %v2464 = vld [vmem:[%s3 + $0x1e0] sm:$0xff]
        %v2465 = vld [vmem:[%s3 + $0x1e8] sm:$0xff]
        %v2466 = vld [vmem:[%s3 + $0x1f0] sm:$0xff]
        %v2467 = vld [vmem:[%s3 + $0x1f8] sm:$0xff]
        %v2468 = vld [vmem:[%s3 + $0x200] sm:$0xff]
        %v2469 = vld [vmem:[%s3 + $0x208] sm:$0xff]
        %v2470 = vld [vmem:[%s3 + $0x210] sm:$0xff]
        %v2471 = vld [vmem:[%s3 + $0x218] sm:$0xff]
        %v2472 = vld [vmem:[%s3 + $0x220] sm:$0xff]
        %v2473 = vld [vmem:[%s3 + $0x228] sm:$0xff]
        %v2474 = vld [vmem:[%s3 + $0x230] sm:$0xff]
        %v2475 = vld [vmem:[%s3 + $0x238] sm:$0xff]
        %v2476 = vld [vmem:[%s3 + $0x240] sm:$0xff]
        %v2477 = vld [vmem:[%s3 + $0x248] sm:$0xff]
        %v2478 = vld [vmem:[%s3 + $0x250] sm:$0xff]
        %v2479 = vld [vmem:[%s3 + $0x258] sm:$0xff]
        %v2480 = vld [vmem:[%s3 + $0x260] sm:$0xff]
        %v2481 = vld [vmem:[%s3 + $0x268] sm:$0xff]
        %v2482 = vld [vmem:[%s3 + $0x270] sm:$0xff]
        %v2483 = vld [vmem:[%s3 + $0x278] sm:$0xff]
        %v2484 = vld [vmem:[%s3 + $0x280] sm:$0xff]
        %v2485 = vld [vmem:[%s3 + $0x288] sm:$0xff]
        %v2486 = vld [vmem:[%s3 + $0x290] sm:$0xff]
        %v2487 = vld [vmem:[%s3 + $0x298] sm:$0xff]
        %v2488 = vld [vmem:[%s3 + $0x2a0] sm:$0xff]
        %v2489 = vld [vmem:[%s3 + $0x2a8] sm:$0xff]
        %v2490 = vld [vmem:[%s3 + $0x2b0] sm:$0xff]
        %v2491 = vld [vmem:[%s3 + $0x2b8] sm:$0xff]
        %v2492 = vld [vmem:[%s3 + $0x2c0] sm:$0xff]
        %v2493 = vld [vmem:[%s3 + $0x2c8] sm:$0xff]
        %v2494 = vld [vmem:[%s3 + $0x2d0] sm:$0xff]
        %v2495 = vld [vmem:[%s3 + $0x2d8] sm:$0xff]
        %v2496 = vld [vmem:[%s3 + $0x2e0] sm:$0xff]
        %v2497 = vld [vmem:[%s3 + $0x2e8] sm:$0xff]
        %v2498 = vld [vmem:[%s3 + $0x2f0] sm:$0xff]
        %v2499 = vld [vmem:[%s3 + $0x2f8] sm:$0xff]
        %v2500 = vld [vmem:[%s3 + $0x300] sm:$0xff]
        %v2501 = vld [vmem:[%s3 + $0x308] sm:$0xff]
        %v2502 = vld [vmem:[%s3 + $0x310] sm:$0xff]
        %v2503 = vld [vmem:[%s3 + $0x318] sm:$0xff]
        %v2504 = vld [vmem:[%s3 + $0x320] sm:$0xff]
        %v2505 = vld [vmem:[%s3 + $0x328] sm:$0xff]
        %v2506 = vld [vmem:[%s3 + $0x330] sm:$0xff]
        %v2507 = vld [vmem:[%s3 + $0x338] sm:$0xff]
        %v2508 = vld [vmem:[%s3 + $0x340] sm:$0xff]
        %v2509 = vld [vmem:[%s3 + $0x348] sm:$0xff]
        %v2510 = vld [vmem:[%s3 + $0x350] sm:$0xff]
        %v2511 = vld [vmem:[%s3 + $0x358] sm:$0xff]
        %v2512 = vld [vmem:[%s3 + $0x360] sm:$0xff]
        %v2513 = vld [vmem:[%s3 + $0x368] sm:$0xff]
        %v2514 = vld [vmem:[%s3 + $0x370] sm:$0xff]
        %v2515 = vld [vmem:[%s3 + $0x378] sm:$0xff]
        %v2516 = vld [vmem:[%s3 + $0x380] sm:$0xff]
        %v2517 = vld [vmem:[%s3 + $0x388] sm:$0xff]
        %v2518 = vld [vmem:[%s3 + $0x390] sm:$0xff]
        %v2519 = vld [vmem:[%s3 + $0x398] sm:$0xff]
        %v2520 = vld [vmem:[%s3 + $0x3a0] sm:$0xff]
        %v2521 = vld [vmem:[%s3 + $0x3a8] sm:$0xff]
        %v2522 = vld [vmem:[%s3 + $0x3b0] sm:$0xff]
        %v2523 = vld [vmem:[%s3 + $0x3b8] sm:$0xff]
        %v2524 = vld [vmem:[%s3 + $0x3c0] sm:$0xff]
        %v2525 = vld [vmem:[%s3 + $0x3c8] sm:$0xff]
        %v2526 = vld [vmem:[%s3 + $0x3d0] sm:$0xff]
        %v2527 = vld [vmem:[%s3 + $0x3d8] sm:$0xff]
        %v2528 = vld [vmem:[%s3 + $0x3e0] sm:$0xff]
        %v2529 = vld [vmem:[%s3 + $0x3e8] sm:$0xff]
        %v2530 = vld [vmem:[%s3 + $0x3f0] sm:$0xff]
        %v2531 = vld [vmem:[%s3 + $0x3f8] sm:$0xff]
        %v2532 = vpack.c.bf16 %v2341, %v2340
        %v2533 = vpack.c.bf16 %v2343, %v2342
        %v2534 = vpack.c.bf16 %v2345, %v2344
        %v2535 = vpack.c.bf16 %v2347, %v2346
        %v2536 = vpack.c.bf16 %v2349, %v2348
        %v2537 = vpack.c.bf16 %v2351, %v2350
        %v2538 = vpack.c.bf16 %v2353, %v2352
        %v2539 = vpack.c.bf16 %v2355, %v2354
        %v2540 = vpack.c.bf16 %v2357, %v2356
        %v2541 = vpack.c.bf16 %v2359, %v2358
        %v2542 = vpack.c.bf16 %v2361, %v2360
        %v2543 = vpack.c.bf16 %v2363, %v2362
        %v2544 = vpack.c.bf16 %v2365, %v2364
        %v2545 = vpack.c.bf16 %v2367, %v2366
        %v2546 = vpack.c.bf16 %v2369, %v2368
        %v2547 = vpack.c.bf16 %v2371, %v2370
        %v2548 = vpack.c.bf16 %v2373, %v2372
        %v2549 = vpack.c.bf16 %v2375, %v2374
        %v2550 = vpack.c.bf16 %v2377, %v2376
        %v2551 = vpack.c.bf16 %v2379, %v2378
        %v2552 = vpack.c.bf16 %v2381, %v2380
        %v2553 = vpack.c.bf16 %v2383, %v2382
        %v2554 = vpack.c.bf16 %v2385, %v2384
        %v2555 = vpack.c.bf16 %v2387, %v2386
        %v2556 = vpack.c.bf16 %v2389, %v2388
        %v2557 = vpack.c.bf16 %v2391, %v2390
        %v2558 = vpack.c.bf16 %v2393, %v2392
        %v2559 = vpack.c.bf16 %v2395, %v2394
        %v2560 = vpack.c.bf16 %v2397, %v2396
        %v2561 = vpack.c.bf16 %v2399, %v2398
        %v2562 = vpack.c.bf16 %v2401, %v2400
        %v2563 = vpack.c.bf16 %v2403, %v2402
        %v2564 = vld [vmem:[%s4] sm:$0xff]
        %v2565 = vld [vmem:[%s4 + $0x8] sm:$0xff]
        %v2566 = vld [vmem:[%s4 + $0x10] sm:$0xff]
        %v2567 = vld [vmem:[%s4 + $0x18] sm:$0xff]
        %v2568 = vld [vmem:[%s4 + $0x20] sm:$0xff]
        %v2569 = vld [vmem:[%s4 + $0x28] sm:$0xff]
        %v2570 = vld [vmem:[%s4 + $0x30] sm:$0xff]
        %v2571 = vld [vmem:[%s4 + $0x38] sm:$0xff]
        %v2572 = vld [vmem:[%s4 + $0x40] sm:$0xff]
        %v2573 = vld [vmem:[%s4 + $0x48] sm:$0xff]
        %v2574 = vld [vmem:[%s4 + $0x50] sm:$0xff]
        %v2575 = vld [vmem:[%s4 + $0x58] sm:$0xff]
        %v2576 = vld [vmem:[%s4 + $0x60] sm:$0xff]
        %v2577 = vld [vmem:[%s4 + $0x68] sm:$0xff]
        %v2578 = vld [vmem:[%s4 + $0x70] sm:$0xff]
        %v2579 = vld [vmem:[%s4 + $0x78] sm:$0xff]
        %v2580 = vld [vmem:[%s4 + $0x80] sm:$0xff]
        %v2581 = vld [vmem:[%s4 + $0x88] sm:$0xff]
        %v2582 = vld [vmem:[%s4 + $0x90] sm:$0xff]
        %v2583 = vld [vmem:[%s4 + $0x98] sm:$0xff]
        %v2584 = vld [vmem:[%s4 + $0xa0] sm:$0xff]
        %v2585 = vld [vmem:[%s4 + $0xa8] sm:$0xff]
        %v2586 = vld [vmem:[%s4 + $0xb0] sm:$0xff]
        %v2587 = vld [vmem:[%s4 + $0xb8] sm:$0xff]
        %v2588 = vld [vmem:[%s4 + $0xc0] sm:$0xff]
        %v2589 = vld [vmem:[%s4 + $0xc8] sm:$0xff]
        %v2590 = vld [vmem:[%s4 + $0xd0] sm:$0xff]
        %v2591 = vld [vmem:[%s4 + $0xd8] sm:$0xff]
        %v2592 = vld [vmem:[%s4 + $0xe0] sm:$0xff]
        %v2593 = vld [vmem:[%s4 + $0xe8] sm:$0xff]
        %v2594 = vld [vmem:[%s4 + $0xf0] sm:$0xff]
        %v2595 = vld [vmem:[%s4 + $0xf8] sm:$0xff]
        %v2596 = vld [vmem:[%s4 + $0x100] sm:$0xff]
        %v2597 = vld [vmem:[%s4 + $0x108] sm:$0xff]
        %v2598 = vld [vmem:[%s4 + $0x110] sm:$0xff]
        %v2599 = vld [vmem:[%s4 + $0x118] sm:$0xff]
        %v2600 = vld [vmem:[%s4 + $0x120] sm:$0xff]
        %v2601 = vld [vmem:[%s4 + $0x128] sm:$0xff]
        %v2602 = vld [vmem:[%s4 + $0x130] sm:$0xff]
        %v2603 = vld [vmem:[%s4 + $0x138] sm:$0xff]
        %v2604 = vld [vmem:[%s4 + $0x140] sm:$0xff]
        %v2605 = vld [vmem:[%s4 + $0x148] sm:$0xff]
        %v2606 = vld [vmem:[%s4 + $0x150] sm:$0xff]
        %v2607 = vld [vmem:[%s4 + $0x158] sm:$0xff]
        %v2608 = vld [vmem:[%s4 + $0x160] sm:$0xff]
        %v2609 = vld [vmem:[%s4 + $0x168] sm:$0xff]
        %v2610 = vld [vmem:[%s4 + $0x170] sm:$0xff]
        %v2611 = vld [vmem:[%s4 + $0x178] sm:$0xff]
        %v2612 = vld [vmem:[%s4 + $0x180] sm:$0xff]
        %v2613 = vld [vmem:[%s4 + $0x188] sm:$0xff]
        %v2614 = vld [vmem:[%s4 + $0x190] sm:$0xff]
        %v2615 = vld [vmem:[%s4 + $0x198] sm:$0xff]
        %v2616 = vld [vmem:[%s4 + $0x1a0] sm:$0xff]
        %v2617 = vld [vmem:[%s4 + $0x1a8] sm:$0xff]
        %v2618 = vld [vmem:[%s4 + $0x1b0] sm:$0xff]
        %v2619 = vld [vmem:[%s4 + $0x1b8] sm:$0xff]
        %v2620 = vld [vmem:[%s4 + $0x1c0] sm:$0xff]
        %v2621 = vld [vmem:[%s4 + $0x1c8] sm:$0xff]
        %v2622 = vld [vmem:[%s4 + $0x1d0] sm:$0xff]
        %v2623 = vld [vmem:[%s4 + $0x1d8] sm:$0xff]
        %v2624 = vld [vmem:[%s4 + $0x1e0] sm:$0xff]
        %v2625 = vld [vmem:[%s4 + $0x1e8] sm:$0xff]
        %v2626 = vld [vmem:[%s4 + $0x1f0] sm:$0xff]
        %v2627 = vld [vmem:[%s4 + $0x1f8] sm:$0xff]
        %2629 = vset.pattern.permute.xlu0 0
        %2630 = vperm.xlu0 %2629, %v2564
        %v2631 = vpop.permute.xlu0 %2630
        %2634 = vset.pattern.permute.xlu0 0
        %2635 = vperm.xlu0 %2634, %v2565
        %v2636 = vpop.permute.xlu0 %2635
        %2639 = vset.pattern.permute.xlu0 0
        %2640 = vperm.xlu0 %2639, %v2566
        %v2641 = vpop.permute.xlu0 %2640
        %2644 = vset.pattern.permute.xlu0 0
        %2645 = vperm.xlu0 %2644, %v2567
        %v2646 = vpop.permute.xlu0 %2645
        %2649 = vset.pattern.permute.xlu0 0
        %2650 = vperm.xlu0 %2649, %v2568
        %v2651 = vpop.permute.xlu0 %2650
        %2654 = vset.pattern.permute.xlu0 0
        %2655 = vperm.xlu0 %2654, %v2569
        %v2656 = vpop.permute.xlu0 %2655
        %2659 = vset.pattern.permute.xlu0 0
        %2660 = vperm.xlu0 %2659, %v2570
        %v2661 = vpop.permute.xlu0 %2660
        %2664 = vset.pattern.permute.xlu0 0
        %2665 = vperm.xlu0 %2664, %v2571
        %v2666 = vpop.permute.xlu0 %2665
        %2669 = vset.pattern.permute.xlu0 0
        %2670 = vperm.xlu0 %2669, %v2572
        %v2671 = vpop.permute.xlu0 %2670
        %2674 = vset.pattern.permute.xlu0 0
        %2675 = vperm.xlu0 %2674, %v2573
        %v2676 = vpop.permute.xlu0 %2675
        %2679 = vset.pattern.permute.xlu0 0
        %2680 = vperm.xlu0 %2679, %v2574
        %v2681 = vpop.permute.xlu0 %2680
        %2684 = vset.pattern.permute.xlu0 0
        %2685 = vperm.xlu0 %2684, %v2575
        %v2686 = vpop.permute.xlu0 %2685
        %2689 = vset.pattern.permute.xlu0 0
        %2690 = vperm.xlu0 %2689, %v2576
        %v2691 = vpop.permute.xlu0 %2690
        %2694 = vset.pattern.permute.xlu0 0
        %2695 = vperm.xlu0 %2694, %v2577
        %v2696 = vpop.permute.xlu0 %2695
        %2699 = vset.pattern.permute.xlu0 0
        %2700 = vperm.xlu0 %2699, %v2578
        %v2701 = vpop.permute.xlu0 %2700
        %2704 = vset.pattern.permute.xlu0 0
        %2705 = vperm.xlu0 %2704, %v2579
        %v2706 = vpop.permute.xlu0 %2705
        %2709 = vset.pattern.permute.xlu0 0
        %2710 = vperm.xlu0 %2709, %v2580
        %v2711 = vpop.permute.xlu0 %2710
        %2714 = vset.pattern.permute.xlu0 0
        %2715 = vperm.xlu0 %2714, %v2581
        %v2716 = vpop.permute.xlu0 %2715
        %2719 = vset.pattern.permute.xlu0 0
        %2720 = vperm.xlu0 %2719, %v2582
        %v2721 = vpop.permute.xlu0 %2720
        %2724 = vset.pattern.permute.xlu0 0
        %2725 = vperm.xlu0 %2724, %v2583
        %v2726 = vpop.permute.xlu0 %2725
        %2729 = vset.pattern.permute.xlu0 0
        %2730 = vperm.xlu0 %2729, %v2584
        %v2731 = vpop.permute.xlu0 %2730
        %2734 = vset.pattern.permute.xlu0 0
        %2735 = vperm.xlu0 %2734, %v2585
        %v2736 = vpop.permute.xlu0 %2735
        %2739 = vset.pattern.permute.xlu0 0
        %2740 = vperm.xlu0 %2739, %v2586
        %v2741 = vpop.permute.xlu0 %2740
        %2744 = vset.pattern.permute.xlu0 0
        %2745 = vperm.xlu0 %2744, %v2587
        %v2746 = vpop.permute.xlu0 %2745
        %2749 = vset.pattern.permute.xlu0 0
        %2750 = vperm.xlu0 %2749, %v2588
        %v2751 = vpop.permute.xlu0 %2750
        %2754 = vset.pattern.permute.xlu0 0
        %2755 = vperm.xlu0 %2754, %v2589
        %v2756 = vpop.permute.xlu0 %2755
        %2759 = vset.pattern.permute.xlu0 0
        %2760 = vperm.xlu0 %2759, %v2590
        %v2761 = vpop.permute.xlu0 %2760
        %2764 = vset.pattern.permute.xlu0 0
        %2765 = vperm.xlu0 %2764, %v2591
        %v2766 = vpop.permute.xlu0 %2765
        %2769 = vset.pattern.permute.xlu0 0
        %2770 = vperm.xlu0 %2769, %v2592
        %v2771 = vpop.permute.xlu0 %2770
        %2774 = vset.pattern.permute.xlu0 0
        %2775 = vperm.xlu0 %2774, %v2593
        %v2776 = vpop.permute.xlu0 %2775
        %2779 = vset.pattern.permute.xlu0 0
        %2780 = vperm.xlu0 %2779, %v2594
        %v2781 = vpop.permute.xlu0 %2780
        %2784 = vset.pattern.permute.xlu0 0
        %2785 = vperm.xlu0 %2784, %v2595
        %v2786 = vpop.permute.xlu0 %2785
        %2789 = vset.pattern.permute.xlu0 0
        %2790 = vperm.xlu0 %2789, %v2596
        %v2791 = vpop.permute.xlu0 %2790
        %2794 = vset.pattern.permute.xlu0 0
        %2795 = vperm.xlu0 %2794, %v2597
        %v2796 = vpop.permute.xlu0 %2795
        %2799 = vset.pattern.permute.xlu0 0
        %2800 = vperm.xlu0 %2799, %v2598
        %v2801 = vpop.permute.xlu0 %2800
        %2804 = vset.pattern.permute.xlu0 0
        %2805 = vperm.xlu0 %2804, %v2599
        %v2806 = vpop.permute.xlu0 %2805
        %2809 = vset.pattern.permute.xlu0 0
        %2810 = vperm.xlu0 %2809, %v2600
        %v2811 = vpop.permute.xlu0 %2810
        %2814 = vset.pattern.permute.xlu0 0
        %2815 = vperm.xlu0 %2814, %v2601
        %v2816 = vpop.permute.xlu0 %2815
        %2819 = vset.pattern.permute.xlu0 0
        %2820 = vperm.xlu0 %2819, %v2602
        %v2821 = vpop.permute.xlu0 %2820
        %2824 = vset.pattern.permute.xlu0 0
        %2825 = vperm.xlu0 %2824, %v2603
        %v2826 = vpop.permute.xlu0 %2825
        %2829 = vset.pattern.permute.xlu0 0
        %2830 = vperm.xlu0 %2829, %v2604
        %v2831 = vpop.permute.xlu0 %2830
        %2834 = vset.pattern.permute.xlu0 0
        %2835 = vperm.xlu0 %2834, %v2605
        %v2836 = vpop.permute.xlu0 %2835
        %2839 = vset.pattern.permute.xlu0 0
        %2840 = vperm.xlu0 %2839, %v2606
        %v2841 = vpop.permute.xlu0 %2840
        %2844 = vset.pattern.permute.xlu0 0
        %2845 = vperm.xlu0 %2844, %v2607
        %v2846 = vpop.permute.xlu0 %2845
        %2849 = vset.pattern.permute.xlu0 0
        %2850 = vperm.xlu0 %2849, %v2608
        %v2851 = vpop.permute.xlu0 %2850
        %2854 = vset.pattern.permute.xlu0 0
        %2855 = vperm.xlu0 %2854, %v2609
        %v2856 = vpop.permute.xlu0 %2855
        %2859 = vset.pattern.permute.xlu0 0
        %2860 = vperm.xlu0 %2859, %v2610
        %v2861 = vpop.permute.xlu0 %2860
        %2864 = vset.pattern.permute.xlu0 0
        %2865 = vperm.xlu0 %2864, %v2611
        %v2866 = vpop.permute.xlu0 %2865
        %2869 = vset.pattern.permute.xlu0 0
        %2870 = vperm.xlu0 %2869, %v2612
        %v2871 = vpop.permute.xlu0 %2870
        %2874 = vset.pattern.permute.xlu0 0
        %2875 = vperm.xlu0 %2874, %v2613
        %v2876 = vpop.permute.xlu0 %2875
        %2879 = vset.pattern.permute.xlu0 0
        %2880 = vperm.xlu0 %2879, %v2614
        %v2881 = vpop.permute.xlu0 %2880
        %2884 = vset.pattern.permute.xlu0 0
        %2885 = vperm.xlu0 %2884, %v2615
        %v2886 = vpop.permute.xlu0 %2885
        %2889 = vset.pattern.permute.xlu0 0
        %2890 = vperm.xlu0 %2889, %v2616
        %v2891 = vpop.permute.xlu0 %2890
        %2894 = vset.pattern.permute.xlu0 0
        %2895 = vperm.xlu0 %2894, %v2617
        %v2896 = vpop.permute.xlu0 %2895
        %2899 = vset.pattern.permute.xlu0 0
        %2900 = vperm.xlu0 %2899, %v2618
        %v2901 = vpop.permute.xlu0 %2900
        %2904 = vset.pattern.permute.xlu0 0
        %2905 = vperm.xlu0 %2904, %v2619
        %v2906 = vpop.permute.xlu0 %2905
        %2909 = vset.pattern.permute.xlu0 0
        %2910 = vperm.xlu0 %2909, %v2620
        %v2911 = vpop.permute.xlu0 %2910
        %2914 = vset.pattern.permute.xlu0 0
        %2915 = vperm.xlu0 %2914, %v2621
        %v2916 = vpop.permute.xlu0 %2915
        %2919 = vset.pattern.permute.xlu0 0
        %2920 = vperm.xlu0 %2919, %v2622
        %v2921 = vpop.permute.xlu0 %2920
        %2924 = vset.pattern.permute.xlu0 0
        %2925 = vperm.xlu0 %2924, %v2623
        %v2926 = vpop.permute.xlu0 %2925
        %2929 = vset.pattern.permute.xlu0 0
        %2930 = vperm.xlu0 %2929, %v2624
        %v2931 = vpop.permute.xlu0 %2930
        %2934 = vset.pattern.permute.xlu0 0
        %2935 = vperm.xlu0 %2934, %v2625
        %v2936 = vpop.permute.xlu0 %2935
        %2939 = vset.pattern.permute.xlu0 0
        %2940 = vperm.xlu0 %2939, %v2626
        %v2941 = vpop.permute.xlu0 %2940
        %2944 = vset.pattern.permute.xlu0 0
        %2945 = vperm.xlu0 %2944, %v2627
        %v2946 = vpop.permute.xlu0 %2945
        %v3076 = vunpack.c.l.b16 %v2404
        %v3077 = vunpack.c.h.b16 %v2404
        %v3078 = vunpack.c.l.b16 %v2405
        %v3079 = vunpack.c.h.b16 %v2405
        %v3080 = vunpack.c.l.b16 %v2406
        %v3081 = vunpack.c.h.b16 %v2406
        %v3082 = vunpack.c.l.b16 %v2407
        %v3083 = vunpack.c.h.b16 %v2407
        %v3084 = vunpack.c.l.b16 %v2408
        %v3085 = vunpack.c.h.b16 %v2408
        %v3086 = vunpack.c.l.b16 %v2409
        %v3087 = vunpack.c.h.b16 %v2409
        %v3088 = vunpack.c.l.b16 %v2410
        %v3089 = vunpack.c.h.b16 %v2410
        %v3090 = vunpack.c.l.b16 %v2411
        %v3091 = vunpack.c.h.b16 %v2411
        %v3092 = vunpack.c.l.b16 %v2412
        %v3093 = vunpack.c.h.b16 %v2412
        %v3094 = vunpack.c.l.b16 %v2413
        %v3095 = vunpack.c.h.b16 %v2413
        %v3096 = vunpack.c.l.b16 %v2414
        %v3097 = vunpack.c.h.b16 %v2414
        %v3098 = vunpack.c.l.b16 %v2415
        %v3099 = vunpack.c.h.b16 %v2415
        %v3100 = vunpack.c.l.b16 %v2416
        %v3101 = vunpack.c.h.b16 %v2416
        %v3102 = vunpack.c.l.b16 %v2417
        %v3103 = vunpack.c.h.b16 %v2417
        %v3104 = vunpack.c.l.b16 %v2418
        %v3105 = vunpack.c.h.b16 %v2418
        %v3106 = vunpack.c.l.b16 %v2419
        %v3107 = vunpack.c.h.b16 %v2419
        %v3108 = vunpack.c.l.b16 %v2420
        %v3109 = vunpack.c.h.b16 %v2420
        %v3110 = vunpack.c.l.b16 %v2421
        %v3111 = vunpack.c.h.b16 %v2421
        %v3112 = vunpack.c.l.b16 %v2422
        %v3113 = vunpack.c.h.b16 %v2422
        %v3114 = vunpack.c.l.b16 %v2423
        %v3115 = vunpack.c.h.b16 %v2423
        %v3116 = vunpack.c.l.b16 %v2424
        %v3117 = vunpack.c.h.b16 %v2424
        %v3118 = vunpack.c.l.b16 %v2425
        %v3119 = vunpack.c.h.b16 %v2425
        %v3120 = vunpack.c.l.b16 %v2426
        %v3121 = vunpack.c.h.b16 %v2426
        %v3122 = vunpack.c.l.b16 %v2427
        %v3123 = vunpack.c.h.b16 %v2427
        %v3124 = vunpack.c.l.b16 %v2428
        %v3125 = vunpack.c.h.b16 %v2428
        %v3126 = vunpack.c.l.b16 %v2429
        %v3127 = vunpack.c.h.b16 %v2429
        %v3128 = vunpack.c.l.b16 %v2430
        %v3129 = vunpack.c.h.b16 %v2430
        %v3130 = vunpack.c.l.b16 %v2431
        %v3131 = vunpack.c.h.b16 %v2431
        %v3132 = vunpack.c.l.b16 %v2432
        %v3133 = vunpack.c.h.b16 %v2432
        %v3134 = vunpack.c.l.b16 %v2433
        %v3135 = vunpack.c.h.b16 %v2433
        %v3136 = vunpack.c.l.b16 %v2434
        %v3137 = vunpack.c.h.b16 %v2434
        %v3138 = vunpack.c.l.b16 %v2435
        %v3139 = vunpack.c.h.b16 %v2435
        %v3140 = vunpack.c.l.b16 %v2436
        %v3141 = vunpack.c.h.b16 %v2436
        %v3142 = vunpack.c.l.b16 %v2437
        %v3143 = vunpack.c.h.b16 %v2437
        %v3144 = vunpack.c.l.b16 %v2438
        %v3145 = vunpack.c.h.b16 %v2438
        %v3146 = vunpack.c.l.b16 %v2439
        %v3147 = vunpack.c.h.b16 %v2439
        %v3148 = vunpack.c.l.b16 %v2440
        %v3149 = vunpack.c.h.b16 %v2440
        %v3150 = vunpack.c.l.b16 %v2441
        %v3151 = vunpack.c.h.b16 %v2441
        %v3152 = vunpack.c.l.b16 %v2442
        %v3153 = vunpack.c.h.b16 %v2442
        %v3154 = vunpack.c.l.b16 %v2443
        %v3155 = vunpack.c.h.b16 %v2443
        %v3156 = vunpack.c.l.b16 %v2444
        %v3157 = vunpack.c.h.b16 %v2444
        %v3158 = vunpack.c.l.b16 %v2445
        %v3159 = vunpack.c.h.b16 %v2445
        %v3160 = vunpack.c.l.b16 %v2446
        %v3161 = vunpack.c.h.b16 %v2446
        %v3162 = vunpack.c.l.b16 %v2447
        %v3163 = vunpack.c.h.b16 %v2447
        %v3164 = vunpack.c.l.b16 %v2448
        %v3165 = vunpack.c.h.b16 %v2448
        %v3166 = vunpack.c.l.b16 %v2449
        %v3167 = vunpack.c.h.b16 %v2449
        %v3168 = vunpack.c.l.b16 %v2450
        %v3169 = vunpack.c.h.b16 %v2450
        %v3170 = vunpack.c.l.b16 %v2451
        %v3171 = vunpack.c.h.b16 %v2451
        %v3172 = vunpack.c.l.b16 %v2452
        %v3173 = vunpack.c.h.b16 %v2452
        %v3174 = vunpack.c.l.b16 %v2453
        %v3175 = vunpack.c.h.b16 %v2453
        %v3176 = vunpack.c.l.b16 %v2454
        %v3177 = vunpack.c.h.b16 %v2454
        %v3178 = vunpack.c.l.b16 %v2455
        %v3179 = vunpack.c.h.b16 %v2455
        %v3180 = vunpack.c.l.b16 %v2456
        %v3181 = vunpack.c.h.b16 %v2456
        %v3182 = vunpack.c.l.b16 %v2457
        %v3183 = vunpack.c.h.b16 %v2457
        %v3184 = vunpack.c.l.b16 %v2458
        %v3185 = vunpack.c.h.b16 %v2458
        %v3186 = vunpack.c.l.b16 %v2459
        %v3187 = vunpack.c.h.b16 %v2459
        %v3188 = vunpack.c.l.b16 %v2460
        %v3189 = vunpack.c.h.b16 %v2460
        %v3190 = vunpack.c.l.b16 %v2461
        %v3191 = vunpack.c.h.b16 %v2461
        %v3192 = vunpack.c.l.b16 %v2462
        %v3193 = vunpack.c.h.b16 %v2462
        %v3194 = vunpack.c.l.b16 %v2463
        %v3195 = vunpack.c.h.b16 %v2463
        %v3196 = vunpack.c.l.b16 %v2464
        %v3197 = vunpack.c.h.b16 %v2464
        %v3198 = vunpack.c.l.b16 %v2465
        %v3199 = vunpack.c.h.b16 %v2465
        %v3200 = vunpack.c.l.b16 %v2466
        %v3201 = vunpack.c.h.b16 %v2466
        %v3202 = vunpack.c.l.b16 %v2467
        %v3203 = vunpack.c.h.b16 %v2467
        %v3204 = vunpack.c.l.b16 %v2468
        %v3205 = vunpack.c.h.b16 %v2468
        %v3206 = vunpack.c.l.b16 %v2469
        %v3207 = vunpack.c.h.b16 %v2469
        %v3208 = vunpack.c.l.b16 %v2470
        %v3209 = vunpack.c.h.b16 %v2470
        %v3210 = vunpack.c.l.b16 %v2471
        %v3211 = vunpack.c.h.b16 %v2471
        %v3212 = vunpack.c.l.b16 %v2472
        %v3213 = vunpack.c.h.b16 %v2472
        %v3214 = vunpack.c.l.b16 %v2473
        %v3215 = vunpack.c.h.b16 %v2473
        %v3216 = vunpack.c.l.b16 %v2474
        %v3217 = vunpack.c.h.b16 %v2474
        %v3218 = vunpack.c.l.b16 %v2475
        %v3219 = vunpack.c.h.b16 %v2475
        %v3220 = vunpack.c.l.b16 %v2476
        %v3221 = vunpack.c.h.b16 %v2476
        %v3222 = vunpack.c.l.b16 %v2477
        %v3223 = vunpack.c.h.b16 %v2477
        %v3224 = vunpack.c.l.b16 %v2478
        %v3225 = vunpack.c.h.b16 %v2478
        %v3226 = vunpack.c.l.b16 %v2479
        %v3227 = vunpack.c.h.b16 %v2479
        %v3228 = vunpack.c.l.b16 %v2480
        %v3229 = vunpack.c.h.b16 %v2480
        %v3230 = vunpack.c.l.b16 %v2481
        %v3231 = vunpack.c.h.b16 %v2481
        %v3232 = vunpack.c.l.b16 %v2482
        %v3233 = vunpack.c.h.b16 %v2482
        %v3234 = vunpack.c.l.b16 %v2483
        %v3235 = vunpack.c.h.b16 %v2483
        %v3236 = vunpack.c.l.b16 %v2484
        %v3237 = vunpack.c.h.b16 %v2484
        %v3238 = vunpack.c.l.b16 %v2485
        %v3239 = vunpack.c.h.b16 %v2485
        %v3240 = vunpack.c.l.b16 %v2486
        %v3241 = vunpack.c.h.b16 %v2486
        %v3242 = vunpack.c.l.b16 %v2487
        %v3243 = vunpack.c.h.b16 %v2487
        %v3244 = vunpack.c.l.b16 %v2488
        %v3245 = vunpack.c.h.b16 %v2488
        %v3246 = vunpack.c.l.b16 %v2489
        %v3247 = vunpack.c.h.b16 %v2489
        %v3248 = vunpack.c.l.b16 %v2490
        %v3249 = vunpack.c.h.b16 %v2490
        %v3250 = vunpack.c.l.b16 %v2491
        %v3251 = vunpack.c.h.b16 %v2491
        %v3252 = vunpack.c.l.b16 %v2492
        %v3253 = vunpack.c.h.b16 %v2492
        %v3254 = vunpack.c.l.b16 %v2493
        %v3255 = vunpack.c.h.b16 %v2493
        %v3256 = vunpack.c.l.b16 %v2494
        %v3257 = vunpack.c.h.b16 %v2494
        %v3258 = vunpack.c.l.b16 %v2495
        %v3259 = vunpack.c.h.b16 %v2495
        %v3260 = vunpack.c.l.b16 %v2496
        %v3261 = vunpack.c.h.b16 %v2496
        %v3262 = vunpack.c.l.b16 %v2497
        %v3263 = vunpack.c.h.b16 %v2497
        %v3264 = vunpack.c.l.b16 %v2498
        %v3265 = vunpack.c.h.b16 %v2498
        %v3266 = vunpack.c.l.b16 %v2499
        %v3267 = vunpack.c.h.b16 %v2499
        %v3268 = vunpack.c.l.b16 %v2500
        %v3269 = vunpack.c.h.b16 %v2500
        %v3270 = vunpack.c.l.b16 %v2501
        %v3271 = vunpack.c.h.b16 %v2501
        %v3272 = vunpack.c.l.b16 %v2502
        %v3273 = vunpack.c.h.b16 %v2502
        %v3274 = vunpack.c.l.b16 %v2503
        %v3275 = vunpack.c.h.b16 %v2503
        %v3276 = vunpack.c.l.b16 %v2504
        %v3277 = vunpack.c.h.b16 %v2504
        %v3278 = vunpack.c.l.b16 %v2505
        %v3279 = vunpack.c.h.b16 %v2505
        %v3280 = vunpack.c.l.b16 %v2506
        %v3281 = vunpack.c.h.b16 %v2506
        %v3282 = vunpack.c.l.b16 %v2507
        %v3283 = vunpack.c.h.b16 %v2507
        %v3284 = vunpack.c.l.b16 %v2508
        %v3285 = vunpack.c.h.b16 %v2508
        %v3286 = vunpack.c.l.b16 %v2509
        %v3287 = vunpack.c.h.b16 %v2509
        %v3288 = vunpack.c.l.b16 %v2510
        %v3289 = vunpack.c.h.b16 %v2510
        %v3290 = vunpack.c.l.b16 %v2511
        %v3291 = vunpack.c.h.b16 %v2511
        %v3292 = vunpack.c.l.b16 %v2512
        %v3293 = vunpack.c.h.b16 %v2512
        %v3294 = vunpack.c.l.b16 %v2513
        %v3295 = vunpack.c.h.b16 %v2513
        %v3296 = vunpack.c.l.b16 %v2514
        %v3297 = vunpack.c.h.b16 %v2514
        %v3298 = vunpack.c.l.b16 %v2515
        %v3299 = vunpack.c.h.b16 %v2515
        %v3300 = vunpack.c.l.b16 %v2516
        %v3301 = vunpack.c.h.b16 %v2516
        %v3302 = vunpack.c.l.b16 %v2517
        %v3303 = vunpack.c.h.b16 %v2517
        %v3304 = vunpack.c.l.b16 %v2518
        %v3305 = vunpack.c.h.b16 %v2518
        %v3306 = vunpack.c.l.b16 %v2519
        %v3307 = vunpack.c.h.b16 %v2519
        %v3308 = vunpack.c.l.b16 %v2520
        %v3309 = vunpack.c.h.b16 %v2520
        %v3310 = vunpack.c.l.b16 %v2521
        %v3311 = vunpack.c.h.b16 %v2521
        %v3312 = vunpack.c.l.b16 %v2522
        %v3313 = vunpack.c.h.b16 %v2522
        %v3314 = vunpack.c.l.b16 %v2523
        %v3315 = vunpack.c.h.b16 %v2523
        %v3316 = vunpack.c.l.b16 %v2524
        %v3317 = vunpack.c.h.b16 %v2524
        %v3318 = vunpack.c.l.b16 %v2525
        %v3319 = vunpack.c.h.b16 %v2525
        %v3320 = vunpack.c.l.b16 %v2526
        %v3321 = vunpack.c.h.b16 %v2526
        %v3322 = vunpack.c.l.b16 %v2527
        %v3323 = vunpack.c.h.b16 %v2527
        %v3324 = vunpack.c.l.b16 %v2528
        %v3325 = vunpack.c.h.b16 %v2528
        %v3326 = vunpack.c.l.b16 %v2529
        %v3327 = vunpack.c.h.b16 %v2529
        %v3328 = vunpack.c.l.b16 %v2530
        %v3329 = vunpack.c.h.b16 %v2530
        %v3330 = vunpack.c.l.b16 %v2531
        %v3331 = vunpack.c.h.b16 %v2531
        %v3332 = vpack.c.b16 %v3080, %v3076
        %v3333 = vpack.c.b16 %v3081, %v3077
        %v3334 = vpack.c.b16 %v3082, %v3078
        %v3335 = vpack.c.b16 %v3083, %v3079
        %v3336 = vpack.c.b16 %v3088, %v3084
        %v3337 = vpack.c.b16 %v3089, %v3085
        %v3338 = vpack.c.b16 %v3090, %v3086
        %v3339 = vpack.c.b16 %v3091, %v3087
        %v3340 = vpack.c.b16 %v3096, %v3092
        %v3341 = vpack.c.b16 %v3097, %v3093
        %v3342 = vpack.c.b16 %v3098, %v3094
        %v3343 = vpack.c.b16 %v3099, %v3095
        %v3344 = vpack.c.b16 %v3104, %v3100
        %v3345 = vpack.c.b16 %v3105, %v3101
        %v3346 = vpack.c.b16 %v3106, %v3102
        %v3347 = vpack.c.b16 %v3107, %v3103
        %v3348 = vpack.c.b16 %v3112, %v3108
        %v3349 = vpack.c.b16 %v3113, %v3109
        %v3350 = vpack.c.b16 %v3114, %v3110
        %v3351 = vpack.c.b16 %v3115, %v3111
        %v3352 = vpack.c.b16 %v3120, %v3116
        %v3353 = vpack.c.b16 %v3121, %v3117
        %v3354 = vpack.c.b16 %v3122, %v3118
        %v3355 = vpack.c.b16 %v3123, %v3119
        %v3356 = vpack.c.b16 %v3128, %v3124
        %v3357 = vpack.c.b16 %v3129, %v3125
        %v3358 = vpack.c.b16 %v3130, %v3126
        %v3359 = vpack.c.b16 %v3131, %v3127
        %v3360 = vpack.c.b16 %v3136, %v3132
        %v3361 = vpack.c.b16 %v3137, %v3133
        %v3362 = vpack.c.b16 %v3138, %v3134
        %v3363 = vpack.c.b16 %v3139, %v3135
        %v3364 = vpack.c.b16 %v3144, %v3140
        %v3365 = vpack.c.b16 %v3145, %v3141
        %v3366 = vpack.c.b16 %v3146, %v3142
        %v3367 = vpack.c.b16 %v3147, %v3143
        %v3368 = vpack.c.b16 %v3152, %v3148
        %v3369 = vpack.c.b16 %v3153, %v3149
        %v3370 = vpack.c.b16 %v3154, %v3150
        %v3371 = vpack.c.b16 %v3155, %v3151
        %v3372 = vpack.c.b16 %v3160, %v3156
        %v3373 = vpack.c.b16 %v3161, %v3157
        %v3374 = vpack.c.b16 %v3162, %v3158
        %v3375 = vpack.c.b16 %v3163, %v3159
        %v3376 = vpack.c.b16 %v3168, %v3164
        %v3377 = vpack.c.b16 %v3169, %v3165
        %v3378 = vpack.c.b16 %v3170, %v3166
        %v3379 = vpack.c.b16 %v3171, %v3167
        %v3380 = vpack.c.b16 %v3176, %v3172
        %v3381 = vpack.c.b16 %v3177, %v3173
        %v3382 = vpack.c.b16 %v3178, %v3174
        %v3383 = vpack.c.b16 %v3179, %v3175
        %v3384 = vpack.c.b16 %v3184, %v3180
        %v3385 = vpack.c.b16 %v3185, %v3181
        %v3386 = vpack.c.b16 %v3186, %v3182
        %v3387 = vpack.c.b16 %v3187, %v3183
        %v3388 = vpack.c.b16 %v3192, %v3188
        %v3389 = vpack.c.b16 %v3193, %v3189
        %v3390 = vpack.c.b16 %v3194, %v3190
        %v3391 = vpack.c.b16 %v3195, %v3191
        %v3392 = vpack.c.b16 %v3200, %v3196
        %v3393 = vpack.c.b16 %v3201, %v3197
        %v3394 = vpack.c.b16 %v3202, %v3198
        %v3395 = vpack.c.b16 %v3203, %v3199
        %v3396 = vpack.c.b16 %v3208, %v3204
        %v3397 = vpack.c.b16 %v3209, %v3205
        %v3398 = vpack.c.b16 %v3210, %v3206
        %v3399 = vpack.c.b16 %v3211, %v3207
        %v3400 = vpack.c.b16 %v3216, %v3212
        %v3401 = vpack.c.b16 %v3217, %v3213
        %v3402 = vpack.c.b16 %v3218, %v3214
        %v3403 = vpack.c.b16 %v3219, %v3215
        %v3404 = vpack.c.b16 %v3224, %v3220
        %v3405 = vpack.c.b16 %v3225, %v3221
        %v3406 = vpack.c.b16 %v3226, %v3222
        %v3407 = vpack.c.b16 %v3227, %v3223
        %v3408 = vpack.c.b16 %v3232, %v3228
        %v3409 = vpack.c.b16 %v3233, %v3229
        %v3410 = vpack.c.b16 %v3234, %v3230
        %v3411 = vpack.c.b16 %v3235, %v3231
        %v3412 = vpack.c.b16 %v3240, %v3236
        %v3413 = vpack.c.b16 %v3241, %v3237
        %v3414 = vpack.c.b16 %v3242, %v3238
        %v3415 = vpack.c.b16 %v3243, %v3239
        %v3416 = vpack.c.b16 %v3248, %v3244
        %v3417 = vpack.c.b16 %v3249, %v3245
        %v3418 = vpack.c.b16 %v3250, %v3246
        %v3419 = vpack.c.b16 %v3251, %v3247
        %v3420 = vpack.c.b16 %v3256, %v3252
        %v3421 = vpack.c.b16 %v3257, %v3253
        %v3422 = vpack.c.b16 %v3258, %v3254
        %v3423 = vpack.c.b16 %v3259, %v3255
        %v3424 = vpack.c.b16 %v3264, %v3260
        %v3425 = vpack.c.b16 %v3265, %v3261
        %v3426 = vpack.c.b16 %v3266, %v3262
        %v3427 = vpack.c.b16 %v3267, %v3263
        %v3428 = vpack.c.b16 %v3272, %v3268
        %v3429 = vpack.c.b16 %v3273, %v3269
        %v3430 = vpack.c.b16 %v3274, %v3270
        %v3431 = vpack.c.b16 %v3275, %v3271
        %v3432 = vpack.c.b16 %v3280, %v3276
        %v3433 = vpack.c.b16 %v3281, %v3277
        %v3434 = vpack.c.b16 %v3282, %v3278
        %v3435 = vpack.c.b16 %v3283, %v3279
        %v3436 = vpack.c.b16 %v3288, %v3284
        %v3437 = vpack.c.b16 %v3289, %v3285
        %v3438 = vpack.c.b16 %v3290, %v3286
        %v3439 = vpack.c.b16 %v3291, %v3287
        %v3440 = vpack.c.b16 %v3296, %v3292
        %v3441 = vpack.c.b16 %v3297, %v3293
        %v3442 = vpack.c.b16 %v3298, %v3294
        %v3443 = vpack.c.b16 %v3299, %v3295
        %v3444 = vpack.c.b16 %v3304, %v3300
        %v3445 = vpack.c.b16 %v3305, %v3301
        %v3446 = vpack.c.b16 %v3306, %v3302
        %v3447 = vpack.c.b16 %v3307, %v3303
        %v3448 = vpack.c.b16 %v3312, %v3308
        %v3449 = vpack.c.b16 %v3313, %v3309
        %v3450 = vpack.c.b16 %v3314, %v3310
        %v3451 = vpack.c.b16 %v3315, %v3311
        %v3452 = vpack.c.b16 %v3320, %v3316
        %v3453 = vpack.c.b16 %v3321, %v3317
        %v3454 = vpack.c.b16 %v3322, %v3318
        %v3455 = vpack.c.b16 %v3323, %v3319
        %v3456 = vpack.c.b16 %v3328, %v3324
        %v3457 = vpack.c.b16 %v3329, %v3325
        %v3458 = vpack.c.b16 %v3330, %v3326
        %v3459 = vpack.c.b16 %v3331, %v3327
        %3588 = vmatprep.subr.bf16.mxu0 0
        %3589 = vmatpush1.bf16.msra.mxu0 %v2532
        %3590 = vmatprep.subr.bf16.mxu0 0
        %3591 = vmatpush1.bf16.msra.mxu0 %v2533
        %3592 = vmatprep.subr.bf16.mxu0 0
        %3593 = vmatpush1.bf16.msra.mxu0 %v2534
        %3594 = vmatprep.subr.bf16.mxu0 0
        %3595 = vmatpush1.bf16.msra.mxu0 %v2535
        %3596 = vmatprep.subr.bf16.mxu0 0
        %3597 = vmatpush1.bf16.msra.mxu0 %v2536
        %3598 = vmatprep.subr.bf16.mxu0 0
        %3599 = vmatpush1.bf16.msra.mxu0 %v2537
        %3600 = vmatprep.subr.bf16.mxu0 0
        %3601 = vmatpush1.bf16.msra.mxu0 %v2538
        %3602 = vmatprep.subr.bf16.mxu0 0
        %3603 = vmatpush1.bf16.msra.mxu0 %v2539
        %3604 = vmatprep.subr.bf16.mxu0 0
        %3605 = vmatpush1.bf16.msra.mxu0 %v2540
        %3606 = vmatprep.subr.bf16.mxu0 0
        %3607 = vmatpush1.bf16.msra.mxu0 %v2541
        %3608 = vmatprep.subr.bf16.mxu0 0
        %3609 = vmatpush1.bf16.msra.mxu0 %v2542
        %3610 = vmatprep.subr.bf16.mxu0 0
        %3611 = vmatpush1.bf16.msra.mxu0 %v2543
        %3612 = vmatprep.subr.bf16.mxu0 0
        %3613 = vmatpush1.bf16.msra.mxu0 %v2544
        %3614 = vmatprep.subr.bf16.mxu0 0
        %3615 = vmatpush1.bf16.msra.mxu0 %v2545
        %3616 = vmatprep.subr.bf16.mxu0 0
        %3617 = vmatpush1.bf16.msra.mxu0 %v2546
        %3618 = vmatprep.subr.bf16.mxu0 0
        %3619 = vmatpush1.bf16.msra.mxu0 %v2547
        %3620 = vmatprep.mubr.bf16.mxu0 %v3333
        %3621 = vmatmul.mubr.bf16.gmra.mrb[0].mxu0 %v3332
        %v3622 = vpop.f32.mrb[0].mxu0
        %v3623 = vadd.f32 %v2631, %v3622
        %v3624 = vpop.f32.mrb[0].mxu0
        %v3625 = vpop.f32.mrb[0].mxu0
        %v3626 = vadd.f32 %v2636, %v3625
        %v3627 = vpop.f32.mrb[0].mxu0
        %3628 = vmatprep.mubr.bf16.mxu0 %v3337
        %3629 = vmatmul.mubr.bf16.gmra.mrb[0].mxu0 %v3336
        %v3630 = vpop.f32.mrb[0].mxu0
        %v3631 = vadd.f32 %v2641, %v3630
        %v3632 = vpop.f32.mrb[0].mxu0
        %v3633 = vpop.f32.mrb[0].mxu0
        %v3634 = vadd.f32 %v2646, %v3633
        %v3635 = vpop.f32.mrb[0].mxu0
        %3636 = vmatprep.mubr.bf16.mxu0 %v3341
        %3637 = vmatmul.mubr.bf16.gmra.mrb[0].mxu0 %v3340
        %v3638 = vpop.f32.mrb[0].mxu0
        %v3639 = vadd.f32 %v2651, %v3638
        %v3640 = vpop.f32.mrb[0].mxu0
        %v3641 = vpop.f32.mrb[0].mxu0
        %v3642 = vadd.f32 %v2656, %v3641
        %v3643 = vpop.f32.mrb[0].mxu0
        %3644 = vmatprep.mubr.bf16.mxu0 %v3345
        %3645 = vmatmul.mubr.bf16.gmra.mrb[0].mxu0 %v3344
        %v3646 = vpop.f32.mrb[0].mxu0
        %v3647 = vadd.f32 %v2661, %v3646
        %v3648 = vpop.f32.mrb[0].mxu0
        %v3649 = vpop.f32.mrb[0].mxu0
        %v3650 = vadd.f32 %v2666, %v3649
        %v3651 = vpop.f32.mrb[0].mxu0
        %3652 = vmatprep.mubr.bf16.mxu0 %v3349
        %3653 = vmatmul.mubr.bf16.gmra.mrb[0].mxu0 %v3348
        %v3654 = vpop.f32.mrb[0].mxu0
        %v3655 = vadd.f32 %v2671, %v3654
        %v3656 = vpop.f32.mrb[0].mxu0
        %v3657 = vpop.f32.mrb[0].mxu0
        %v3658 = vadd.f32 %v2676, %v3657
        %v3659 = vpop.f32.mrb[0].mxu0
        %3660 = vmatprep.mubr.bf16.mxu0 %v3353
        %3661 = vmatmul.mubr.bf16.gmra.mrb[0].mxu0 %v3352
        %v3662 = vpop.f32.mrb[0].mxu0
        %v3663 = vadd.f32 %v2681, %v3662
        %v3664 = vpop.f32.mrb[0].mxu0
        %v3665 = vpop.f32.mrb[0].mxu0
        %v3666 = vadd.f32 %v2686, %v3665
        %v3667 = vpop.f32.mrb[0].mxu0
        %3668 = vmatprep.mubr.bf16.mxu0 %v3357
        %3669 = vmatmul.mubr.bf16.gmra.mrb[0].mxu0 %v3356
        %v3670 = vpop.f32.mrb[0].mxu0
        %v3671 = vadd.f32 %v2691, %v3670
        %v3672 = vpop.f32.mrb[0].mxu0
        %v3673 = vpop.f32.mrb[0].mxu0
        %v3674 = vadd.f32 %v2696, %v3673
        %v3675 = vpop.f32.mrb[0].mxu0
        %3676 = vmatprep.mubr.bf16.mxu0 %v3361
        %3677 = vmatmul.mubr.bf16.gmra.mrb[0].mxu0 %v3360
        %v3678 = vpop.f32.mrb[0].mxu0
        %v3679 = vadd.f32 %v2701, %v3678
        %v3680 = vpop.f32.mrb[0].mxu0
        %v3681 = vpop.f32.mrb[0].mxu0
        %v3682 = vadd.f32 %v2706, %v3681
        %v3683 = vpop.f32.mrb[0].mxu0
        %3684 = vmatprep.mubr.bf16.mxu0 %v3365
        %3685 = vmatmul.mubr.bf16.gmra.mrb[0].mxu0 %v3364
        %v3686 = vpop.f32.mrb[0].mxu0
        %v3687 = vadd.f32 %v2711, %v3686
        %v3688 = vpop.f32.mrb[0].mxu0
        %v3689 = vpop.f32.mrb[0].mxu0
        %v3690 = vadd.f32 %v2716, %v3689
        %v3691 = vpop.f32.mrb[0].mxu0
        %3692 = vmatprep.mubr.bf16.mxu0 %v3369
        %3693 = vmatmul.mubr.bf16.gmra.mrb[0].mxu0 %v3368
        %v3694 = vpop.f32.mrb[0].mxu0
        %v3695 = vadd.f32 %v2721, %v3694
        %v3696 = vpop.f32.mrb[0].mxu0
        %v3697 = vpop.f32.mrb[0].mxu0
        %v3698 = vadd.f32 %v2726, %v3697
        %v3699 = vpop.f32.mrb[0].mxu0
        %3700 = vmatprep.mubr.bf16.mxu0 %v3373
        %3701 = vmatmul.mubr.bf16.gmra.mrb[0].mxu0 %v3372
        %v3702 = vpop.f32.mrb[0].mxu0
        %v3703 = vadd.f32 %v2731, %v3702
        %v3704 = vpop.f32.mrb[0].mxu0
        %v3705 = vpop.f32.mrb[0].mxu0
        %v3706 = vadd.f32 %v2736, %v3705
        %v3707 = vpop.f32.mrb[0].mxu0
        %3708 = vmatprep.mubr.bf16.mxu0 %v3377
        %3709 = vmatmul.mubr.bf16.gmra.mrb[0].mxu0 %v3376
        %v3710 = vpop.f32.mrb[0].mxu0
        %v3711 = vadd.f32 %v2741, %v3710
        %v3712 = vpop.f32.mrb[0].mxu0
        %v3713 = vpop.f32.mrb[0].mxu0
        %v3714 = vadd.f32 %v2746, %v3713
        %v3715 = vpop.f32.mrb[0].mxu0
        %3716 = vmatprep.mubr.bf16.mxu0 %v3381
        %3717 = vmatmul.mubr.bf16.gmra.mrb[0].mxu0 %v3380
        %v3718 = vpop.f32.mrb[0].mxu0
        %v3719 = vadd.f32 %v2751, %v3718
        %v3720 = vpop.f32.mrb[0].mxu0
        %v3721 = vpop.f32.mrb[0].mxu0
        %v3722 = vadd.f32 %v2756, %v3721
        %v3723 = vpop.f32.mrb[0].mxu0
        %3724 = vmatprep.mubr.bf16.mxu0 %v3385
        %3725 = vmatmul.mubr.bf16.gmra.mrb[0].mxu0 %v3384
        %v3726 = vpop.f32.mrb[0].mxu0
        %v3727 = vadd.f32 %v2761, %v3726
        %v3728 = vpop.f32.mrb[0].mxu0
        %v3729 = vpop.f32.mrb[0].mxu0
        %v3730 = vadd.f32 %v2766, %v3729
        %v3731 = vpop.f32.mrb[0].mxu0
        %3732 = vmatprep.mubr.bf16.mxu0 %v3389
        %3733 = vmatmul.mubr.bf16.gmra.mrb[0].mxu0 %v3388
        %v3734 = vpop.f32.mrb[0].mxu0
        %v3735 = vadd.f32 %v2771, %v3734
        %v3736 = vpop.f32.mrb[0].mxu0
        %v3737 = vpop.f32.mrb[0].mxu0
        %v3738 = vadd.f32 %v2776, %v3737
        %v3739 = vpop.f32.mrb[0].mxu0
        %3740 = vmatprep.mubr.bf16.mxu0 %v3393
        %3741 = vmatmul.mubr.bf16.gmra.mrb[0].mxu0 %v3392
        %v3742 = vpop.f32.mrb[0].mxu0
        %v3743 = vadd.f32 %v2781, %v3742
        %v3744 = vpop.f32.mrb[0].mxu0
        %v3745 = vpop.f32.mrb[0].mxu0
        %v3746 = vadd.f32 %v2786, %v3745
        %v3747 = vpop.f32.mrb[0].mxu0
        %3748 = vmatprep.mubr.bf16.mxu0 %v3397
        %3749 = vmatmul.mubr.bf16.gmra.mrb[0].mxu0 %v3396
        %v3750 = vpop.f32.mrb[0].mxu0
        %v3751 = vadd.f32 %v2791, %v3750
        %v3752 = vpop.f32.mrb[0].mxu0
        %v3753 = vpop.f32.mrb[0].mxu0
        %v3754 = vadd.f32 %v2796, %v3753
        %v3755 = vpop.f32.mrb[0].mxu0
        %3756 = vmatprep.mubr.bf16.mxu0 %v3401
        %3757 = vmatmul.mubr.bf16.gmra.mrb[0].mxu0 %v3400
        %v3758 = vpop.f32.mrb[0].mxu0
        %v3759 = vadd.f32 %v2801, %v3758
        %v3760 = vpop.f32.mrb[0].mxu0
        %v3761 = vpop.f32.mrb[0].mxu0
        %v3762 = vadd.f32 %v2806, %v3761
        %v3763 = vpop.f32.mrb[0].mxu0
        %3764 = vmatprep.mubr.bf16.mxu0 %v3405
        %3765 = vmatmul.mubr.bf16.gmra.mrb[0].mxu0 %v3404
        %v3766 = vpop.f32.mrb[0].mxu0
        %v3767 = vadd.f32 %v2811, %v3766
        %v3768 = vpop.f32.mrb[0].mxu0
        %v3769 = vpop.f32.mrb[0].mxu0
        %v3770 = vadd.f32 %v2816, %v3769
        %v3771 = vpop.f32.mrb[0].mxu0
        %3772 = vmatprep.mubr.bf16.mxu0 %v3409
        %3773 = vmatmul.mubr.bf16.gmra.mrb[0].mxu0 %v3408
        %v3774 = vpop.f32.mrb[0].mxu0
        %v3775 = vadd.f32 %v2821, %v3774
        %v3776 = vpop.f32.mrb[0].mxu0
        %v3777 = vpop.f32.mrb[0].mxu0
        %v3778 = vadd.f32 %v2826, %v3777
        %v3779 = vpop.f32.mrb[0].mxu0
        %3780 = vmatprep.mubr.bf16.mxu0 %v3413
        %3781 = vmatmul.mubr.bf16.gmra.mrb[0].mxu0 %v3412
        %v3782 = vpop.f32.mrb[0].mxu0
        %v3783 = vadd.f32 %v2831, %v3782
        %v3784 = vpop.f32.mrb[0].mxu0
        %v3785 = vpop.f32.mrb[0].mxu0
        %v3786 = vadd.f32 %v2836, %v3785
        %v3787 = vpop.f32.mrb[0].mxu0
        %3788 = vmatprep.mubr.bf16.mxu0 %v3417
        %3789 = vmatmul.mubr.bf16.gmra.mrb[0].mxu0 %v3416
        %v3790 = vpop.f32.mrb[0].mxu0
        %v3791 = vadd.f32 %v2841, %v3790
        %v3792 = vpop.f32.mrb[0].mxu0
        %v3793 = vpop.f32.mrb[0].mxu0
        %v3794 = vadd.f32 %v2846, %v3793
        %v3795 = vpop.f32.mrb[0].mxu0
        %3796 = vmatprep.mubr.bf16.mxu0 %v3421
        %3797 = vmatmul.mubr.bf16.gmra.mrb[0].mxu0 %v3420
        %v3798 = vpop.f32.mrb[0].mxu0
        %v3799 = vadd.f32 %v2851, %v3798
        %v3800 = vpop.f32.mrb[0].mxu0
        %v3801 = vpop.f32.mrb[0].mxu0
        %v3802 = vadd.f32 %v2856, %v3801
        %v3803 = vpop.f32.mrb[0].mxu0
        %3804 = vmatprep.mubr.bf16.mxu0 %v3425
        %3805 = vmatmul.mubr.bf16.gmra.mrb[0].mxu0 %v3424
        %v3806 = vpop.f32.mrb[0].mxu0
        %v3807 = vadd.f32 %v2861, %v3806
        %v3808 = vpop.f32.mrb[0].mxu0
        %v3809 = vpop.f32.mrb[0].mxu0
        %v3810 = vadd.f32 %v2866, %v3809
        %v3811 = vpop.f32.mrb[0].mxu0
        %3812 = vmatprep.mubr.bf16.mxu0 %v3429
        %3813 = vmatmul.mubr.bf16.gmra.mrb[0].mxu0 %v3428
        %v3814 = vpop.f32.mrb[0].mxu0
        %v3815 = vadd.f32 %v2871, %v3814
        %v3816 = vpop.f32.mrb[0].mxu0
        %v3817 = vpop.f32.mrb[0].mxu0
        %v3818 = vadd.f32 %v2876, %v3817
        %v3819 = vpop.f32.mrb[0].mxu0
        %3820 = vmatprep.mubr.bf16.mxu0 %v3433
        %3821 = vmatmul.mubr.bf16.gmra.mrb[0].mxu0 %v3432
        %v3822 = vpop.f32.mrb[0].mxu0
        %v3823 = vadd.f32 %v2881, %v3822
        %v3824 = vpop.f32.mrb[0].mxu0
        %v3825 = vpop.f32.mrb[0].mxu0
        %v3826 = vadd.f32 %v2886, %v3825
        %v3827 = vpop.f32.mrb[0].mxu0
        %3828 = vmatprep.mubr.bf16.mxu0 %v3437
        %3829 = vmatmul.mubr.bf16.gmra.mrb[0].mxu0 %v3436
        %v3830 = vpop.f32.mrb[0].mxu0
        %v3831 = vadd.f32 %v2891, %v3830
        %v3832 = vpop.f32.mrb[0].mxu0
        %v3833 = vpop.f32.mrb[0].mxu0
        %v3834 = vadd.f32 %v2896, %v3833
        %v3835 = vpop.f32.mrb[0].mxu0
        %3836 = vmatprep.mubr.bf16.mxu0 %v3441
        %3837 = vmatmul.mubr.bf16.gmra.mrb[0].mxu0 %v3440
        %v3838 = vpop.f32.mrb[0].mxu0
        %v3839 = vadd.f32 %v2901, %v3838
        %v3840 = vpop.f32.mrb[0].mxu0
        %v3841 = vpop.f32.mrb[0].mxu0
        %v3842 = vadd.f32 %v2906, %v3841
        %v3843 = vpop.f32.mrb[0].mxu0
        %3844 = vmatprep.mubr.bf16.mxu0 %v3445
        %3845 = vmatmul.mubr.bf16.gmra.mrb[0].mxu0 %v3444
        %v3846 = vpop.f32.mrb[0].mxu0
        %v3847 = vadd.f32 %v2911, %v3846
        %v3848 = vpop.f32.mrb[0].mxu0
        %v3849 = vpop.f32.mrb[0].mxu0
        %v3850 = vadd.f32 %v2916, %v3849
        %v3851 = vpop.f32.mrb[0].mxu0
        %3852 = vmatprep.mubr.bf16.mxu0 %v3449
        %3853 = vmatmul.mubr.bf16.gmra.mrb[0].mxu0 %v3448
        %v3854 = vpop.f32.mrb[0].mxu0
        %v3855 = vadd.f32 %v2921, %v3854
        %v3856 = vpop.f32.mrb[0].mxu0
        %v3857 = vpop.f32.mrb[0].mxu0
        %v3858 = vadd.f32 %v2926, %v3857
        %v3859 = vpop.f32.mrb[0].mxu0
        %3860 = vmatprep.mubr.bf16.mxu0 %v3453
        %3861 = vmatmul.mubr.bf16.gmra.mrb[0].mxu0 %v3452
        %v3862 = vpop.f32.mrb[0].mxu0
        %v3863 = vadd.f32 %v2931, %v3862
        %v3864 = vpop.f32.mrb[0].mxu0
        %v3865 = vpop.f32.mrb[0].mxu0
        %v3866 = vadd.f32 %v2936, %v3865
        %v3867 = vpop.f32.mrb[0].mxu0
        %3868 = vmatprep.mubr.bf16.mxu0 %v3457
        %3869 = vmatmul.mubr.bf16.gmra.mrb[0].mxu0 %v3456
        %v3870 = vpop.f32.mrb[0].mxu0
        %v3871 = vadd.f32 %v2941, %v3870
        %v3872 = vpop.f32.mrb[0].mxu0
        %v3873 = vpop.f32.mrb[0].mxu0
        %v3874 = vadd.f32 %v2946, %v3873
        %v3875 = vpop.f32.mrb[0].mxu0
        %3876 = vdwg.mxu0
        %3877 = vmatprep.subr.bf16.mxu0 0
        %3878 = vmatpush1.bf16.msra.mxu0 %v2548
        %3879 = vmatprep.subr.bf16.mxu0 0
        %3880 = vmatpush1.bf16.msra.mxu0 %v2549
        %3881 = vmatprep.subr.bf16.mxu0 0
        %3882 = vmatpush1.bf16.msra.mxu0 %v2550
        %3883 = vmatprep.subr.bf16.mxu0 0
        %3884 = vmatpush1.bf16.msra.mxu0 %v2551
        %3885 = vmatprep.subr.bf16.mxu0 0
        %3886 = vmatpush1.bf16.msra.mxu0 %v2552
        %3887 = vmatprep.subr.bf16.mxu0 0
        %3888 = vmatpush1.bf16.msra.mxu0 %v2553
        %3889 = vmatprep.subr.bf16.mxu0 0
        %3890 = vmatpush1.bf16.msra.mxu0 %v2554
        %3891 = vmatprep.subr.bf16.mxu0 0
        %3892 = vmatpush1.bf16.msra.mxu0 %v2555
        %3893 = vmatprep.subr.bf16.mxu0 0
        %3894 = vmatpush1.bf16.msra.mxu0 %v2556
        %3895 = vmatprep.subr.bf16.mxu0 0
        %3896 = vmatpush1.bf16.msra.mxu0 %v2557
        %3897 = vmatprep.subr.bf16.mxu0 0
        %3898 = vmatpush1.bf16.msra.mxu0 %v2558
        %3899 = vmatprep.subr.bf16.mxu0 0
        %3900 = vmatpush1.bf16.msra.mxu0 %v2559
        %3901 = vmatprep.subr.bf16.mxu0 0
        %3902 = vmatpush1.bf16.msra.mxu0 %v2560
        %3903 = vmatprep.subr.bf16.mxu0 0
        %3904 = vmatpush1.bf16.msra.mxu0 %v2561
        %3905 = vmatprep.subr.bf16.mxu0 0
        %3906 = vmatpush1.bf16.msra.mxu0 %v2562
        %3907 = vmatprep.subr.bf16.mxu0 0
        %3908 = vmatpush1.bf16.msra.mxu0 %v2563
        %3909 = vmatprep.mubr.bf16.mxu0 %v3335
        %3910 = vmatmul.mubr.bf16.gmra.mrb[0].mxu0 %v3334
        %v3911 = vpop.f32.mrb[0].mxu0
        %v3912 = vadd.f32 %v3623, %v3911
        %v3913 = vpop.f32.mrb[0].mxu0
        %v3914 = vpop.f32.mrb[0].mxu0
        %v3915 = vadd.f32 %v3626, %v3914
        %v3916 = vpop.f32.mrb[0].mxu0
        %3917 = vmatprep.mubr.bf16.mxu0 %v3339
        %3918 = vmatmul.mubr.bf16.gmra.mrb[0].mxu0 %v3338
        %v3919 = vpop.f32.mrb[0].mxu0
        %v3920 = vadd.f32 %v3631, %v3919
        %v3921 = vpop.f32.mrb[0].mxu0
        %v3922 = vpop.f32.mrb[0].mxu0
        %v3923 = vadd.f32 %v3634, %v3922
        %v3924 = vpop.f32.mrb[0].mxu0
        %3925 = vmatprep.mubr.bf16.mxu0 %v3343
        %3926 = vmatmul.mubr.bf16.gmra.mrb[0].mxu0 %v3342
        %v3927 = vpop.f32.mrb[0].mxu0
        %v3928 = vadd.f32 %v3639, %v3927
        %v3929 = vpop.f32.mrb[0].mxu0
        %v3930 = vpop.f32.mrb[0].mxu0
        %v3931 = vadd.f32 %v3642, %v3930
        %v3932 = vpop.f32.mrb[0].mxu0
        %3933 = vmatprep.mubr.bf16.mxu0 %v3347
        %3934 = vmatmul.mubr.bf16.gmra.mrb[0].mxu0 %v3346
        %v3935 = vpop.f32.mrb[0].mxu0
        %v3936 = vadd.f32 %v3647, %v3935
        %v3937 = vpop.f32.mrb[0].mxu0
        %v3938 = vpop.f32.mrb[0].mxu0
        %v3939 = vadd.f32 %v3650, %v3938
        %v3940 = vpop.f32.mrb[0].mxu0
        %3941 = vmatprep.mubr.bf16.mxu0 %v3351
        %3942 = vmatmul.mubr.bf16.gmra.mrb[0].mxu0 %v3350
        %v3943 = vpop.f32.mrb[0].mxu0
        %v3944 = vadd.f32 %v3655, %v3943
        %v3945 = vpop.f32.mrb[0].mxu0
        %v3946 = vpop.f32.mrb[0].mxu0
        %v3947 = vadd.f32 %v3658, %v3946
        %v3948 = vpop.f32.mrb[0].mxu0
        %3949 = vmatprep.mubr.bf16.mxu0 %v3355
        %3950 = vmatmul.mubr.bf16.gmra.mrb[0].mxu0 %v3354
        %v3951 = vpop.f32.mrb[0].mxu0
        %v3952 = vadd.f32 %v3663, %v3951
        %v3953 = vpop.f32.mrb[0].mxu0
        %v3954 = vpop.f32.mrb[0].mxu0
        %v3955 = vadd.f32 %v3666, %v3954
        %v3956 = vpop.f32.mrb[0].mxu0
        %3957 = vmatprep.mubr.bf16.mxu0 %v3359
        %3958 = vmatmul.mubr.bf16.gmra.mrb[0].mxu0 %v3358
        %v3959 = vpop.f32.mrb[0].mxu0
        %v3960 = vadd.f32 %v3671, %v3959
        %v3961 = vpop.f32.mrb[0].mxu0
        %v3962 = vpop.f32.mrb[0].mxu0
        %v3963 = vadd.f32 %v3674, %v3962
        %v3964 = vpop.f32.mrb[0].mxu0
        %3965 = vmatprep.mubr.bf16.mxu0 %v3363
        %3966 = vmatmul.mubr.bf16.gmra.mrb[0].mxu0 %v3362
        %v3967 = vpop.f32.mrb[0].mxu0
        %v3968 = vadd.f32 %v3679, %v3967
        %v3969 = vpop.f32.mrb[0].mxu0
        %v3970 = vpop.f32.mrb[0].mxu0
        %v3971 = vadd.f32 %v3682, %v3970
        %v3972 = vpop.f32.mrb[0].mxu0
        %3973 = vmatprep.mubr.bf16.mxu0 %v3367
        %3974 = vmatmul.mubr.bf16.gmra.mrb[0].mxu0 %v3366
        %v3975 = vpop.f32.mrb[0].mxu0
        %v3976 = vadd.f32 %v3687, %v3975
        %v3977 = vpop.f32.mrb[0].mxu0
        %v3978 = vpop.f32.mrb[0].mxu0
        %v3979 = vadd.f32 %v3690, %v3978
        %v3980 = vpop.f32.mrb[0].mxu0
        %3981 = vmatprep.mubr.bf16.mxu0 %v3371
        %3982 = vmatmul.mubr.bf16.gmra.mrb[0].mxu0 %v3370
        %v3983 = vpop.f32.mrb[0].mxu0
        %v3984 = vadd.f32 %v3695, %v3983
        %v3985 = vpop.f32.mrb[0].mxu0
        %v3986 = vpop.f32.mrb[0].mxu0
        %v3987 = vadd.f32 %v3698, %v3986
        %v3988 = vpop.f32.mrb[0].mxu0
        %3989 = vmatprep.mubr.bf16.mxu0 %v3375
        %3990 = vmatmul.mubr.bf16.gmra.mrb[0].mxu0 %v3374
        %v3991 = vpop.f32.mrb[0].mxu0
        %v3992 = vadd.f32 %v3703, %v3991
        %v3993 = vpop.f32.mrb[0].mxu0
        %v3994 = vpop.f32.mrb[0].mxu0
        %v3995 = vadd.f32 %v3706, %v3994
        %v3996 = vpop.f32.mrb[0].mxu0
        %3997 = vmatprep.mubr.bf16.mxu0 %v3379
        %3998 = vmatmul.mubr.bf16.gmra.mrb[0].mxu0 %v3378
        %v3999 = vpop.f32.mrb[0].mxu0
        %v4000 = vadd.f32 %v3711, %v3999
        %v4001 = vpop.f32.mrb[0].mxu0
        %v4002 = vpop.f32.mrb[0].mxu0
        %v4003 = vadd.f32 %v3714, %v4002
        %v4004 = vpop.f32.mrb[0].mxu0
        %4005 = vmatprep.mubr.bf16.mxu0 %v3383
        %4006 = vmatmul.mubr.bf16.gmra.mrb[0].mxu0 %v3382
        %v4007 = vpop.f32.mrb[0].mxu0
        %v4008 = vadd.f32 %v3719, %v4007
        %v4009 = vpop.f32.mrb[0].mxu0
        %v4010 = vpop.f32.mrb[0].mxu0
        %v4011 = vadd.f32 %v3722, %v4010
        %v4012 = vpop.f32.mrb[0].mxu0
        %4013 = vmatprep.mubr.bf16.mxu0 %v3387
        %4014 = vmatmul.mubr.bf16.gmra.mrb[0].mxu0 %v3386
        %v4015 = vpop.f32.mrb[0].mxu0
        %v4016 = vadd.f32 %v3727, %v4015
        %v4017 = vpop.f32.mrb[0].mxu0
        %v4018 = vpop.f32.mrb[0].mxu0
        %v4019 = vadd.f32 %v3730, %v4018
        %v4020 = vpop.f32.mrb[0].mxu0
        %4021 = vmatprep.mubr.bf16.mxu0 %v3391
        %4022 = vmatmul.mubr.bf16.gmra.mrb[0].mxu0 %v3390
        %v4023 = vpop.f32.mrb[0].mxu0
        %v4024 = vadd.f32 %v3735, %v4023
        %v4025 = vpop.f32.mrb[0].mxu0
        %v4026 = vpop.f32.mrb[0].mxu0
        %v4027 = vadd.f32 %v3738, %v4026
        %v4028 = vpop.f32.mrb[0].mxu0
        %4029 = vmatprep.mubr.bf16.mxu0 %v3395
        %4030 = vmatmul.mubr.bf16.gmra.mrb[0].mxu0 %v3394
        %v4031 = vpop.f32.mrb[0].mxu0
        %v4032 = vadd.f32 %v3743, %v4031
        %v4033 = vpop.f32.mrb[0].mxu0
        %v4034 = vpop.f32.mrb[0].mxu0
        %v4035 = vadd.f32 %v3746, %v4034
        %v4036 = vpop.f32.mrb[0].mxu0
        %4037 = vmatprep.mubr.bf16.mxu0 %v3399
        %4038 = vmatmul.mubr.bf16.gmra.mrb[0].mxu0 %v3398
        %v4039 = vpop.f32.mrb[0].mxu0
        %v4040 = vadd.f32 %v3751, %v4039
        %v4041 = vpop.f32.mrb[0].mxu0
        %v4042 = vpop.f32.mrb[0].mxu0
        %v4043 = vadd.f32 %v3754, %v4042
        %v4044 = vpop.f32.mrb[0].mxu0
        %4045 = vmatprep.mubr.bf16.mxu0 %v3403
        %4046 = vmatmul.mubr.bf16.gmra.mrb[0].mxu0 %v3402
        %v4047 = vpop.f32.mrb[0].mxu0
        %v4048 = vadd.f32 %v3759, %v4047
        %v4049 = vpop.f32.mrb[0].mxu0
        %v4050 = vpop.f32.mrb[0].mxu0
        %v4051 = vadd.f32 %v3762, %v4050
        %v4052 = vpop.f32.mrb[0].mxu0
        %4053 = vmatprep.mubr.bf16.mxu0 %v3407
        %4054 = vmatmul.mubr.bf16.gmra.mrb[0].mxu0 %v3406
        %v4055 = vpop.f32.mrb[0].mxu0
        %v4056 = vadd.f32 %v3767, %v4055
        %v4057 = vpop.f32.mrb[0].mxu0
        %v4058 = vpop.f32.mrb[0].mxu0
        %v4059 = vadd.f32 %v3770, %v4058
        %v4060 = vpop.f32.mrb[0].mxu0
        %4061 = vmatprep.mubr.bf16.mxu0 %v3411
        %4062 = vmatmul.mubr.bf16.gmra.mrb[0].mxu0 %v3410
        %v4063 = vpop.f32.mrb[0].mxu0
        %v4064 = vadd.f32 %v3775, %v4063
        %v4065 = vpop.f32.mrb[0].mxu0
        %v4066 = vpop.f32.mrb[0].mxu0
        %v4067 = vadd.f32 %v3778, %v4066
        %v4068 = vpop.f32.mrb[0].mxu0
        %4069 = vmatprep.mubr.bf16.mxu0 %v3415
        %4070 = vmatmul.mubr.bf16.gmra.mrb[0].mxu0 %v3414
        %v4071 = vpop.f32.mrb[0].mxu0
        %v4072 = vadd.f32 %v3783, %v4071
        %v4073 = vpop.f32.mrb[0].mxu0
        %v4074 = vpop.f32.mrb[0].mxu0
        %v4075 = vadd.f32 %v3786, %v4074
        %v4076 = vpop.f32.mrb[0].mxu0
        %4077 = vmatprep.mubr.bf16.mxu0 %v3419
        %4078 = vmatmul.mubr.bf16.gmra.mrb[0].mxu0 %v3418
        %v4079 = vpop.f32.mrb[0].mxu0
        %v4080 = vadd.f32 %v3791, %v4079
        %v4081 = vpop.f32.mrb[0].mxu0
        %v4082 = vpop.f32.mrb[0].mxu0
        %v4083 = vadd.f32 %v3794, %v4082
        %v4084 = vpop.f32.mrb[0].mxu0
        %4085 = vmatprep.mubr.bf16.mxu0 %v3423
        %4086 = vmatmul.mubr.bf16.gmra.mrb[0].mxu0 %v3422
        %v4087 = vpop.f32.mrb[0].mxu0
        %v4088 = vadd.f32 %v3799, %v4087
        %v4089 = vpop.f32.mrb[0].mxu0
        %v4090 = vpop.f32.mrb[0].mxu0
        %v4091 = vadd.f32 %v3802, %v4090
        %v4092 = vpop.f32.mrb[0].mxu0
        %4093 = vmatprep.mubr.bf16.mxu0 %v3427
        %4094 = vmatmul.mubr.bf16.gmra.mrb[0].mxu0 %v3426
        %v4095 = vpop.f32.mrb[0].mxu0
        %v4096 = vadd.f32 %v3807, %v4095
        %v4097 = vpop.f32.mrb[0].mxu0
        %v4098 = vpop.f32.mrb[0].mxu0
        %v4099 = vadd.f32 %v3810, %v4098
        %v4100 = vpop.f32.mrb[0].mxu0
        %4101 = vmatprep.mubr.bf16.mxu0 %v3431
        %4102 = vmatmul.mubr.bf16.gmra.mrb[0].mxu0 %v3430
        %v4103 = vpop.f32.mrb[0].mxu0
        %v4104 = vadd.f32 %v3815, %v4103
        %v4105 = vpop.f32.mrb[0].mxu0
        %v4106 = vpop.f32.mrb[0].mxu0
        %v4107 = vadd.f32 %v3818, %v4106
        %v4108 = vpop.f32.mrb[0].mxu0
        %4109 = vmatprep.mubr.bf16.mxu0 %v3435
        %4110 = vmatmul.mubr.bf16.gmra.mrb[0].mxu0 %v3434
        %v4111 = vpop.f32.mrb[0].mxu0
        %v4112 = vadd.f32 %v3823, %v4111
        %v4113 = vpop.f32.mrb[0].mxu0
        %v4114 = vpop.f32.mrb[0].mxu0
        %v4115 = vadd.f32 %v3826, %v4114
        %v4116 = vpop.f32.mrb[0].mxu0
        %4117 = vmatprep.mubr.bf16.mxu0 %v3439
        %4118 = vmatmul.mubr.bf16.gmra.mrb[0].mxu0 %v3438
        %v4119 = vpop.f32.mrb[0].mxu0
        %v4120 = vadd.f32 %v3831, %v4119
        %v4121 = vpop.f32.mrb[0].mxu0
        %v4122 = vpop.f32.mrb[0].mxu0
        %v4123 = vadd.f32 %v3834, %v4122
        %v4124 = vpop.f32.mrb[0].mxu0
        %4125 = vmatprep.mubr.bf16.mxu0 %v3443
        %4126 = vmatmul.mubr.bf16.gmra.mrb[0].mxu0 %v3442
        %v4127 = vpop.f32.mrb[0].mxu0
        %v4128 = vadd.f32 %v3839, %v4127
        %v4129 = vpop.f32.mrb[0].mxu0
        %v4130 = vpop.f32.mrb[0].mxu0
        %v4131 = vadd.f32 %v3842, %v4130
        %v4132 = vpop.f32.mrb[0].mxu0
        %4133 = vmatprep.mubr.bf16.mxu0 %v3447
        %4134 = vmatmul.mubr.bf16.gmra.mrb[0].mxu0 %v3446
        %v4135 = vpop.f32.mrb[0].mxu0
        %v4136 = vadd.f32 %v3847, %v4135
        %v4137 = vpop.f32.mrb[0].mxu0
        %v4138 = vpop.f32.mrb[0].mxu0
        %v4139 = vadd.f32 %v3850, %v4138
        %v4140 = vpop.f32.mrb[0].mxu0
        %4141 = vmatprep.mubr.bf16.mxu0 %v3451
        %4142 = vmatmul.mubr.bf16.gmra.mrb[0].mxu0 %v3450
        %v4143 = vpop.f32.mrb[0].mxu0
        %v4144 = vadd.f32 %v3855, %v4143
        %v4145 = vpop.f32.mrb[0].mxu0
        %v4146 = vpop.f32.mrb[0].mxu0
        %v4147 = vadd.f32 %v3858, %v4146
        %v4148 = vpop.f32.mrb[0].mxu0
        %4149 = vmatprep.mubr.bf16.mxu0 %v3455
        %4150 = vmatmul.mubr.bf16.gmra.mrb[0].mxu0 %v3454
        %v4151 = vpop.f32.mrb[0].mxu0
        %v4152 = vadd.f32 %v3863, %v4151
        %v4153 = vpop.f32.mrb[0].mxu0
        %v4154 = vpop.f32.mrb[0].mxu0
        %v4155 = vadd.f32 %v3866, %v4154
        %v4156 = vpop.f32.mrb[0].mxu0
        %4157 = vmatprep.mubr.bf16.mxu0 %v3459
        %4158 = vmatmul.mubr.bf16.gmra.mrb[0].mxu0 %v3458
        %v4159 = vpop.f32.mrb[0].mxu0
        %v4160 = vadd.f32 %v3871, %v4159
        %v4161 = vpop.f32.mrb[0].mxu0
        %v4162 = vpop.f32.mrb[0].mxu0
        %v4163 = vadd.f32 %v3874, %v4162
        %v4164 = vpop.f32.mrb[0].mxu0
        %4165 = vdwg.mxu0
        %v4166 = vmax.f32 %v3912, 0.0
        %v4167 = vmax.f32 %v3915, 0.0
        %v4168 = vmax.f32 %v3920, 0.0
        %v4169 = vmax.f32 %v3923, 0.0
        %v4170 = vmax.f32 %v3928, 0.0
        %v4171 = vmax.f32 %v3931, 0.0
        %v4172 = vmax.f32 %v3936, 0.0
        %v4173 = vmax.f32 %v3939, 0.0
        %v4174 = vmax.f32 %v3944, 0.0
        %v4175 = vmax.f32 %v3947, 0.0
        %v4176 = vmax.f32 %v3952, 0.0
        %v4177 = vmax.f32 %v3955, 0.0
        %v4178 = vmax.f32 %v3960, 0.0
        %v4179 = vmax.f32 %v3963, 0.0
        %v4180 = vmax.f32 %v3968, 0.0
        %v4181 = vmax.f32 %v3971, 0.0
        %v4182 = vmax.f32 %v3976, 0.0
        %v4183 = vmax.f32 %v3979, 0.0
        %v4184 = vmax.f32 %v3984, 0.0
        %v4185 = vmax.f32 %v3987, 0.0
        %v4186 = vmax.f32 %v3992, 0.0
        %v4187 = vmax.f32 %v3995, 0.0
        %v4188 = vmax.f32 %v4000, 0.0
        %v4189 = vmax.f32 %v4003, 0.0
        %v4190 = vmax.f32 %v4008, 0.0
        %v4191 = vmax.f32 %v4011, 0.0
        %v4192 = vmax.f32 %v4016, 0.0
        %v4193 = vmax.f32 %v4019, 0.0
        %v4194 = vmax.f32 %v4024, 0.0
        %v4195 = vmax.f32 %v4027, 0.0
        %v4196 = vmax.f32 %v4032, 0.0
        %v4197 = vmax.f32 %v4035, 0.0
        %v4198 = vmax.f32 %v4040, 0.0
        %v4199 = vmax.f32 %v4043, 0.0
        %v4200 = vmax.f32 %v4048, 0.0
        %v4201 = vmax.f32 %v4051, 0.0
        %v4202 = vmax.f32 %v4056, 0.0
        %v4203 = vmax.f32 %v4059, 0.0
        %v4204 = vmax.f32 %v4064, 0.0
        %v4205 = vmax.f32 %v4067, 0.0
        %v4206 = vmax.f32 %v4072, 0.0
        %v4207 = vmax.f32 %v4075, 0.0
        %v4208 = vmax.f32 %v4080, 0.0
        %v4209 = vmax.f32 %v4083, 0.0
        %v4210 = vmax.f32 %v4088, 0.0
        %v4211 = vmax.f32 %v4091, 0.0
        %v4212 = vmax.f32 %v4096, 0.0
        %v4213 = vmax.f32 %v4099, 0.0
        %v4214 = vmax.f32 %v4104, 0.0
        %v4215 = vmax.f32 %v4107, 0.0
        %v4216 = vmax.f32 %v4112, 0.0
        %v4217 = vmax.f32 %v4115, 0.0
        %v4218 = vmax.f32 %v4120, 0.0
        %v4219 = vmax.f32 %v4123, 0.0
        %v4220 = vmax.f32 %v4128, 0.0
        %v4221 = vmax.f32 %v4131, 0.0
        %v4222 = vmax.f32 %v4136, 0.0
        %v4223 = vmax.f32 %v4139, 0.0
        %v4224 = vmax.f32 %v4144, 0.0
        %v4225 = vmax.f32 %v4147, 0.0
        %v4226 = vmax.f32 %v4152, 0.0
        %v4227 = vmax.f32 %v4155, 0.0
        %v4228 = vmax.f32 %v4160, 0.0
        %v4229 = vmax.f32 %v4163, 0.0
        %v4230 = vld [vmem:[%s5] sm:$0xff]
        %v4231 = vld [vmem:[%s5 + $0x8] sm:$0xff]
        %v4232 = vld [vmem:[%s5 + $0x10] sm:$0xff]
        %v4233 = vld [vmem:[%s5 + $0x18] sm:$0xff]
        %v4234 = vld [vmem:[%s5 + $0x20] sm:$0xff]
        %v4235 = vld [vmem:[%s5 + $0x28] sm:$0xff]
        %v4236 = vld [vmem:[%s5 + $0x30] sm:$0xff]
        %v4237 = vld [vmem:[%s5 + $0x38] sm:$0xff]
        %v4238 = vld [vmem:[%s5 + $0x40] sm:$0xff]
        %v4239 = vld [vmem:[%s5 + $0x48] sm:$0xff]
        %v4240 = vld [vmem:[%s5 + $0x50] sm:$0xff]
        %v4241 = vld [vmem:[%s5 + $0x58] sm:$0xff]
        %v4242 = vld [vmem:[%s5 + $0x60] sm:$0xff]
        %v4243 = vld [vmem:[%s5 + $0x68] sm:$0xff]
        %v4244 = vld [vmem:[%s5 + $0x70] sm:$0xff]
        %v4245 = vld [vmem:[%s5 + $0x78] sm:$0xff]
        %v4246 = vld [vmem:[%s5 + $0x80] sm:$0xff]
        %v4247 = vld [vmem:[%s5 + $0x88] sm:$0xff]
        %v4248 = vld [vmem:[%s5 + $0x90] sm:$0xff]
        %v4249 = vld [vmem:[%s5 + $0x98] sm:$0xff]
        %v4250 = vld [vmem:[%s5 + $0xa0] sm:$0xff]
        %v4251 = vld [vmem:[%s5 + $0xa8] sm:$0xff]
        %v4252 = vld [vmem:[%s5 + $0xb0] sm:$0xff]
        %v4253 = vld [vmem:[%s5 + $0xb8] sm:$0xff]
        %v4254 = vld [vmem:[%s5 + $0xc0] sm:$0xff]
        %v4255 = vld [vmem:[%s5 + $0xc8] sm:$0xff]
        %v4256 = vld [vmem:[%s5 + $0xd0] sm:$0xff]
        %v4257 = vld [vmem:[%s5 + $0xd8] sm:$0xff]
        %v4258 = vld [vmem:[%s5 + $0xe0] sm:$0xff]
        %v4259 = vld [vmem:[%s5 + $0xe8] sm:$0xff]
        %v4260 = vld [vmem:[%s5 + $0xf0] sm:$0xff]
        %v4261 = vld [vmem:[%s5 + $0xf8] sm:$0xff]
        %v4262 = vld [vmem:[%s5 + $0x100] sm:$0xff]
        %v4263 = vld [vmem:[%s5 + $0x108] sm:$0xff]
        %v4264 = vld [vmem:[%s5 + $0x110] sm:$0xff]
        %v4265 = vld [vmem:[%s5 + $0x118] sm:$0xff]
        %v4266 = vld [vmem:[%s5 + $0x120] sm:$0xff]
        %v4267 = vld [vmem:[%s5 + $0x128] sm:$0xff]
        %v4268 = vld [vmem:[%s5 + $0x130] sm:$0xff]
        %v4269 = vld [vmem:[%s5 + $0x138] sm:$0xff]
        %v4270 = vld [vmem:[%s5 + $0x140] sm:$0xff]
        %v4271 = vld [vmem:[%s5 + $0x148] sm:$0xff]
        %v4272 = vld [vmem:[%s5 + $0x150] sm:$0xff]
        %v4273 = vld [vmem:[%s5 + $0x158] sm:$0xff]
        %v4274 = vld [vmem:[%s5 + $0x160] sm:$0xff]
        %v4275 = vld [vmem:[%s5 + $0x168] sm:$0xff]
        %v4276 = vld [vmem:[%s5 + $0x170] sm:$0xff]
        %v4277 = vld [vmem:[%s5 + $0x178] sm:$0xff]
        %v4278 = vld [vmem:[%s5 + $0x180] sm:$0xff]
        %v4279 = vld [vmem:[%s5 + $0x188] sm:$0xff]
        %v4280 = vld [vmem:[%s5 + $0x190] sm:$0xff]
        %v4281 = vld [vmem:[%s5 + $0x198] sm:$0xff]
        %v4282 = vld [vmem:[%s5 + $0x1a0] sm:$0xff]
        %v4283 = vld [vmem:[%s5 + $0x1a8] sm:$0xff]
        %v4284 = vld [vmem:[%s5 + $0x1b0] sm:$0xff]
        %v4285 = vld [vmem:[%s5 + $0x1b8] sm:$0xff]
        %v4286 = vld [vmem:[%s5 + $0x1c0] sm:$0xff]
        %v4287 = vld [vmem:[%s5 + $0x1c8] sm:$0xff]
        %v4288 = vld [vmem:[%s5 + $0x1d0] sm:$0xff]
        %v4289 = vld [vmem:[%s5 + $0x1d8] sm:$0xff]
        %v4290 = vld [vmem:[%s5 + $0x1e0] sm:$0xff]
        %v4291 = vld [vmem:[%s5 + $0x1e8] sm:$0xff]
        %v4292 = vld [vmem:[%s5 + $0x1f0] sm:$0xff]
        %v4293 = vld [vmem:[%s5 + $0x1f8] sm:$0xff]
        %4295 = vset.pattern.permute.xlu0 0
        %4296 = vperm.xlu0 %4295, %v4230
        %v4297 = vpop.permute.xlu0 %4296
        %4300 = vset.pattern.permute.xlu0 0
        %4301 = vperm.xlu0 %4300, %v4231
        %v4302 = vpop.permute.xlu0 %4301
        %4305 = vset.pattern.permute.xlu0 0
        %4306 = vperm.xlu0 %4305, %v4232
        %v4307 = vpop.permute.xlu0 %4306
        %4310 = vset.pattern.permute.xlu0 0
        %4311 = vperm.xlu0 %4310, %v4233
        %v4312 = vpop.permute.xlu0 %4311
        %4315 = vset.pattern.permute.xlu0 0
        %4316 = vperm.xlu0 %4315, %v4234
        %v4317 = vpop.permute.xlu0 %4316
        %4320 = vset.pattern.permute.xlu0 0
        %4321 = vperm.xlu0 %4320, %v4235
        %v4322 = vpop.permute.xlu0 %4321
        %4325 = vset.pattern.permute.xlu0 0
        %4326 = vperm.xlu0 %4325, %v4236
        %v4327 = vpop.permute.xlu0 %4326
        %4330 = vset.pattern.permute.xlu0 0
        %4331 = vperm.xlu0 %4330, %v4237
        %v4332 = vpop.permute.xlu0 %4331
        %4335 = vset.pattern.permute.xlu0 0
        %4336 = vperm.xlu0 %4335, %v4238
        %v4337 = vpop.permute.xlu0 %4336
        %4340 = vset.pattern.permute.xlu0 0
        %4341 = vperm.xlu0 %4340, %v4239
        %v4342 = vpop.permute.xlu0 %4341
        %4345 = vset.pattern.permute.xlu0 0
        %4346 = vperm.xlu0 %4345, %v4240
        %v4347 = vpop.permute.xlu0 %4346
        %4350 = vset.pattern.permute.xlu0 0
        %4351 = vperm.xlu0 %4350, %v4241
        %v4352 = vpop.permute.xlu0 %4351
        %4355 = vset.pattern.permute.xlu0 0
        %4356 = vperm.xlu0 %4355, %v4242
        %v4357 = vpop.permute.xlu0 %4356
        %4360 = vset.pattern.permute.xlu0 0
        %4361 = vperm.xlu0 %4360, %v4243
        %v4362 = vpop.permute.xlu0 %4361
        %4365 = vset.pattern.permute.xlu0 0
        %4366 = vperm.xlu0 %4365, %v4244
        %v4367 = vpop.permute.xlu0 %4366
        %4370 = vset.pattern.permute.xlu0 0
        %4371 = vperm.xlu0 %4370, %v4245
        %v4372 = vpop.permute.xlu0 %4371
        %4375 = vset.pattern.permute.xlu0 0
        %4376 = vperm.xlu0 %4375, %v4246
        %v4377 = vpop.permute.xlu0 %4376
        %4380 = vset.pattern.permute.xlu0 0
        %4381 = vperm.xlu0 %4380, %v4247
        %v4382 = vpop.permute.xlu0 %4381
        %4385 = vset.pattern.permute.xlu0 0
        %4386 = vperm.xlu0 %4385, %v4248
        %v4387 = vpop.permute.xlu0 %4386
        %4390 = vset.pattern.permute.xlu0 0
        %4391 = vperm.xlu0 %4390, %v4249
        %v4392 = vpop.permute.xlu0 %4391
        %4395 = vset.pattern.permute.xlu0 0
        %4396 = vperm.xlu0 %4395, %v4250
        %v4397 = vpop.permute.xlu0 %4396
        %4400 = vset.pattern.permute.xlu0 0
        %4401 = vperm.xlu0 %4400, %v4251
        %v4402 = vpop.permute.xlu0 %4401
        %4405 = vset.pattern.permute.xlu0 0
        %4406 = vperm.xlu0 %4405, %v4252
        %v4407 = vpop.permute.xlu0 %4406
        %4410 = vset.pattern.permute.xlu0 0
        %4411 = vperm.xlu0 %4410, %v4253
        %v4412 = vpop.permute.xlu0 %4411
        %4415 = vset.pattern.permute.xlu0 0
        %4416 = vperm.xlu0 %4415, %v4254
        %v4417 = vpop.permute.xlu0 %4416
        %4420 = vset.pattern.permute.xlu0 0
        %4421 = vperm.xlu0 %4420, %v4255
        %v4422 = vpop.permute.xlu0 %4421
        %4425 = vset.pattern.permute.xlu0 0
        %4426 = vperm.xlu0 %4425, %v4256
        %v4427 = vpop.permute.xlu0 %4426
        %4430 = vset.pattern.permute.xlu0 0
        %4431 = vperm.xlu0 %4430, %v4257
        %v4432 = vpop.permute.xlu0 %4431
        %4435 = vset.pattern.permute.xlu0 0
        %4436 = vperm.xlu0 %4435, %v4258
        %v4437 = vpop.permute.xlu0 %4436
        %4440 = vset.pattern.permute.xlu0 0
        %4441 = vperm.xlu0 %4440, %v4259
        %v4442 = vpop.permute.xlu0 %4441
        %4445 = vset.pattern.permute.xlu0 0
        %4446 = vperm.xlu0 %4445, %v4260
        %v4447 = vpop.permute.xlu0 %4446
        %4450 = vset.pattern.permute.xlu0 0
        %4451 = vperm.xlu0 %4450, %v4261
        %v4452 = vpop.permute.xlu0 %4451
        %4455 = vset.pattern.permute.xlu0 0
        %4456 = vperm.xlu0 %4455, %v4262
        %v4457 = vpop.permute.xlu0 %4456
        %4460 = vset.pattern.permute.xlu0 0
        %4461 = vperm.xlu0 %4460, %v4263
        %v4462 = vpop.permute.xlu0 %4461
        %4465 = vset.pattern.permute.xlu0 0
        %4466 = vperm.xlu0 %4465, %v4264
        %v4467 = vpop.permute.xlu0 %4466
        %4470 = vset.pattern.permute.xlu0 0
        %4471 = vperm.xlu0 %4470, %v4265
        %v4472 = vpop.permute.xlu0 %4471
        %4475 = vset.pattern.permute.xlu0 0
        %4476 = vperm.xlu0 %4475, %v4266
        %v4477 = vpop.permute.xlu0 %4476
        %4480 = vset.pattern.permute.xlu0 0
        %4481 = vperm.xlu0 %4480, %v4267
        %v4482 = vpop.permute.xlu0 %4481
        %4485 = vset.pattern.permute.xlu0 0
        %4486 = vperm.xlu0 %4485, %v4268
        %v4487 = vpop.permute.xlu0 %4486
        %4490 = vset.pattern.permute.xlu0 0
        %4491 = vperm.xlu0 %4490, %v4269
        %v4492 = vpop.permute.xlu0 %4491
        %4495 = vset.pattern.permute.xlu0 0
        %4496 = vperm.xlu0 %4495, %v4270
        %v4497 = vpop.permute.xlu0 %4496
        %4500 = vset.pattern.permute.xlu0 0
        %4501 = vperm.xlu0 %4500, %v4271
        %v4502 = vpop.permute.xlu0 %4501
        %4505 = vset.pattern.permute.xlu0 0
        %4506 = vperm.xlu0 %4505, %v4272
        %v4507 = vpop.permute.xlu0 %4506
        %4510 = vset.pattern.permute.xlu0 0
        %4511 = vperm.xlu0 %4510, %v4273
        %v4512 = vpop.permute.xlu0 %4511
        %4515 = vset.pattern.permute.xlu0 0
        %4516 = vperm.xlu0 %4515, %v4274
        %v4517 = vpop.permute.xlu0 %4516
        %4520 = vset.pattern.permute.xlu0 0
        %4521 = vperm.xlu0 %4520, %v4275
        %v4522 = vpop.permute.xlu0 %4521
        %4525 = vset.pattern.permute.xlu0 0
        %4526 = vperm.xlu0 %4525, %v4276
        %v4527 = vpop.permute.xlu0 %4526
        %4530 = vset.pattern.permute.xlu0 0
        %4531 = vperm.xlu0 %4530, %v4277
        %v4532 = vpop.permute.xlu0 %4531
        %4535 = vset.pattern.permute.xlu0 0
        %4536 = vperm.xlu0 %4535, %v4278
        %v4537 = vpop.permute.xlu0 %4536
        %4540 = vset.pattern.permute.xlu0 0
        %4541 = vperm.xlu0 %4540, %v4279
        %v4542 = vpop.permute.xlu0 %4541
        %4545 = vset.pattern.permute.xlu0 0
        %4546 = vperm.xlu0 %4545, %v4280
        %v4547 = vpop.permute.xlu0 %4546
        %4550 = vset.pattern.permute.xlu0 0
        %4551 = vperm.xlu0 %4550, %v4281
        %v4552 = vpop.permute.xlu0 %4551
        %4555 = vset.pattern.permute.xlu0 0
        %4556 = vperm.xlu0 %4555, %v4282
        %v4557 = vpop.permute.xlu0 %4556
        %4560 = vset.pattern.permute.xlu0 0
        %4561 = vperm.xlu0 %4560, %v4283
        %v4562 = vpop.permute.xlu0 %4561
        %4565 = vset.pattern.permute.xlu0 0
        %4566 = vperm.xlu0 %4565, %v4284
        %v4567 = vpop.permute.xlu0 %4566
        %4570 = vset.pattern.permute.xlu0 0
        %4571 = vperm.xlu0 %4570, %v4285
        %v4572 = vpop.permute.xlu0 %4571
        %4575 = vset.pattern.permute.xlu0 0
        %4576 = vperm.xlu0 %4575, %v4286
        %v4577 = vpop.permute.xlu0 %4576
        %4580 = vset.pattern.permute.xlu0 0
        %4581 = vperm.xlu0 %4580, %v4287
        %v4582 = vpop.permute.xlu0 %4581
        %4585 = vset.pattern.permute.xlu0 0
        %4586 = vperm.xlu0 %4585, %v4288
        %v4587 = vpop.permute.xlu0 %4586
        %4590 = vset.pattern.permute.xlu0 0
        %4591 = vperm.xlu0 %4590, %v4289
        %v4592 = vpop.permute.xlu0 %4591
        %4595 = vset.pattern.permute.xlu0 0
        %4596 = vperm.xlu0 %4595, %v4290
        %v4597 = vpop.permute.xlu0 %4596
        %4600 = vset.pattern.permute.xlu0 0
        %4601 = vperm.xlu0 %4600, %v4291
        %v4602 = vpop.permute.xlu0 %4601
        %4605 = vset.pattern.permute.xlu0 0
        %4606 = vperm.xlu0 %4605, %v4292
        %v4607 = vpop.permute.xlu0 %4606
        %4610 = vset.pattern.permute.xlu0 0
        %4611 = vperm.xlu0 %4610, %v4293
        %v4612 = vpop.permute.xlu0 %4611
        %v4614 = vmul.f32 %v4166, %v4297
        %v4615 = vmul.f32 %v4167, %v4302
        %v4616 = vmul.f32 %v4168, %v4307
        %v4617 = vmul.f32 %v4169, %v4312
        %v4618 = vmul.f32 %v4170, %v4317
        %v4619 = vmul.f32 %v4171, %v4322
        %v4620 = vmul.f32 %v4172, %v4327
        %v4621 = vmul.f32 %v4173, %v4332
        %v4622 = vmul.f32 %v4174, %v4337
        %v4623 = vmul.f32 %v4175, %v4342
        %v4624 = vmul.f32 %v4176, %v4347
        %v4625 = vmul.f32 %v4177, %v4352
        %v4626 = vmul.f32 %v4178, %v4357
        %v4627 = vmul.f32 %v4179, %v4362
        %v4628 = vmul.f32 %v4180, %v4367
        %v4629 = vmul.f32 %v4181, %v4372
        %v4630 = vmul.f32 %v4182, %v4377
        %v4631 = vmul.f32 %v4183, %v4382
        %v4632 = vmul.f32 %v4184, %v4387
        %v4633 = vmul.f32 %v4185, %v4392
        %v4634 = vmul.f32 %v4186, %v4397
        %v4635 = vmul.f32 %v4187, %v4402
        %v4636 = vmul.f32 %v4188, %v4407
        %v4637 = vmul.f32 %v4189, %v4412
        %v4638 = vmul.f32 %v4190, %v4417
        %v4639 = vmul.f32 %v4191, %v4422
        %v4640 = vmul.f32 %v4192, %v4427
        %v4641 = vmul.f32 %v4193, %v4432
        %v4642 = vmul.f32 %v4194, %v4437
        %v4643 = vmul.f32 %v4195, %v4442
        %v4644 = vmul.f32 %v4196, %v4447
        %v4645 = vmul.f32 %v4197, %v4452
        %v4646 = vmul.f32 %v4198, %v4457
        %v4647 = vmul.f32 %v4199, %v4462
        %v4648 = vmul.f32 %v4200, %v4467
        %v4649 = vmul.f32 %v4201, %v4472
        %v4650 = vmul.f32 %v4202, %v4477
        %v4651 = vmul.f32 %v4203, %v4482
        %v4652 = vmul.f32 %v4204, %v4487
        %v4653 = vmul.f32 %v4205, %v4492
        %v4654 = vmul.f32 %v4206, %v4497
        %v4655 = vmul.f32 %v4207, %v4502
        %v4656 = vmul.f32 %v4208, %v4507
        %v4657 = vmul.f32 %v4209, %v4512
        %v4658 = vmul.f32 %v4210, %v4517
        %v4659 = vmul.f32 %v4211, %v4522
        %v4660 = vmul.f32 %v4212, %v4527
        %v4661 = vmul.f32 %v4213, %v4532
        %v4662 = vmul.f32 %v4214, %v4537
        %v4663 = vmul.f32 %v4215, %v4542
        %v4664 = vmul.f32 %v4216, %v4547
        %v4665 = vmul.f32 %v4217, %v4552
        %v4666 = vmul.f32 %v4218, %v4557
        %v4667 = vmul.f32 %v4219, %v4562
        %v4668 = vmul.f32 %v4220, %v4567
        %v4669 = vmul.f32 %v4221, %v4572
        %v4670 = vmul.f32 %v4222, %v4577
        %v4671 = vmul.f32 %v4223, %v4582
        %v4672 = vmul.f32 %v4224, %v4587
        %v4673 = vmul.f32 %v4225, %v4592
        %v4674 = vmul.f32 %v4226, %v4597
        %v4675 = vmul.f32 %v4227, %v4602
        %v4676 = vmul.f32 %v4228, %v4607
        %v4677 = vmul.f32 %v4229, %v4612
        %v4678 = vadd.f32 %v4614, %v4615
        %v4679 = vadd.f32 %v4678, %v4616
        %v4680 = vadd.f32 %v4679, %v4617
        %v4681 = vadd.f32 %v4680, %v4618
        %v4682 = vadd.f32 %v4681, %v4619
        %v4683 = vadd.f32 %v4682, %v4620
        %v4684 = vadd.f32 %v4683, %v4621
        %v4685 = vadd.f32 %v4684, %v4622
        %v4686 = vadd.f32 %v4685, %v4623
        %v4687 = vadd.f32 %v4686, %v4624
        %v4688 = vadd.f32 %v4687, %v4625
        %v4689 = vadd.f32 %v4688, %v4626
        %v4690 = vadd.f32 %v4689, %v4627
        %v4691 = vadd.f32 %v4690, %v4628
        %v4692 = vadd.f32 %v4691, %v4629
        %v4693 = vadd.f32 %v4692, %v4630
        %v4694 = vadd.f32 %v4693, %v4631
        %v4695 = vadd.f32 %v4694, %v4632
        %v4696 = vadd.f32 %v4695, %v4633
        %v4697 = vadd.f32 %v4696, %v4634
        %v4698 = vadd.f32 %v4697, %v4635
        %v4699 = vadd.f32 %v4698, %v4636
        %v4700 = vadd.f32 %v4699, %v4637
        %v4701 = vadd.f32 %v4700, %v4638
        %v4702 = vadd.f32 %v4701, %v4639
        %v4703 = vadd.f32 %v4702, %v4640
        %v4704 = vadd.f32 %v4703, %v4641
        %v4705 = vadd.f32 %v4704, %v4642
        %v4706 = vadd.f32 %v4705, %v4643
        %v4707 = vadd.f32 %v4706, %v4644
        %v4708 = vadd.f32 %v4707, %v4645
        %v4709 = vadd.f32 %v4708, %v4646
        %v4710 = vadd.f32 %v4709, %v4647
        %v4711 = vadd.f32 %v4710, %v4648
        %v4712 = vadd.f32 %v4711, %v4649
        %v4713 = vadd.f32 %v4712, %v4650
        %v4714 = vadd.f32 %v4713, %v4651
        %v4715 = vadd.f32 %v4714, %v4652
        %v4716 = vadd.f32 %v4715, %v4653
        %v4717 = vadd.f32 %v4716, %v4654
        %v4718 = vadd.f32 %v4717, %v4655
        %v4719 = vadd.f32 %v4718, %v4656
        %v4720 = vadd.f32 %v4719, %v4657
        %v4721 = vadd.f32 %v4720, %v4658
        %v4722 = vadd.f32 %v4721, %v4659
        %v4723 = vadd.f32 %v4722, %v4660
        %v4724 = vadd.f32 %v4723, %v4661
        %v4725 = vadd.f32 %v4724, %v4662
        %v4726 = vadd.f32 %v4725, %v4663
        %v4727 = vadd.f32 %v4726, %v4664
        %v4728 = vadd.f32 %v4727, %v4665
        %v4729 = vadd.f32 %v4728, %v4666
        %v4730 = vadd.f32 %v4729, %v4667
        %v4731 = vadd.f32 %v4730, %v4668
        %v4732 = vadd.f32 %v4731, %v4669
        %v4733 = vadd.f32 %v4732, %v4670
        %v4734 = vadd.f32 %v4733, %v4671
        %v4735 = vadd.f32 %v4734, %v4672
        %v4736 = vadd.f32 %v4735, %v4673
        %v4737 = vadd.f32 %v4736, %v4674
        %v4738 = vadd.f32 %v4737, %v4675
        %v4739 = vadd.f32 %v4738, %v4676
        %v4740 = vadd.f32 %v4739, %v4677
        %v4741 = vrot.slane %v4740, 4
        %v4742 = vadd.f32 %v4740, %v4741
        %v4743 = vrot.slane %v4742, 2
        %v4744 = vadd.f32 %v4742, %v4743
        %v4745 = vrot.slane %v4744, 1
        %v4746 = vadd.f32 %v4744, %v4745
        %s4747 = sld [smem:[#allocation2]]
        %v4748 = vstv %s4747
        %v4749 = vadd.f32 %v4746, %v4748
        %4750 = vst [vmem:[%s269] sm:$0x1] %v4749
        %s4751 = sand.u32 %s182, 1
        %s4752 = scalar_lea.sflag [#allocation4], %s4751
        %s4753 = sand.u32 %s182, 1
        %s4754 = scalar_lea.vmem [#allocation3], %s4753
        // Predicated region
        $region49: #{tpu_custom_call.1} parent=47 // pred_check
          %p4755 = pneg %p192
        $region50: #{tpu_custom_call.1} parent=47 // pred_check_branch
          %4757 = sbr.rel (%p4755) target = $region52
        $region51: #{tpu_custom_call.1} parent=47 // pred_region
          %s4759 = ssub.s32 16, 16
          %4760 = vsyncadd %s4752, %s4759
          %s4761 = smul.addr %s22, 16
          %s4762 = scalar_lea.hbm %s7, %s4761
          %s4764 = sshll.u32 %s4754, 4
          %s4765 = int_to_ptr.vmem [resolvable:$true] %s4764
          %4767 = dma.vmem_to_hbm [thread:$0]  %s4765, 16, %s4762, %s4752
        $region52: #{tpu_custom_call.1} parent=47 // pred_fallthru
          _
      $region48: #{tpu_custom_call.1} parent=5 // pred_fallthru
        _
      %p4768 = scmp.le.s32.totalorder 2, %s17
      // Predicated region
      $region53: #{tpu_custom_call.1} parent=5 // pred_check
        %p4769 = pneg %p4768
      $region54: #{tpu_custom_call.1} parent=5 // pred_check_branch
        %4771 = sbr.rel (%p4769) target = $region56
      $region55: #{tpu_custom_call.1} parent=5 // pred_region
        %s4772 = ssub.s32 %s17, 2
        // Predicated region
        $region57: #{tpu_custom_call.1} parent=55 // pred_check
          %p4773 = pneg %p198
        $region58: #{tpu_custom_call.1} parent=55 // pred_check_branch
          %4775 = sbr.rel (%p4773) target = $region60
        $region59: #{tpu_custom_call.1} parent=55 // pred_region
          %s4776 = sand.u32 %s183, 1
          %s4777 = scalar_lea.sflag [#allocation4], %s4776
          %s4778 = sand.u32 %s183, 1
          %s4779 = scalar_lea.vmem [#allocation3], %s4778
          %4780 = dma.done %s4777, 16
        $region60: #{tpu_custom_call.1} parent=55 // pred_fallthru
          _
      $region56: #{tpu_custom_call.1} parent=5 // pred_fallthru
        _
    $region6: #{tpu_custom_call.1} parent=1 // loop_footer
      %s21 = sadd.s32 1, %s17
    $region7: #{tpu_custom_call.1} parent=1 // loop_footer_branch
      %16 = sbr.rel target = $region3
    $region8: #{tpu_custom_call.1} parent=1 // loop_exit
      _
    %4781 = vsyncpa [#allocation4], 1
    %s4782 = scalar_lea.sflag [#allocation4], 1
    %4783 = vsyncpa %s4782, 1

</llo_original>
